<compile_context>
chip_gen: v6e
topology: v6e:2x2x1
jax: 0.10.0
libtpu: 0.0.40
codegen_flags: <defaults>
</compile_context>

<pallas_src>
import functools

import jax
import jax.numpy as jnp
from jax.experimental import pallas as pl
from jax.experimental.pallas import tpu as pltpu


def _round_up(x, m):
    return ((x + m - 1) // m) * m


@functools.lru_cache(maxsize=None)
def _vmem_limit():
    """Generation-aware VMEM budget: ~75% of physical capacity
    (~96 MiB on v5e/v6e, ~48 MiB on v7x), clamped to a safe range."""
    try:
        cap = int(pltpu.get_tpu_info().vmem_capacity_bytes)
    except Exception:
        cap = 64 * 1024 * 1024
    return max(32 * 1024 * 1024, min(cap * 3 // 4, 100 * 1024 * 1024))


def _pick_tm(m, bytes_per_row, budget, n_batch):
    """Row-tile size for the fused matmul.

    As large as the VMEM budget allows (capped at 1024 matmul rows), a multiple
    of 8, with >=2 row blocks when batch==1 so both v7x TensorCores get work.
    M is padded in the wrapper, so any m works (no 'tm must divide m' cliff)."""
    cap = max(8, budget // max(bytes_per_row, 1))
    tm = min(m, cap, 1024)
    if n_batch == 1 and tm >= m and m >= 16:
        tm = (m + 1) // 2
    if tm < m:
        tm = max(8, (tm // 8) * 8)
    mp = _round_up(m, tm)
    return tm, mp


# ----------------------------------------------------------------------------
# Generic fused matmul kernel:
#   out = act( sum_i x_i @ w_i + bias + sum_j addend_j )
# All convs (after wrapper im2col) and the spectral 1x1 conv use this kernel.
# Cout is always a multiple of 128 -> every store is a dense 128-lane vst.
# ----------------------------------------------------------------------------
def _mm_kernel(*refs, n_x, n_add, activation):
    xs = refs[:n_x]
    ws = refs[n_x:2 * n_x]
    b_ref = refs[2 * n_x]
    add_refs = refs[2 * n_x + 1: 2 * n_x + 1 + n_add]
    o_ref = refs[2 * n_x + 1 + n_add]

    # Single big-K MXU matmul per operand pair, f32 accumulation in registers.
    acc = jnp.dot(xs[0][0], ws[0][...], preferred_element_type=jnp.float32)
    for i in range(1, n_x):
        acc = acc + jnp.dot(xs[i][0], ws[i][...],
                            preferred_element_type=jnp.float32)

    # Fused epilogue: bias + residual addends + activation, one dense store.
    acc = acc + b_ref[...]
    for a_ref in add_refs:
        acc = acc + a_ref[0].astype(jnp.float32)
    if activation == "relu":
        acc = jnp.maximum(acc, 0.0)
    elif activation == "tanh":
        acc = jnp.tanh(acc)
    o_ref[0] = acc.astype(o_ref.dtype)


def fused_matmul(xs, ws, bias, *, addends=(), activation=None,
                 out_dtype=jnp.bfloat16):
    """xs[i]: (N, M, K_i), ws[i]: (K_i, Coutp), bias: (1, Coutp) f32,
    addends[j]: (N, M, Coutp).  Coutp must be a multiple of 128."""
    N, M, _ = xs[0].shape
    Coutp = ws[0].shape[1]
    out_bytes = jnp.dtype(out_dtype).itemsize

    per_row = (sum(x.shape[2] for x in xs) * 2          # bf16 inputs
               + len(addends) * Coutp * 2               # bf16 addends
               + Coutp * out_bytes)                     # output
    tm, mp = _pick_tm(M, 2 * per_row, _vmem_limit() // 3, N)   # x2: dbl-buffer

    def pad_rows(a):
        return a if mp == M else jnp.pad(a, ((0, 0), (0, mp - M), (0, 0)))

    xs = [pad_rows(x.astype(jnp.bfloat16)) for x in xs]
    adds = [pad_rows(a.astype(jnp.bfloat16)) for a in addends]
    ws = [w.astype(jnp.bfloat16) for w in ws]
    bias = bias.astype(jnp.float32).reshape(1, Coutp)

    x_specs = [pl.BlockSpec((1, tm, x.shape[2]), lambda n, m: (n, m, 0))
               for x in xs]
    w_specs = [pl.BlockSpec(w.shape, lambda n, m: (0, 0)) for w in ws]
    b_spec = pl.BlockSpec((1, Coutp), lambda n, m: (0, 0))
    a_specs = [pl.BlockSpec((1, tm, Coutp), lambda n, m: (n, m, 0))
               for _ in adds]
    o_spec = pl.BlockSpec((1, tm, Coutp), lambda n, m: (n, m, 0))

    kernel = functools.partial(_mm_kernel, n_x=len(xs), n_add=len(adds),
                               activation=activation)
    out = pl.pallas_call(
        kernel,
        out_shape=jax.ShapeDtypeStruct((N, mp, Coutp), out_dtype),
        grid=(N, mp // tm),
        in_specs=x_specs + w_specs + [b_spec] + a_specs,
        out_specs=o_spec,
        compiler_params=pltpu.CompilerParams(
            dimension_semantics=("parallel", "parallel"),
            vmem_limit_bytes=_vmem_limit(),
        ),
    )(*xs, *ws, bias, *adds)
    return out[:, :M, :]


# ----------------------------------------------------------------------------
# Convolution = wrapper-side (strided) im2col + fused matmul kernel.
# ----------------------------------------------------------------------------
def conv2d_mm(x, w, bias, *, stride=1, padding=0, activation=None, addends=(),
              out_dtype=jnp.bfloat16):
    N, H, W, Cin = x.shape
    KH, KW, _, Cout = w.shape
    Ho = (H + 2 * padding - KH) // stride + 1
    Wo = (W + 2 * padding - KW) // stride + 1
    M = Ho * Wo
    K = KH * KW * Cin
    Kp = _round_up(K, 128)            # MXU-friendly K (100->128, 576->640)
    Coutp = _round_up(Cout, 128)      # dense 128-lane stores

    # im2col in bf16, directly at the conv stride (no stride-1 waste).
    xb = x.astype(jnp.bfloat16)
    xp = jnp.pad(xb, ((0, 0), (padding, padding), (padding, padding), (0, 0)))
    cols = [
        xp[:, i:i + (Ho - 1) * stride + 1:stride,
              j:j + (Wo - 1) * stride + 1:stride, :]
        for i in range(KH) for j in range(KW)
    ]
    patches = jnp.concatenate(cols, axis=-1).reshape(N, M, K)
    if Kp != K:
        patches = jnp.pad(patches, ((0, 0), (0, 0), (0, Kp - K)))

    wf = jnp.pad(w.reshape(K, Cout), ((0, Kp - K), (0, Coutp - Cout)))
    bf = jnp.pad(bias, ((0, Coutp - Cout),)).reshape(1, Coutp)

    adds = []
    for a in addends:
        a2 = a.reshape(N, M, Cout).astype(jnp.bfloat16)
        adds.append(jnp.pad(a2, ((0, 0), (0, 0), (0, Coutp - Cout))))

    out = fused_matmul([patches], [wf], bf, addends=tuple(adds),
                       activation=activation, out_dtype=out_dtype)
    return out[..., :Cout].reshape(N, Ho, Wo, Cout)


# ----------------------------------------------------------------------------
# FFC spectral branch: FFT in plain JAX, the 1x1 conv in the Pallas kernel with
# real/imag as separate operands and output-dim-concatenated weights.
# ----------------------------------------------------------------------------
def spectral_transform(x, w, bias):
    N, H, W, C = x.shape
    f = jnp.fft.rfft2(x.astype(jnp.float32), axes=(1, 2))     # (N, H, Wf, C)
    Wf = W // 2 + 1
    M = H * Wf
    re = jnp.real(f).reshape(N, M, C)
    im = jnp.imag(f).reshape(N, M, C)

    w2 = w.reshape(2 * C, 2 * C)
    w_re, w_im = w2[:C, :], w2[C:, :]           # (C, 2C): [wrr|wri], [wir|wii]
    b2 = bias.reshape(1, 2 * C)

    out = fused_matmul([re, im], [w_re, w_im], b2, activation="relu",
                       out_dtype=jnp.bfloat16)                 # (N, M, 2C)
    g = out.astype(jnp.float32)
    gr = g[..., :C].reshape(N, H, Wf, C)
    gi = g[..., C:].reshape(N, H, Wf, C)
    return jnp.fft.irfft2(gr + 1j * gi, s=(H, W), axes=(1, 2))


def ffc_res_block(x, p):
    # layer 1: local 3x3 + spectral -> fused add + ReLU in the matmul epilogue
    spec1 = spectral_transform(x, p["w_s1"], p["b_s1"])
    h = conv2d_mm(x, p["w_l1"], p["b_l1"], padding=1, activation="relu",
                  addends=(spec1,))
    # layer 2: local 3x3 + spectral + residual -> fused adds in the epilogue
    spec2 = spectral_transform(h, p["w_s2"], p["b_s2"])
    return conv2d_mm(h, p["w_l2"], p["b_l2"], padding=1, addends=(x, spec2))


# ----------------------------------------------------------------------------
# Gather-free 2x bilinear upsample, align_corners=False (exact torch semantics)
# ----------------------------------------------------------------------------
def upsample2x_bilinear(x):
    def up_h(a):
        prev = jnp.concatenate([a[:, :1], a[:, :-1]], axis=1)
        nxt = jnp.concatenate([a[:, 1:], a[:, -1:]], axis=1)
        even = 0.25 * prev + 0.75 * a
        odd = 0.75 * a + 0.25 * nxt
        N, H, W, C = a.shape
        return jnp.stack([even, odd], axis=2).reshape(N, 2 * H, W, C)

    def up_w(a):
        prev = jnp.concatenate([a[:, :, :1], a[:, :, :-1]], axis=2)
        nxt = jnp.concatenate([a[:, :, 1:], a[:, :, -1:]], axis=2)
        even = 0.25 * prev + 0.75 * a
        odd = 0.75 * a + 0.25 * nxt
        N, H, W, C = a.shape
        return jnp.stack([even, odd], axis=3).reshape(N, H, 2 * W, C)

    return up_w(up_h(x))


# ----------------------------------------------------------------------------
# Generator forward
# ----------------------------------------------------------------------------
def lama_generator_forward(x_nchw, params):
    x = jnp.transpose(x_nchw, (0, 2, 3, 1))                   # NCHW -> NHWC
    # down: 5x5 pad 2 conv as one K=100->128 matmul, fused ReLU
    x = conv2d_mm(x, params["down_w1"], params["down_b1"], padding=2,
                  activation="relu")
    # down: 3x3 stride-2 pad 1 conv, strided im2col (K=576->640)
    x = conv2d_mm(x, params["down_w2"], params["down_b2"], stride=2, padding=1)

    # body: 9 FFC residual blocks
    for bp in params["body"]:
        x = ffc_res_block(x, bp)

    # up: 2x bilinear (plain-JAX glue; fuses into the conv's im2col producer),
    # then 3x3 conv + tanh with 128-lane-dense stores (channels sliced after).
    x = upsample2x_bilinear(x.astype(jnp.float32))
    y = conv2d_mm(x, params["up_w"], params["up_b"], padding=1,
                  activation="tanh", out_dtype=jnp.float32)
    return jnp.transpose(y, (0, 3, 1, 2))                      # NHWC -> NCHW


# ----------------------------------------------------------------------------
# Deterministic synthetic parameters
# ----------------------------------------------------------------------------
def _conv_init(key, kh, kw, cin, cout):
    kw_key, kb_key = jax.random.split(key)
    fan_in = kh * kw * cin
    std = (2.0 / fan_in) ** 0.5
    w = std * jax.random.normal(kw_key, (kh, kw, cin, cout), jnp.float32)
    b = 0.01 * jax.random.normal(kb_key, (cout,), jnp.float32)
    return w, b


def init_params(key, in_channels=4, base=64, n_blocks=9):
    params = {}
    k = jax.random.fold_in(key, 0)
    params["down_w1"], params["down_b1"] = _conv_init(k, 5, 5, in_channels, base)
    k = jax.random.fold_in(key, 1)
    params["down_w2"], params["down_b2"] = _conv_init(k, 3, 3, base, base)

    body = []
    for i in range(n_blocks):
        bk = jax.random.fold_in(key, 100 + i)
        k1, k2, k3, k4 = jax.random.split(bk, 4)
        w_l1, b_l1 = _conv_init(k1, 3, 3, base, base)
        w_s1, b_s1 = _conv_init(k2, 1, 1, 2 * base, 2 * base)
        w_l2, b_l2 = _conv_init(k3, 3, 3, base, base)
        w_s2, b_s2 = _conv_init(k4, 1, 1, 2 * base, 2 * base)
        body.append(
            dict(w_l1=w_l1, b_l1=b_l1, w_s1=w_s1, b_s1=b_s1,
                 w_l2=w_l2, b_l2=b_l2, w_s2=w_s2, b_s2=b_s2)
        )
    params["body"] = body

    k = jax.random.fold_in(key, 2)
    params["up_w"], params["up_b"] = _conv_init(k, 3, 3, base, 3)
    return params


if __name__ == "__main__":
    x = jax.random.normal(jax.random.PRNGKey(0), (2, 4, 16, 16), jnp.float32)
    params = init_params(jax.random.PRNGKey(42), in_channels=4, base=64,
                         n_blocks=9)

    fwd = jax.jit(lama_generator_forward)
    y = fwd(x, params)
    jax.block_until_ready(y)

    assert y.shape == (2, 3, 16, 16), y.shape
    assert y.dtype == jnp.float32
    assert bool(jnp.all(jnp.isfinite(y)))
    assert bool(jnp.all(jnp.abs(y) <= 1.0 + 1e-6))  # tanh output range
    print("KERNEL_OK")
</pallas_src>

<mosaic_0001>
module attributes {stable_mosaic.version = 11 : i64} {
  func.func @_mm_kernel(%arg0: i32, %arg1: i32, %arg2: memref<1x256x128xbf16, #tpu.memory_space<vmem>>, %arg3: memref<128x128xbf16, #tpu.memory_space<vmem>>, %arg4: memref<1x128xf32, #tpu.memory_space<vmem>>, %arg5: memref<1x256x128xbf16, #tpu.memory_space<vmem>>) attributes {dimension_semantics = [#tpu.dimension_semantics<parallel>, #tpu.dimension_semantics<parallel>], iteration_bounds = array<i64: 2, 1>, scalar_prefetch = 0 : i64, scratch_operands = 0 : i64, tpu.core_type = #tpu.core_type<tc>, window_params = [{transform_indices = @transform_0, window_bounds = array<i64: 1, 256, 128>}, {pipeline_mode = #tpu.pipeline_mode<synchronous>, transform_indices = @transform_1, window_bounds = array<i64: 128, 128>}, {pipeline_mode = #tpu.pipeline_mode<synchronous>, transform_indices = @transform_2, window_bounds = array<i64: 1, 128>}, {transform_indices = @transform_3, window_bounds = array<i64: 1, 256, 128>}]} {
    %c0 = arith.constant 0 : index
    %c0_0 = arith.constant 0 : index
    %c0_1 = arith.constant 0 : index
    %0 = vector.load %arg2[%c0, %c0_0, %c0_1] : memref<1x256x128xbf16, #tpu.memory_space<vmem>>, vector<1x256x128xbf16>
    %1 = vector.shape_cast %0 : vector<1x256x128xbf16> to vector<256x128xbf16>
    %c0_2 = arith.constant 0 : index
    %c0_3 = arith.constant 0 : index
    %2 = vector.load %arg3[%c0_2, %c0_3] : memref<128x128xbf16, #tpu.memory_space<vmem>>, vector<128x128xbf16>
    %cst = arith.constant dense<0.000000e+00> : vector<256x128xf32>
    %3 = tpu.matmul %1, %2, %cst {dimension_numbers = #tpu.dot_dimension_numbers<[1], [0], [0], [1], [0, 0, 1, 1], [], []>} : vector<256x128xbf16>, vector<128x128xbf16>, vector<256x128xf32> -> vector<256x128xf32>
    %c0_4 = arith.constant 0 : index
    %c0_5 = arith.constant 0 : index
    %4 = vector.load %arg4[%c0_4, %c0_5] : memref<1x128xf32, #tpu.memory_space<vmem>>, vector<1x128xf32>
    %5 = vector.broadcast %4 : vector<1x128xf32> to vector<256x128xf32>
    %6 = arith.addf %3, %5 : vector<256x128xf32>
    %cst_6 = arith.constant 0.000000e+00 : f32
    %7 = vector.broadcast %cst_6 : f32 to vector<256x128xf32>
    %8 = arith.maximumf %6, %7 : vector<256x128xf32>
    %9 = arith.truncf %8 : vector<256x128xf32> to vector<256x128xbf16>
    %c0_7 = arith.constant 0 : index
    %c0_8 = arith.constant 0 : index
    %c0_9 = arith.constant 0 : index
    %10 = vector.load %arg5[%c0_7, %c0_8, %c0_9] : memref<1x256x128xbf16, #tpu.memory_space<vmem>>, vector<1x256x128xbf16>
    %11 = vector.shape_cast %10 : vector<1x256x128xbf16> to vector<256x128xbf16>
    %12 = vector.shape_cast %9 : vector<256x128xbf16> to vector<1x256x128xbf16>
    tpu.vector_store %arg5[%c0_7, %c0_8, %c0_9], %12 {strides = array<i32>} : memref<1x256x128xbf16, #tpu.memory_space<vmem>>, vector<1x256x128xbf16>,
    return
  }
  func.func @transform_0(%arg0: i32, %arg1: i32) -> (i32, i32, i32) {
    %c0_i32 = arith.constant 0 : i32
    %c0_i32_0 = arith.constant 0 : i32
    return %arg0, %arg1, %c0_i32 : i32, i32, i32
  }
  func.func @transform_1(%arg0: i32, %arg1: i32) -> (i32, i32) {
    %c0_i32 = arith.constant 0 : i32
    %c0_i32_0 = arith.constant 0 : i32
    %c0_i32_1 = arith.constant 0 : i32
    return %c0_i32, %c0_i32_0 : i32, i32
  }
  func.func @transform_2(%arg0: i32, %arg1: i32) -> (i32, i32) {
    %c0_i32 = arith.constant 0 : i32
    %c0_i32_0 = arith.constant 0 : i32
    %c0_i32_1 = arith.constant 0 : i32
    return %c0_i32, %c0_i32_0 : i32, i32
  }
  func.func @transform_3(%arg0: i32, %arg1: i32) -> (i32, i32, i32) {
    %c0_i32 = arith.constant 0 : i32
    %c0_i32_0 = arith.constant 0 : i32
    return %arg0, %arg1, %c0_i32 : i32, i32, i32
  }
}

module attributes {stable_mosaic.version = 11 : i64} {
  func.func @_mm_kernel(%arg0: i32, %arg1: i32, %arg2: memref<1x64x640xbf16, #tpu.memory_space<vmem>>, %arg3: memref<640x128xbf16, #tpu.memory_space<vmem>>, %arg4: memref<1x128xf32, #tpu.memory_space<vmem>>, %arg5: memref<1x64x128xbf16, #tpu.memory_space<vmem>>) attributes {dimension_semantics = [#tpu.dimension_semantics<parallel>, #tpu.dimension_semantics<parallel>], iteration_bounds = array<i64: 2, 1>, scalar_prefetch = 0 : i64, scratch_operands = 0 : i64, tpu.core_type = #tpu.core_type<tc>, window_params = [{transform_indices = @transform_0, window_bounds = array<i64: 1, 64, 640>}, {pipeline_mode = #tpu.pipeline_mode<synchronous>, transform_indices = @transform_1, window_bounds = array<i64: 640, 128>}, {pipeline_mode = #tpu.pipeline_mode<synchronous>, transform_indices = @transform_2, window_bounds = array<i64: 1, 128>}, {transform_indices = @transform_3, window_bounds = array<i64: 1, 64, 128>}]} {
    %c0 = arith.constant 0 : index
    %c0_0 = arith.constant 0 : index
    %c0_1 = arith.constant 0 : index
    %0 = vector.load %arg2[%c0, %c0_0, %c0_1] : memref<1x64x640xbf16, #tpu.memory_space<vmem>>, vector<1x64x640xbf16>
    %1 = vector.shape_cast %0 : vector<1x64x640xbf16> to vector<64x640xbf16>
    %c0_2 = arith.constant 0 : index
    %c0_3 = arith.constant 0 : index
    %2 = vector.load %arg3[%c0_2, %c0_3] : memref<640x128xbf16, #tpu.memory_space<vmem>>, vector<640x128xbf16>
    %cst = arith.constant dense<0.000000e+00> : vector<64x128xf32>
    %3 = tpu.matmul %1, %2, %cst {dimension_numbers = #tpu.dot_dimension_numbers<[1], [0], [0], [1], [0, 0, 1, 1], [], []>} : vector<64x640xbf16>, vector<640x128xbf16>, vector<64x128xf32> -> vector<64x128xf32>
    %c0_4 = arith.constant 0 : index
    %c0_5 = arith.constant 0 : index
    %4 = vector.load %arg4[%c0_4, %c0_5] : memref<1x128xf32, #tpu.memory_space<vmem>>, vector<1x128xf32>
    %5 = vector.broadcast %4 : vector<1x128xf32> to vector<64x128xf32>
    %6 = arith.addf %3, %5 : vector<64x128xf32>
    %7 = arith.truncf %6 : vector<64x128xf32> to vector<64x128xbf16>
    %c0_6 = arith.constant 0 : index
    %c0_7 = arith.constant 0 : index
    %c0_8 = arith.constant 0 : index
    %8 = vector.load %arg5[%c0_6, %c0_7, %c0_8] : memref<1x64x128xbf16, #tpu.memory_space<vmem>>, vector<1x64x128xbf16>
    %9 = vector.shape_cast %8 : vector<1x64x128xbf16> to vector<64x128xbf16>
    %10 = vector.shape_cast %7 : vector<64x128xbf16> to vector<1x64x128xbf16>
    tpu.vector_store %arg5[%c0_6, %c0_7, %c0_8], %10 {strides = array<i32>} : memref<1x64x128xbf16, #tpu.memory_space<vmem>>, vector<1x64x128xbf16>,
    return
  }
  func.func @transform_0(%arg0: i32, %arg1: i32) -> (i32, i32, i32) {
    %c0_i32 = arith.constant 0 : i32
    %c0_i32_0 = arith.constant 0 : i32
    return %arg0, %arg1, %c0_i32 : i32, i32, i32
  }
  func.func @transform_1(%arg0: i32, %arg1: i32) -> (i32, i32) {
    %c0_i32 = arith.constant 0 : i32
    %c0_i32_0 = arith.constant 0 : i32
    %c0_i32_1 = arith.constant 0 : i32
    return %c0_i32, %c0_i32_0 : i32, i32
  }
  func.func @transform_2(%arg0: i32, %arg1: i32) -> (i32, i32) {
    %c0_i32 = arith.constant 0 : i32
    %c0_i32_0 = arith.constant 0 : i32
    %c0_i32_1 = arith.constant 0 : i32
    return %c0_i32, %c0_i32_0 : i32, i32
  }
  func.func @transform_3(%arg0: i32, %arg1: i32) -> (i32, i32, i32) {
    %c0_i32 = arith.constant 0 : i32
    %c0_i32_0 = arith.constant 0 : i32
    return %arg0, %arg1, %c0_i32 : i32, i32, i32
  }
}

module attributes {stable_mosaic.version = 11 : i64} {
  func.func @_mm_kernel(%arg0: i32, %arg1: i32, %arg2: memref<1x40x64xbf16, #tpu.memory_space<vmem>>, %arg3: memref<1x40x64xbf16, #tpu.memory_space<vmem>>, %arg4: memref<64x128xbf16, #tpu.memory_space<vmem>>, %arg5: memref<64x128xbf16, #tpu.memory_space<vmem>>, %arg6: memref<1x128xf32, #tpu.memory_space<vmem>>, %arg7: memref<1x40x128xbf16, #tpu.memory_space<vmem>>) attributes {dimension_semantics = [#tpu.dimension_semantics<parallel>, #tpu.dimension_semantics<parallel>], iteration_bounds = array<i64: 2, 1>, scalar_prefetch = 0 : i64, scratch_operands = 0 : i64, tpu.core_type = #tpu.core_type<tc>, window_params = [{transform_indices = @transform_0, window_bounds = array<i64: 1, 40, 64>}, {transform_indices = @transform_1, window_bounds = array<i64: 1, 40, 64>}, {pipeline_mode = #tpu.pipeline_mode<synchronous>, transform_indices = @transform_2, window_bounds = array<i64: 64, 128>}, {pipeline_mode = #tpu.pipeline_mode<synchronous>, transform_indices = @transform_3, window_bounds = array<i64: 64, 128>}, {pipeline_mode = #tpu.pipeline_mode<synchronous>, transform_indices = @transform_4, window_bounds = array<i64: 1, 128>}, {transform_indices = @transform_5, window_bounds = array<i64: 1, 40, 128>}]} {
    %c0 = arith.constant 0 : index
    %c0_0 = arith.constant 0 : index
    %c0_1 = arith.constant 0 : index
    %0 = vector.load %arg2[%c0, %c0_0, %c0_1] : memref<1x40x64xbf16, #tpu.memory_space<vmem>>, vector<1x40x64xbf16>
    %1 = vector.shape_cast %0 : vector<1x40x64xbf16> to vector<40x64xbf16>
    %c0_2 = arith.constant 0 : index
    %c0_3 = arith.constant 0 : index
    %2 = vector.load %arg4[%c0_2, %c0_3] : memref<64x128xbf16, #tpu.memory_space<vmem>>, vector<64x128xbf16>
    %cst = arith.constant dense<0.000000e+00> : vector<40x128xf32>
    %3 = tpu.matmul %1, %2, %cst {dimension_numbers = #tpu.dot_dimension_numbers<[1], [0], [0], [1], [0, 0, 1, 1], [], []>} : vector<40x64xbf16>, vector<64x128xbf16>, vector<40x128xf32> -> vector<40x128xf32>
    %c0_4 = arith.constant 0 : index
    %c0_5 = arith.constant 0 : index
    %c0_6 = arith.constant 0 : index
    %4 = vector.load %arg3[%c0_4, %c0_5, %c0_6] : memref<1x40x64xbf16, #tpu.memory_space<vmem>>, vector<1x40x64xbf16>
    %5 = vector.shape_cast %4 : vector<1x40x64xbf16> to vector<40x64xbf16>
    %c0_7 = arith.constant 0 : index
    %c0_8 = arith.constant 0 : index
    %6 = vector.load %arg5[%c0_7, %c0_8] : memref<64x128xbf16, #tpu.memory_space<vmem>>, vector<64x128xbf16>
    %cst_9 = arith.constant dense<0.000000e+00> : vector<40x128xf32>
    %7 = tpu.matmul %5, %6, %cst_9 {dimension_numbers = #tpu.dot_dimension_numbers<[1], [0], [0], [1], [0, 0, 1, 1], [], []>} : vector<40x64xbf16>, vector<64x128xbf16>, vector<40x128xf32> -> vector<40x128xf32>
    %8 = arith.addf %3, %7 : vector<40x128xf32>
    %c0_10 = arith.constant 0 : index
    %c0_11 = arith.constant 0 : index
    %9 = vector.load %arg6[%c0_10, %c0_11] : memref<1x128xf32, #tpu.memory_space<vmem>>, vector<1x128xf32>
    %10 = vector.broadcast %9 : vector<1x128xf32> to vector<40x128xf32>
    %11 = arith.addf %8, %10 : vector<40x128xf32>
    %cst_12 = arith.constant 0.000000e+00 : f32
    %12 = vector.broadcast %cst_12 : f32 to vector<40x128xf32>
    %13 = arith.maximumf %11, %12 : vector<40x128xf32>
    %14 = arith.truncf %13 : vector<40x128xf32> to vector<40x128xbf16>
    %c0_13 = arith.constant 0 : index
    %c0_14 = arith.constant 0 : index
    %c0_15 = arith.constant 0 : index
    %15 = vector.load %arg7[%c0_13, %c0_14, %c0_15] : memref<1x40x128xbf16, #tpu.memory_space<vmem>>, vector<1x40x128xbf16>
    %16 = vector.shape_cast %15 : vector<1x40x128xbf16> to vector<40x128xbf16>
    %17 = vector.shape_cast %14 : vector<40x128xbf16> to vector<1x40x128xbf16>
    tpu.vector_store %arg7[%c0_13, %c0_14, %c0_15], %17 {strides = array<i32>} : memref<1x40x128xbf16, #tpu.memory_space<vmem>>, vector<1x40x128xbf16>,
    return
  }
  func.func @transform_0(%arg0: i32, %arg1: i32) -> (i32, i32, i32) {
    %c0_i32 = arith.constant 0 : i32
    %c0_i32_0 = arith.constant 0 : i32
    return %arg0, %arg1, %c0_i32 : i32, i32, i32
  }
  func.func @transform_1(%arg0: i32, %arg1: i32) -> (i32, i32, i32) {
    %c0_i32 = arith.constant 0 : i32
    %c0_i32_0 = arith.constant 0 : i32
    return %arg0, %arg1, %c0_i32 : i32, i32, i32
  }
  func.func @transform_2(%arg0: i32, %arg1: i32) -> (i32, i32) {
    %c0_i32 = arith.constant 0 : i32
    %c0_i32_0 = arith.constant 0 : i32
    %c0_i32_1 = arith.constant 0 : i32
    return %c0_i32, %c0_i32_0 : i32, i32
  }
  func.func @transform_3(%arg0: i32, %arg1: i32) -> (i32, i32) {
    %c0_i32 = arith.constant 0 : i32
    %c0_i32_0 = arith.constant 0 : i32
    %c0_i32_1 = arith.constant 0 : i32
    return %c0_i32, %c0_i32_0 : i32, i32
  }
  func.func @transform_4(%arg0: i32, %arg1: i32) -> (i32, i32) {
    %c0_i32 = arith.constant 0 : i32
    %c0_i32_0 = arith.constant 0 : i32
    %c0_i32_1 = arith.constant 0 : i32
    return %c0_i32, %c0_i32_0 : i32, i32
  }
  func.func @transform_5(%arg0: i32, %arg1: i32) -> (i32, i32, i32) {
    %c0_i32 = arith.constant 0 : i32
    %c0_i32_0 = arith.constant 0 : i32
    return %arg0, %arg1, %c0_i32 : i32, i32, i32
  }
}

module attributes {stable_mosaic.version = 11 : i64} {
  func.func @_mm_kernel(%arg0: i32, %arg1: i32, %arg2: memref<1x64x640xbf16, #tpu.memory_space<vmem>>, %arg3: memref<640x128xbf16, #tpu.memory_space<vmem>>, %arg4: memref<1x128xf32, #tpu.memory_space<vmem>>, %arg5: memref<1x64x128xbf16, #tpu.memory_space<vmem>>, %arg6: memref<1x64x128xbf16, #tpu.memory_space<vmem>>) attributes {dimension_semantics = [#tpu.dimension_semantics<parallel>, #tpu.dimension_semantics<parallel>], iteration_bounds = array<i64: 2, 1>, scalar_prefetch = 0 : i64, scratch_operands = 0 : i64, tpu.core_type = #tpu.core_type<tc>, window_params = [{transform_indices = @transform_0, window_bounds = array<i64: 1, 64, 640>}, {pipeline_mode = #tpu.pipeline_mode<synchronous>, transform_indices = @transform_1, window_bounds = array<i64: 640, 128>}, {pipeline_mode = #tpu.pipeline_mode<synchronous>, transform_indices = @transform_2, window_bounds = array<i64: 1, 128>}, {transform_indices = @transform_3, window_bounds = array<i64: 1, 64, 128>}, {transform_indices = @transform_4, window_bounds = array<i64: 1, 64, 128>}]} {
    %c0 = arith.constant 0 : index
    %c0_0 = arith.constant 0 : index
    %c0_1 = arith.constant 0 : index
    %0 = vector.load %arg2[%c0, %c0_0, %c0_1] : memref<1x64x640xbf16, #tpu.memory_space<vmem>>, vector<1x64x640xbf16>
    %1 = vector.shape_cast %0 : vector<1x64x640xbf16> to vector<64x640xbf16>
    %c0_2 = arith.constant 0 : index
    %c0_3 = arith.constant 0 : index
    %2 = vector.load %arg3[%c0_2, %c0_3] : memref<640x128xbf16, #tpu.memory_space<vmem>>, vector<640x128xbf16>
    %cst = arith.constant dense<0.000000e+00> : vector<64x128xf32>
    %3 = tpu.matmul %1, %2, %cst {dimension_numbers = #tpu.dot_dimension_numbers<[1], [0], [0], [1], [0, 0, 1, 1], [], []>} : vector<64x640xbf16>, vector<640x128xbf16>, vector<64x128xf32> -> vector<64x128xf32>
    %c0_4 = arith.constant 0 : index
    %c0_5 = arith.constant 0 : index
    %4 = vector.load %arg4[%c0_4, %c0_5] : memref<1x128xf32, #tpu.memory_space<vmem>>, vector<1x128xf32>
    %5 = vector.broadcast %4 : vector<1x128xf32> to vector<64x128xf32>
    %6 = arith.addf %3, %5 : vector<64x128xf32>
    %c0_6 = arith.constant 0 : index
    %c0_7 = arith.constant 0 : index
    %c0_8 = arith.constant 0 : index
    %7 = vector.load %arg5[%c0_6, %c0_7, %c0_8] : memref<1x64x128xbf16, #tpu.memory_space<vmem>>, vector<1x64x128xbf16>
    %8 = vector.shape_cast %7 : vector<1x64x128xbf16> to vector<64x128xbf16>
    %9 = arith.extf %8 : vector<64x128xbf16> to vector<64x128xf32>
    %10 = arith.addf %6, %9 : vector<64x128xf32>
    %cst_9 = arith.constant 0.000000e+00 : f32
    %11 = vector.broadcast %cst_9 : f32 to vector<64x128xf32>
    %12 = arith.maximumf %10, %11 : vector<64x128xf32>
    %13 = arith.truncf %12 : vector<64x128xf32> to vector<64x128xbf16>
    %c0_10 = arith.constant 0 : index
    %c0_11 = arith.constant 0 : index
    %c0_12 = arith.constant 0 : index
    %14 = vector.load %arg6[%c0_10, %c0_11, %c0_12] : memref<1x64x128xbf16, #tpu.memory_space<vmem>>, vector<1x64x128xbf16>
    %15 = vector.shape_cast %14 : vector<1x64x128xbf16> to vector<64x128xbf16>
    %16 = vector.shape_cast %13 : vector<64x128xbf16> to vector<1x64x128xbf16>
    tpu.vector_store %arg6[%c0_10, %c0_11, %c0_12], %16 {strides = array<i32>} : memref<1x64x128xbf16, #tpu.memory_space<vmem>>, vector<1x64x128xbf16>,
    return
  }
  func.func @transform_0(%arg0: i32, %arg1: i32) -> (i32, i32, i32) {
    %c0_i32 = arith.constant 0 : i32
    %c0_i32_0 = arith.constant 0 : i32
    return %arg0, %arg1, %c0_i32 : i32, i32, i32
  }
  func.func @transform_1(%arg0: i32, %arg1: i32) -> (i32, i32) {
    %c0_i32 = arith.constant 0 : i32
    %c0_i32_0 = arith.constant 0 : i32
    %c0_i32_1 = arith.constant 0 : i32
    return %c0_i32, %c0_i32_0 : i32, i32
  }
  func.func @transform_2(%arg0: i32, %arg1: i32) -> (i32, i32) {
    %c0_i32 = arith.constant 0 : i32
    %c0_i32_0 = arith.constant 0 : i32
    %c0_i32_1 = arith.constant 0 : i32
    return %c0_i32, %c0_i32_0 : i32, i32
  }
  func.func @transform_3(%arg0: i32, %arg1: i32) -> (i32, i32, i32) {
    %c0_i32 = arith.constant 0 : i32
    %c0_i32_0 = arith.constant 0 : i32
    return %arg0, %arg1, %c0_i32 : i32, i32, i32
  }
  func.func @transform_4(%arg0: i32, %arg1: i32) -> (i32, i32, i32) {
    %c0_i32 = arith.constant 0 : i32
    %c0_i32_0 = arith.constant 0 : i32
    return %arg0, %arg1, %c0_i32 : i32, i32, i32
  }
}

module attributes {stable_mosaic.version = 11 : i64} {
  func.func @_mm_kernel(%arg0: i32, %arg1: i32, %arg2: memref<1x64x640xbf16, #tpu.memory_space<vmem>>, %arg3: memref<640x128xbf16, #tpu.memory_space<vmem>>, %arg4: memref<1x128xf32, #tpu.memory_space<vmem>>, %arg5: memref<1x64x128xbf16, #tpu.memory_space<vmem>>, %arg6: memref<1x64x128xbf16, #tpu.memory_space<vmem>>, %arg7: memref<1x64x128xbf16, #tpu.memory_space<vmem>>) attributes {dimension_semantics = [#tpu.dimension_semantics<parallel>, #tpu.dimension_semantics<parallel>], iteration_bounds = array<i64: 2, 1>, scalar_prefetch = 0 : i64, scratch_operands = 0 : i64, tpu.core_type = #tpu.core_type<tc>, window_params = [{transform_indices = @transform_0, window_bounds = array<i64: 1, 64, 640>}, {pipeline_mode = #tpu.pipeline_mode<synchronous>, transform_indices = @transform_1, window_bounds = array<i64: 640, 128>}, {pipeline_mode = #tpu.pipeline_mode<synchronous>, transform_indices = @transform_2, window_bounds = array<i64: 1, 128>}, {transform_indices = @transform_3, window_bounds = array<i64: 1, 64, 128>}, {transform_indices = @transform_4, window_bounds = array<i64: 1, 64, 128>}, {transform_indices = @transform_5, window_bounds = array<i64: 1, 64, 128>}]} {
    %c0 = arith.constant 0 : index
    %c0_0 = arith.constant 0 : index
    %c0_1 = arith.constant 0 : index
    %0 = vector.load %arg2[%c0, %c0_0, %c0_1] : memref<1x64x640xbf16, #tpu.memory_space<vmem>>, vector<1x64x640xbf16>
    %1 = vector.shape_cast %0 : vector<1x64x640xbf16> to vector<64x640xbf16>
    %c0_2 = arith.constant 0 : index
    %c0_3 = arith.constant 0 : index
    %2 = vector.load %arg3[%c0_2, %c0_3] : memref<640x128xbf16, #tpu.memory_space<vmem>>, vector<640x128xbf16>
    %cst = arith.constant dense<0.000000e+00> : vector<64x128xf32>
    %3 = tpu.matmul %1, %2, %cst {dimension_numbers = #tpu.dot_dimension_numbers<[1], [0], [0], [1], [0, 0, 1, 1], [], []>} : vector<64x640xbf16>, vector<640x128xbf16>, vector<64x128xf32> -> vector<64x128xf32>
    %c0_4 = arith.constant 0 : index
    %c0_5 = arith.constant 0 : index
    %4 = vector.load %arg4[%c0_4, %c0_5] : memref<1x128xf32, #tpu.memory_space<vmem>>, vector<1x128xf32>
    %5 = vector.broadcast %4 : vector<1x128xf32> to vector<64x128xf32>
    %6 = arith.addf %3, %5 : vector<64x128xf32>
    %c0_6 = arith.constant 0 : index
    %c0_7 = arith.constant 0 : index
    %c0_8 = arith.constant 0 : index
    %7 = vector.load %arg5[%c0_6, %c0_7, %c0_8] : memref<1x64x128xbf16, #tpu.memory_space<vmem>>, vector<1x64x128xbf16>
    %8 = vector.shape_cast %7 : vector<1x64x128xbf16> to vector<64x128xbf16>
    %9 = arith.extf %8 : vector<64x128xbf16> to vector<64x128xf32>
    %10 = arith.addf %6, %9 : vector<64x128xf32>
    %c0_9 = arith.constant 0 : index
    %c0_10 = arith.constant 0 : index
    %c0_11 = arith.constant 0 : index
    %11 = vector.load %arg6[%c0_9, %c0_10, %c0_11] : memref<1x64x128xbf16, #tpu.memory_space<vmem>>, vector<1x64x128xbf16>
    %12 = vector.shape_cast %11 : vector<1x64x128xbf16> to vector<64x128xbf16>
    %13 = arith.extf %12 : vector<64x128xbf16> to vector<64x128xf32>
    %14 = arith.addf %10, %13 : vector<64x128xf32>
    %15 = arith.truncf %14 : vector<64x128xf32> to vector<64x128xbf16>
    %c0_12 = arith.constant 0 : index
    %c0_13 = arith.constant 0 : index
    %c0_14 = arith.constant 0 : index
    %16 = vector.load %arg7[%c0_12, %c0_13, %c0_14] : memref<1x64x128xbf16, #tpu.memory_space<vmem>>, vector<1x64x128xbf16>
    %17 = vector.shape_cast %16 : vector<1x64x128xbf16> to vector<64x128xbf16>
    %18 = vector.shape_cast %15 : vector<64x128xbf16> to vector<1x64x128xbf16>
    tpu.vector_store %arg7[%c0_12, %c0_13, %c0_14], %18 {strides = array<i32>} : memref<1x64x128xbf16, #tpu.memory_space<vmem>>, vector<1x64x128xbf16>,
    return
  }
  func.func @transform_0(%arg0: i32, %arg1: i32) -> (i32, i32, i32) {
    %c0_i32 = arith.constant 0 : i32
    %c0_i32_0 = arith.constant 0 : i32
    return %arg0, %arg1, %c0_i32 : i32, i32, i32
  }
  func.func @transform_1(%arg0: i32, %arg1: i32) -> (i32, i32) {
    %c0_i32 = arith.constant 0 : i32
    %c0_i32_0 = arith.constant 0 : i32
    %c0_i32_1 = arith.constant 0 : i32
    return %c0_i32, %c0_i32_0 : i32, i32
  }
  func.func @transform_2(%arg0: i32, %arg1: i32) -> (i32, i32) {
    %c0_i32 = arith.constant 0 : i32
    %c0_i32_0 = arith.constant 0 : i32
    %c0_i32_1 = arith.constant 0 : i32
    return %c0_i32, %c0_i32_0 : i32, i32
  }
  func.func @transform_3(%arg0: i32, %arg1: i32) -> (i32, i32, i32) {
    %c0_i32 = arith.constant 0 : i32
    %c0_i32_0 = arith.constant 0 : i32
    return %arg0, %arg1, %c0_i32 : i32, i32, i32
  }
  func.func @transform_4(%arg0: i32, %arg1: i32) -> (i32, i32, i32) {
    %c0_i32 = arith.constant 0 : i32
    %c0_i32_0 = arith.constant 0 : i32
    return %arg0, %arg1, %c0_i32 : i32, i32, i32
  }
  func.func @transform_5(%arg0: i32, %arg1: i32) -> (i32, i32, i32) {
    %c0_i32 = arith.constant 0 : i32
    %c0_i32_0 = arith.constant 0 : i32
    return %arg0, %arg1, %c0_i32 : i32, i32, i32
  }
}

module attributes {stable_mosaic.version = 11 : i64} {
  func.func @_mm_kernel(%arg0: i32, %arg1: i32, %arg2: memref<1x256x640xbf16, #tpu.memory_space<vmem>>, %arg3: memref<640x128xbf16, #tpu.memory_space<vmem>>, %arg4: memref<1x128xf32, #tpu.memory_space<vmem>>, %arg5: memref<1x256x128xf32, #tpu.memory_space<vmem>>) attributes {dimension_semantics = [#tpu.dimension_semantics<parallel>, #tpu.dimension_semantics<parallel>], iteration_bounds = array<i64: 2, 1>, scalar_prefetch = 0 : i64, scratch_operands = 0 : i64, tpu.core_type = #tpu.core_type<tc>, window_params = [{transform_indices = @transform_0, window_bounds = array<i64: 1, 256, 640>}, {pipeline_mode = #tpu.pipeline_mode<synchronous>, transform_indices = @transform_1, window_bounds = array<i64: 640, 128>}, {pipeline_mode = #tpu.pipeline_mode<synchronous>, transform_indices = @transform_2, window_bounds = array<i64: 1, 128>}, {transform_indices = @transform_3, window_bounds = array<i64: 1, 256, 128>}]} {
    %c0 = arith.constant 0 : index
    %c0_0 = arith.constant 0 : index
    %c0_1 = arith.constant 0 : index
    %0 = vector.load %arg2[%c0, %c0_0, %c0_1] : memref<1x256x640xbf16, #tpu.memory_space<vmem>>, vector<1x256x640xbf16>
    %1 = vector.shape_cast %0 : vector<1x256x640xbf16> to vector<256x640xbf16>
    %c0_2 = arith.constant 0 : index
    %c0_3 = arith.constant 0 : index
    %2 = vector.load %arg3[%c0_2, %c0_3] : memref<640x128xbf16, #tpu.memory_space<vmem>>, vector<640x128xbf16>
    %cst = arith.constant dense<0.000000e+00> : vector<256x128xf32>
    %3 = tpu.matmul %1, %2, %cst {dimension_numbers = #tpu.dot_dimension_numbers<[1], [0], [0], [1], [0, 0, 1, 1], [], []>} : vector<256x640xbf16>, vector<640x128xbf16>, vector<256x128xf32> -> vector<256x128xf32>
    %c0_4 = arith.constant 0 : index
    %c0_5 = arith.constant 0 : index
    %4 = vector.load %arg4[%c0_4, %c0_5] : memref<1x128xf32, #tpu.memory_space<vmem>>, vector<1x128xf32>
    %5 = vector.broadcast %4 : vector<1x128xf32> to vector<256x128xf32>
    %6 = arith.addf %3, %5 : vector<256x128xf32>
    %7 = math.tanh %6 : vector<256x128xf32>
    %c0_6 = arith.constant 0 : index
    %c0_7 = arith.constant 0 : index
    %c0_8 = arith.constant 0 : index
    %8 = vector.load %arg5[%c0_6, %c0_7, %c0_8] : memref<1x256x128xf32, #tpu.memory_space<vmem>>, vector<1x256x128xf32>
    %9 = vector.shape_cast %8 : vector<1x256x128xf32> to vector<256x128xf32>
    %10 = vector.shape_cast %7 : vector<256x128xf32> to vector<1x256x128xf32>
    tpu.vector_store %arg5[%c0_6, %c0_7, %c0_8], %10 {strides = array<i32>} : memref<1x256x128xf32, #tpu.memory_space<vmem>>, vector<1x256x128xf32>,
    return
  }
  func.func @transform_0(%arg0: i32, %arg1: i32) -> (i32, i32, i32) {
    %c0_i32 = arith.constant 0 : i32
    %c0_i32_0 = arith.constant 0 : i32
    return %arg0, %arg1, %c0_i32 : i32, i32, i32
  }
  func.func @transform_1(%arg0: i32, %arg1: i32) -> (i32, i32) {
    %c0_i32 = arith.constant 0 : i32
    %c0_i32_0 = arith.constant 0 : i32
    %c0_i32_1 = arith.constant 0 : i32
    return %c0_i32, %c0_i32_0 : i32, i32
  }
  func.func @transform_2(%arg0: i32, %arg1: i32) -> (i32, i32) {
    %c0_i32 = arith.constant 0 : i32
    %c0_i32_0 = arith.constant 0 : i32
    %c0_i32_1 = arith.constant 0 : i32
    return %c0_i32, %c0_i32_0 : i32, i32
  }
  func.func @transform_3(%arg0: i32, %arg1: i32) -> (i32, i32, i32) {
    %c0_i32 = arith.constant 0 : i32
    %c0_i32_0 = arith.constant 0 : i32
    return %arg0, %arg1, %c0_i32 : i32, i32, i32
  }
}

</mosaic_0001>

<llo_original>
// kernel: lama_generator_forward.39
$region0: #{lama_generator_forward.39}
  #allocation0 [shape = 'u32[]', space=smem, size = 0x4, offset = 0x4, fixed_abs, tag = 'smem constant byte address 0x4 - core index']
  #allocation1 [shape = 'u32[144,128]{1,0:T(1,128)}', space=vmem, size = 0x12000, scoped, tag = 'internal scratch']
  %s0 = inlined_call_operand.vmem [shape: bf16[2,256,128], index: 0, kind: input, shape index: {}]
  %s1 = inlined_call_operand.vmem [shape: bf16[128,128], index: 1, kind: input, shape index: {}]
  %s2 = inlined_call_operand.vmem [shape: f32[1,128], index: 2, kind: input, shape index: {}]
  %s3 = inlined_call_operand.vmem [shape: bf16[2,256,128], index: 3, kind: output, shape index: {}]
  %s4 = sld [smem:[#allocation0]]
  $region45: #{lama_generator_forward.39} parent=0
    _
  %s6 = ssub.s32 1, %s4
  %s7 = scalar_select 0, %s6, %s4
  loop: start=0, step=1, limit=4
  $region2: #{lama_generator_forward.39} parent=0 // loop_pre_header
    _
  $region3: #{lama_generator_forward.39} parent=0 // loop_header
    %s9 = sphi 0, %s13
    %p10 = scmp.ge.s32.totalorder %s9, 4
    %s16 = sphi 0, %s28
    %s17 = sphi 0, %s24
    %s18 = sphi 0, %s16
    %s19 = sphi 0, %s17
    %s20 = sphi 0, %s18
    %s21 = sphi 0, %s19
    %s33 = sphi 0, %s35
    %s36 = sphi 0, %s33
    %s37 = sphi 0, %s36
    %s53 = sphi 0, %s37
    %s57 = sphi 0, %s57
    %s59 = sphi 0, %s57
    %s60 = sphi 0, %s59
    %s74 = sphi 0, %s60
    %s78 = sphi 0, %s78
    %s80 = sphi 0, %s78
    %s81 = sphi 0, %s80
    %s95 = sphi 0, %s81
    %s103 = sphi 0, %s105
    %s106 = sphi 0, %s103
    %s107 = sphi 0, %s106
    %s123 = sphi 0, %s107
  $region4: #{lama_generator_forward.39} parent=0 // loop_header_branch
    %12 = sbr.rel (%p10) target = $region8
  $region5: #{lama_generator_forward.39} parent=0 // loop_body
    %s14 = ssub.s32 %s9, 1
    %s15 = ssub.s32 %s9, 2
    %s22 = sadd.s32 1, %s17
    %p23 = scmp.ge.s32.totalorder %s22, 1
    %s24 = scalar_select %p23, 0, %s22
    %s25 = sadd.s32 1, %s16
    %s26 = scalar_select %p23, %s25, %s16
    %p27 = scmp.ge.s32.totalorder %s26, 2
    %s28 = scalar_select %p27, 0, %s26
    %s29 = ssub.s32 %s16, %s28
    %s30 = ssub.s32 %s17, %s24
    %s31 = sor.u32 %s29, %s30
    %p32 = scmp.eq.s32.totalorder %s31, 0
    %s34 = sadd.s32 %s33, 1
    %s35 = scalar_select %p32, %s33, %s34
    %p38 = pneg %p32
    %p39 = scmp.eq.s32.totalorder %s9, 1
    %p40 = por %p38, %p39
    %p41 = scmp.ne.s32.totalorder %s33, %s36
    %p42 = scmp.eq.s32.totalorder %s9, 0
    %p43 = por %p41, %p42
    %p44 = scmp.ne.s32.totalorder %s33, %s36
    %p45 = scmp.eq.s32.totalorder %s14, 1
    %p46 = por %p44, %p45
    %p47 = scmp.ne.s32.totalorder %s36, %s37
    %p48 = scmp.eq.s32.totalorder %s14, 0
    %p49 = por %p47, %p48
    %p50 = scmp.ne.s32.totalorder %s36, %s37
    %p51 = scmp.eq.s32.totalorder %s15, 1
    %p52 = por %p50, %p51
    %p54 = scmp.ne.s32.totalorder %s37, %s53
    %p55 = scmp.eq.s32.totalorder %s15, 0
    %p56 = por %p54, %p55
    %s58 = sadd.s32 %s57, 1
    %p61 = scmp.eq.s32.totalorder %s9, 1
    %p62 = scmp.ne.s32.totalorder %s57, %s59
    %p63 = scmp.eq.s32.totalorder %s9, 0
    %p64 = por %p62, %p63
    %p65 = scmp.ne.s32.totalorder %s57, %s59
    %p66 = scmp.eq.s32.totalorder %s14, 1
    %p67 = por %p65, %p66
    %p68 = scmp.ne.s32.totalorder %s59, %s60
    %p69 = scmp.eq.s32.totalorder %s14, 0
    %p70 = por %p68, %p69
    %p71 = scmp.ne.s32.totalorder %s59, %s60
    %p72 = scmp.eq.s32.totalorder %s15, 1
    %p73 = por %p71, %p72
    %p75 = scmp.ne.s32.totalorder %s60, %s74
    %p76 = scmp.eq.s32.totalorder %s15, 0
    %p77 = por %p75, %p76
    %s79 = sadd.s32 %s78, 1
    %p82 = scmp.eq.s32.totalorder %s9, 1
    %p83 = scmp.ne.s32.totalorder %s78, %s80
    %p84 = scmp.eq.s32.totalorder %s9, 0
    %p85 = por %p83, %p84
    %p86 = scmp.ne.s32.totalorder %s78, %s80
    %p87 = scmp.eq.s32.totalorder %s14, 1
    %p88 = por %p86, %p87
    %p89 = scmp.ne.s32.totalorder %s80, %s81
    %p90 = scmp.eq.s32.totalorder %s14, 0
    %p91 = por %p89, %p90
    %p92 = scmp.ne.s32.totalorder %s80, %s81
    %p93 = scmp.eq.s32.totalorder %s15, 1
    %p94 = por %p92, %p93
    %p96 = scmp.ne.s32.totalorder %s81, %s95
    %p97 = scmp.eq.s32.totalorder %s15, 0
    %p98 = por %p96, %p97
    %s99 = ssub.s32 %s16, %s28
    %s100 = ssub.s32 %s17, %s24
    %s101 = sor.u32 %s99, %s100
    %p102 = scmp.eq.s32.totalorder %s101, 0
    %s104 = sadd.s32 %s103, 1
    %s105 = scalar_select %p102, %s103, %s104
    %p108 = pneg %p102
    %p109 = scmp.eq.s32.totalorder %s9, 1
    %p110 = por %p108, %p109
    %p111 = scmp.ne.s32.totalorder %s103, %s106
    %p112 = scmp.eq.s32.totalorder %s9, 0
    %p113 = por %p111, %p112
    %p114 = scmp.ne.s32.totalorder %s103, %s106
    %p115 = scmp.eq.s32.totalorder %s14, 1
    %p116 = por %p114, %p115
    %p117 = scmp.ne.s32.totalorder %s106, %s107
    %p118 = scmp.eq.s32.totalorder %s14, 0
    %p119 = por %p117, %p118
    %p120 = scmp.ne.s32.totalorder %s106, %s107
    %p121 = scmp.eq.s32.totalorder %s15, 1
    %p122 = por %p120, %p121
    %p124 = scmp.ne.s32.totalorder %s107, %s123
    %p125 = scmp.eq.s32.totalorder %s15, 0
    %p126 = por %p124, %p125
    %p127 = scmp.le.s32.totalorder 1, %s9
    %p128 = scmp.lt.s32.totalorder %s9, 3
    %p129 = pnand %p127, %p128
    %p130 = pneg %p129
    // Predicated region
    $region9: #{lama_generator_forward.39} parent=5 // pred_check
      _
    $region10: #{lama_generator_forward.39} parent=5 // pred_check_branch
      %132 = sbr.rel (%p129) target = $region12
    $region11: #{lama_generator_forward.39} parent=5 // pred_region
      %s133 = ssub.s32 %s9, 1
      // Predicated region
      $region13: #{lama_generator_forward.39} parent=11 // pred_check
        %p134 = pneg %p70
      $region14: #{lama_generator_forward.39} parent=11 // pred_check_branch
        %136 = sbr.rel (%p134) target = $region16
      $region15: #{lama_generator_forward.39} parent=11 // pred_region
        _
      $region16: #{lama_generator_forward.39} parent=11 // pred_fallthru
        _
      // Predicated region
      $region17: #{lama_generator_forward.39} parent=11 // pred_check
        %p137 = pneg %p91
      $region18: #{lama_generator_forward.39} parent=11 // pred_check_branch
        %139 = sbr.rel (%p137) target = $region20
      $region19: #{lama_generator_forward.39} parent=11 // pred_region
        _
      $region20: #{lama_generator_forward.39} parent=11 // pred_fallthru
        _
    $region12: #{lama_generator_forward.39} parent=5 // pred_fallthru
      _
    %p140 = scmp.lt.s32.totalorder %s9, 2
    // Predicated region
    $region21: #{lama_generator_forward.39} parent=5 // pred_check
      %p141 = pneg %p140
    $region22: #{lama_generator_forward.39} parent=5 // pred_check_branch
      %143 = sbr.rel (%p141) target = $region24
    $region23: #{lama_generator_forward.39} parent=5 // pred_region
      // Predicated region
      $region25: #{lama_generator_forward.39} parent=23 // pred_check
        %p144 = pneg %p43
      $region26: #{lama_generator_forward.39} parent=23 // pred_check_branch
        %146 = sbr.rel (%p144) target = $region28
      $region27: #{lama_generator_forward.39} parent=23 // pred_region
        %s147 = smul.u32 32, %s17
        %p148 = scmp.lt.s32.totalorder %s16, 1
        %s149 = scalar_select %p148, %s16, 1
        %p150 = scmp.lt.s32.totalorder %s147, 31
        %s151 = scalar_select %p150, %s147, 31
        %s152 = smul.addr %s149, 32
        %s153 = sadd.s32 %s151, %s152
        %s154 = smul.addr %s153, 4
        %s155 = scalar_lea.vmem %s0, %s154
        %s156 = smul.u32 32, %s17
      $region28: #{lama_generator_forward.39} parent=23 // pred_fallthru
        _
    $region24: #{lama_generator_forward.39} parent=5 // pred_fallthru
      _
    %p157 = scmp.le.s32.totalorder 1, %s9
    %p158 = scmp.lt.s32.totalorder %s9, 3
    %p159 = pnand %p157, %p158
    %p160 = pneg %p159
    // Predicated region
    $region29: #{lama_generator_forward.39} parent=5 // pred_check
      _
    $region30: #{lama_generator_forward.39} parent=5 // pred_check_branch
      %162 = sbr.rel (%p159) target = $region32
    $region31: #{lama_generator_forward.39} parent=5 // pred_region
      %s163 = ssub.s32 %s9, 1
      %s164 = smul.u32 32, %s19
      %p165 = scmp.lt.s32.totalorder %s18, 1
      %s166 = scalar_select %p165, %s18, 1
      %p167 = scmp.lt.s32.totalorder %s164, 31
      %s168 = scalar_select %p167, %s164, 31
      %s169 = smul.addr %s166, 32
      %s170 = sadd.s32 %s168, %s169
      %s171 = smul.addr %s170, 4
      %s172 = scalar_lea.vmem %s0, %s171
      %p173 = pneg %p49
      %p174 = pneg %p46
      %p175 = pneg %p70
      %p176 = pneg %p67
      %p177 = pneg %p91
      %p178 = pneg %p88
      %p179 = pneg %p119
      %p180 = pneg %p116
      %s181 = smul.u32 32, %s19
      %p182 = scmp.lt.s32.totalorder %s18, 1
      %s183 = scalar_select %p182, %s18, 1
      %p184 = scmp.lt.s32.totalorder %s181, 31
      %s185 = scalar_select %p184, %s181, 31
      %s186 = smul.addr %s183, 32
      %s187 = sadd.s32 %s185, %s186
      %s188 = smul.addr %s187, 4
      %s189 = scalar_lea.vmem %s3, %s188
      %s190 = smul.u32 32, %s19
      %p191 = scmp.lt.s32.totalorder %s18, 1
      %s192 = scalar_select %p191, %s18, 1
      %p193 = scmp.lt.s32.totalorder %s190, 31
      %s194 = scalar_select %p193, %s190, 31
      %s195 = smul.addr %s192, 32
      %s196 = sadd.s32 %s194, %s195
      %s197 = smul.addr %s196, 4
      %s198 = scalar_lea.vmem %s0, %s197
      %s199 = smul.u32 32, %s19
      %s200 = smul.u32 32, %s19
      %p201 = scmp.lt.s32.totalorder %s18, 1
      %s202 = scalar_select %p201, %s18, 1
      %p203 = scmp.lt.s32.totalorder %s200, 31
      %s204 = scalar_select %p203, %s200, 31
      %s205 = smul.addr %s202, 32
      %s206 = sadd.s32 %s204, %s205
      %s207 = smul.addr %s206, 4
      %s208 = scalar_lea.vmem %s3, %s207
      %s209 = smul.u32 32, %s19
      %v211 = vld [vmem:[%s198] sm:$0xf]
      %v212 = vld [vmem:[%s198 + $0x4] sm:$0xf]
      %v213 = vld [vmem:[%s198 + $0x8] sm:$0xf]
      %v214 = vld [vmem:[%s198 + $0xc] sm:$0xf]
      %v215 = vld [vmem:[%s198 + $0x10] sm:$0xf]
      %v216 = vld [vmem:[%s198 + $0x14] sm:$0xf]
      %v217 = vld [vmem:[%s198 + $0x18] sm:$0xf]
      %v218 = vld [vmem:[%s198 + $0x1c] sm:$0xf]
      %v219 = vld [vmem:[%s198 + $0x20] sm:$0xf]
      %v220 = vld [vmem:[%s198 + $0x24] sm:$0xf]
      %v221 = vld [vmem:[%s198 + $0x28] sm:$0xf]
      %v222 = vld [vmem:[%s198 + $0x2c] sm:$0xf]
      %v223 = vld [vmem:[%s198 + $0x30] sm:$0xf]
      %v224 = vld [vmem:[%s198 + $0x34] sm:$0xf]
      %v225 = vld [vmem:[%s198 + $0x38] sm:$0xf]
      %v226 = vld [vmem:[%s198 + $0x3c] sm:$0xf]
      %v227 = vld [vmem:[%s198 + $0x40] sm:$0xf]
      %v228 = vld [vmem:[%s198 + $0x44] sm:$0xf]
      %v229 = vld [vmem:[%s198 + $0x48] sm:$0xf]
      %v230 = vld [vmem:[%s198 + $0x4c] sm:$0xf]
      %v231 = vld [vmem:[%s198 + $0x50] sm:$0xf]
      %v232 = vld [vmem:[%s198 + $0x54] sm:$0xf]
      %v233 = vld [vmem:[%s198 + $0x58] sm:$0xf]
      %v234 = vld [vmem:[%s198 + $0x5c] sm:$0xf]
      %v235 = vld [vmem:[%s198 + $0x60] sm:$0xf]
      %v236 = vld [vmem:[%s198 + $0x64] sm:$0xf]
      %v237 = vld [vmem:[%s198 + $0x68] sm:$0xf]
      %v238 = vld [vmem:[%s198 + $0x6c] sm:$0xf]
      %v239 = vld [vmem:[%s198 + $0x70] sm:$0xf]
      %v240 = vld [vmem:[%s198 + $0x74] sm:$0xf]
      %v241 = vld [vmem:[%s198 + $0x78] sm:$0xf]
      %v242 = vld [vmem:[%s198 + $0x7c] sm:$0xf]
      %v243 = vld [vmem:[%s1] sm:$0xf]
      %v244 = vld [vmem:[%s1 + $0x4] sm:$0xf]
      %v245 = vld [vmem:[%s1 + $0x8] sm:$0xf]
      %v246 = vld [vmem:[%s1 + $0xc] sm:$0xf]
      %v247 = vld [vmem:[%s1 + $0x10] sm:$0xf]
      %v248 = vld [vmem:[%s1 + $0x14] sm:$0xf]
      %v249 = vld [vmem:[%s1 + $0x18] sm:$0xf]
      %v250 = vld [vmem:[%s1 + $0x1c] sm:$0xf]
      %v251 = vld [vmem:[%s1 + $0x20] sm:$0xf]
      %v252 = vld [vmem:[%s1 + $0x24] sm:$0xf]
      %v253 = vld [vmem:[%s1 + $0x28] sm:$0xf]
      %v254 = vld [vmem:[%s1 + $0x2c] sm:$0xf]
      %v255 = vld [vmem:[%s1 + $0x30] sm:$0xf]
      %v256 = vld [vmem:[%s1 + $0x34] sm:$0xf]
      %v257 = vld [vmem:[%s1 + $0x38] sm:$0xf]
      %v258 = vld [vmem:[%s1 + $0x3c] sm:$0xf]
      %v259 = vld [vmem:[%s2] sm:$0x1]
      %v261 = vlaneseq
      %v262 = vshrl.u32 %v261, 7
      %v263 = vsub.s32 0, %v262
      %v264 = vrot.slane %v259, %v263
      %v298 = vunpack.c.l.b16 %v211
      %v299 = vunpack.c.l.b16 %v212
      %v300 = vunpack.c.l.b16 %v213
      %v301 = vunpack.c.l.b16 %v214
      %v302 = vunpack.c.l.b16 %v215
      %v303 = vunpack.c.l.b16 %v216
      %v304 = vunpack.c.l.b16 %v217
      %v305 = vunpack.c.l.b16 %v218
      %v306 = vunpack.c.l.b16 %v219
      %v307 = vunpack.c.l.b16 %v220
      %v308 = vunpack.c.l.b16 %v221
      %v309 = vunpack.c.l.b16 %v222
      %v310 = vunpack.c.l.b16 %v223
      %v311 = vunpack.c.l.b16 %v224
      %v312 = vunpack.c.l.b16 %v225
      %v313 = vunpack.c.l.b16 %v226
      %v314 = vunpack.c.l.b16 %v227
      %v315 = vunpack.c.l.b16 %v228
      %v316 = vunpack.c.l.b16 %v229
      %v317 = vunpack.c.l.b16 %v230
      %v318 = vunpack.c.l.b16 %v231
      %v319 = vunpack.c.l.b16 %v232
      %v320 = vunpack.c.l.b16 %v233
      %v321 = vunpack.c.l.b16 %v234
      %v322 = vunpack.c.l.b16 %v235
      %v323 = vunpack.c.l.b16 %v236
      %v324 = vunpack.c.l.b16 %v237
      %v325 = vunpack.c.l.b16 %v238
      %v326 = vunpack.c.l.b16 %v239
      %v327 = vunpack.c.l.b16 %v240
      %v328 = vunpack.c.l.b16 %v241
      %v329 = vunpack.c.l.b16 %v242
      %v330 = vpack.c.b16 %v299, %v298
      %v331 = vpack.c.b16 %v301, %v300
      %v332 = vpack.c.b16 %v303, %v302
      %v333 = vpack.c.b16 %v305, %v304
      %v334 = vpack.c.b16 %v307, %v306
      %v335 = vpack.c.b16 %v309, %v308
      %v336 = vpack.c.b16 %v311, %v310
      %v337 = vpack.c.b16 %v313, %v312
      %v338 = vpack.c.b16 %v315, %v314
      %v339 = vpack.c.b16 %v317, %v316
      %v340 = vpack.c.b16 %v319, %v318
      %v341 = vpack.c.b16 %v321, %v320
      %v342 = vpack.c.b16 %v323, %v322
      %v343 = vpack.c.b16 %v325, %v324
      %v344 = vpack.c.b16 %v327, %v326
      %v345 = vpack.c.b16 %v329, %v328
      %v378 = vunpack.c.l.b16 %v243
      %v379 = vunpack.c.l.b16 %v244
      %v380 = vunpack.c.l.b16 %v245
      %v381 = vunpack.c.l.b16 %v246
      %v382 = vunpack.c.l.b16 %v247
      %v383 = vunpack.c.l.b16 %v248
      %v384 = vunpack.c.l.b16 %v249
      %v385 = vunpack.c.l.b16 %v250
      %v386 = vunpack.c.l.b16 %v251
      %v387 = vunpack.c.l.b16 %v252
      %v388 = vunpack.c.l.b16 %v253
      %v389 = vunpack.c.l.b16 %v254
      %v390 = vunpack.c.l.b16 %v255
      %v391 = vunpack.c.l.b16 %v256
      %v392 = vunpack.c.l.b16 %v257
      %v393 = vunpack.c.l.b16 %v258
      %v394 = vpack.c.b16 %v379, %v378
      %v395 = vpack.c.b16 %v381, %v380
      %v396 = vpack.c.b16 %v383, %v382
      %v397 = vpack.c.b16 %v385, %v384
      %v398 = vpack.c.b16 %v387, %v386
      %v399 = vpack.c.b16 %v389, %v388
      %v400 = vpack.c.b16 %v391, %v390
      %v401 = vpack.c.b16 %v393, %v392
      %410 = vmatprep.subr.bf16.mxu0 0
      %411 = vmatpush1.bf16.msra.mxu0 %v401
      %412 = vmatprep.subr.bf16.mxu0 0
      %413 = vmatpush1.bf16.msra.mxu0 %v400
      %414 = vmatprep.subr.bf16.mxu0 0
      %415 = vmatpush1.bf16.msra.mxu0 %v399
      %416 = vmatprep.subr.bf16.mxu0 0
      %417 = vmatpush1.bf16.msra.mxu0 %v398
      %418 = vmatprep.subr.bf16.mxu0 0
      %419 = vmatpush1.bf16.msra.mxu0 %v397
      %420 = vmatprep.subr.bf16.mxu0 0
      %421 = vmatpush1.bf16.msra.mxu0 %v396
      %422 = vmatprep.subr.bf16.mxu0 0
      %423 = vmatpush1.bf16.msra.mxu0 %v395
      %424 = vmatprep.subr.bf16.mxu0 0
      %425 = vmatpush1.bf16.msra.mxu0 %v394
      %426 = vmatprep.subr.bf16.mxu0 0
      %427 = vmatpush2.bf16.msra.mxu0 0
      %428 = vmatprep.subr.bf16.mxu0 0
      %429 = vmatpush2.bf16.msra.mxu0 0
      %430 = vmatprep.subr.bf16.mxu0 0
      %431 = vmatpush2.bf16.msra.mxu0 0
      %432 = vmatprep.subr.bf16.mxu0 0
      %433 = vmatpush2.bf16.msra.mxu0 0
      %434 = vmatprep.subr.bf16.mxu0 0
      %435 = vmatpush2.bf16.msra.mxu0 0
      %436 = vmatprep.subr.bf16.mxu0 0
      %437 = vmatpush2.bf16.msra.mxu0 0
      %438 = vmatprep.subr.bf16.mxu0 0
      %439 = vmatpush2.bf16.msra.mxu0 0
      %440 = vmatprep.subr.bf16.mxu0 0
      %441 = vmatpush2.bf16.msra.mxu0 0
      %442 = vmatprep.mubr.bf16.mxu0 0
      %443 = vmatmul.mubr.bf16.gmra.mxu0 %v330
      %v444 = vpop.f32.mrf.mxu0
      %v445 = vadd.f32 %v264, %v444
      %v446 = vpop.f32.mrf.mxu0
      %v447 = vpop.f32.mrf.mxu0
      %v448 = vadd.f32 %v264, %v447
      %v449 = vpop.f32.mrf.mxu0
      %450 = vmatprep.mubr.bf16.mxu0 0
      %451 = vmatmul.mubr.bf16.gmra.mxu0 %v331
      %v452 = vpop.f32.mrf.mxu0
      %v453 = vadd.f32 %v264, %v452
      %v454 = vpop.f32.mrf.mxu0
      %v455 = vpop.f32.mrf.mxu0
      %v456 = vadd.f32 %v264, %v455
      %v457 = vpop.f32.mrf.mxu0
      %458 = vmatprep.mubr.bf16.mxu0 0
      %459 = vmatmul.mubr.bf16.gmra.mxu0 %v332
      %v460 = vpop.f32.mrf.mxu0
      %v461 = vadd.f32 %v264, %v460
      %v462 = vpop.f32.mrf.mxu0
      %v463 = vpop.f32.mrf.mxu0
      %v464 = vadd.f32 %v264, %v463
      %v465 = vpop.f32.mrf.mxu0
      %466 = vmatprep.mubr.bf16.mxu0 0
      %467 = vmatmul.mubr.bf16.gmra.mxu0 %v333
      %v468 = vpop.f32.mrf.mxu0
      %v469 = vadd.f32 %v264, %v468
      %v470 = vpop.f32.mrf.mxu0
      %v471 = vpop.f32.mrf.mxu0
      %v472 = vadd.f32 %v264, %v471
      %v473 = vpop.f32.mrf.mxu0
      %474 = vmatprep.mubr.bf16.mxu0 0
      %475 = vmatmul.mubr.bf16.gmra.mxu0 %v334
      %v476 = vpop.f32.mrf.mxu0
      %v477 = vadd.f32 %v264, %v476
      %v478 = vpop.f32.mrf.mxu0
      %v479 = vpop.f32.mrf.mxu0
      %v480 = vadd.f32 %v264, %v479
      %v481 = vpop.f32.mrf.mxu0
      %482 = vmatprep.mubr.bf16.mxu0 0
      %483 = vmatmul.mubr.bf16.gmra.mxu0 %v335
      %v484 = vpop.f32.mrf.mxu0
      %v485 = vadd.f32 %v264, %v484
      %v486 = vpop.f32.mrf.mxu0
      %v487 = vpop.f32.mrf.mxu0
      %v488 = vadd.f32 %v264, %v487
      %v489 = vpop.f32.mrf.mxu0
      %490 = vmatprep.mubr.bf16.mxu0 0
      %491 = vmatmul.mubr.bf16.gmra.mxu0 %v336
      %v492 = vpop.f32.mrf.mxu0
      %v493 = vadd.f32 %v264, %v492
      %v494 = vpop.f32.mrf.mxu0
      %v495 = vpop.f32.mrf.mxu0
      %v496 = vadd.f32 %v264, %v495
      %v497 = vpop.f32.mrf.mxu0
      %498 = vmatprep.mubr.bf16.mxu0 0
      %499 = vmatmul.mubr.bf16.gmra.mxu0 %v337
      %v500 = vpop.f32.mrf.mxu0
      %v501 = vadd.f32 %v264, %v500
      %v502 = vpop.f32.mrf.mxu0
      %v503 = vpop.f32.mrf.mxu0
      %v504 = vadd.f32 %v264, %v503
      %v505 = vpop.f32.mrf.mxu0
      %506 = vmatprep.mubr.bf16.mxu0 0
      %507 = vmatmul.mubr.bf16.gmra.mxu0 %v338
      %v508 = vpop.f32.mrf.mxu0
      %v509 = vadd.f32 %v264, %v508
      %v510 = vpop.f32.mrf.mxu0
      %v511 = vpop.f32.mrf.mxu0
      %v512 = vadd.f32 %v264, %v511
      %v513 = vpop.f32.mrf.mxu0
      %514 = vmatprep.mubr.bf16.mxu0 0
      %515 = vmatmul.mubr.bf16.gmra.mxu0 %v339
      %v516 = vpop.f32.mrf.mxu0
      %v517 = vadd.f32 %v264, %v516
      %v518 = vpop.f32.mrf.mxu0
      %v519 = vpop.f32.mrf.mxu0
      %v520 = vadd.f32 %v264, %v519
      %v521 = vpop.f32.mrf.mxu0
      %522 = vmatprep.mubr.bf16.mxu0 0
      %523 = vmatmul.mubr.bf16.gmra.mxu0 %v340
      %v524 = vpop.f32.mrf.mxu0
      %v525 = vadd.f32 %v264, %v524
      %v526 = vpop.f32.mrf.mxu0
      %v527 = vpop.f32.mrf.mxu0
      %v528 = vadd.f32 %v264, %v527
      %v529 = vpop.f32.mrf.mxu0
      %530 = vmatprep.mubr.bf16.mxu0 0
      %531 = vmatmul.mubr.bf16.gmra.mxu0 %v341
      %v532 = vpop.f32.mrf.mxu0
      %v533 = vadd.f32 %v264, %v532
      %v534 = vpop.f32.mrf.mxu0
      %v535 = vpop.f32.mrf.mxu0
      %v536 = vadd.f32 %v264, %v535
      %v537 = vpop.f32.mrf.mxu0
      %538 = vmatprep.mubr.bf16.mxu0 0
      %539 = vmatmul.mubr.bf16.gmra.mxu0 %v342
      %v540 = vpop.f32.mrf.mxu0
      %v541 = vadd.f32 %v264, %v540
      %v542 = vpop.f32.mrf.mxu0
      %v543 = vpop.f32.mrf.mxu0
      %v544 = vadd.f32 %v264, %v543
      %v545 = vpop.f32.mrf.mxu0
      %546 = vmatprep.mubr.bf16.mxu0 0
      %547 = vmatmul.mubr.bf16.gmra.mxu0 %v343
      %v548 = vpop.f32.mrf.mxu0
      %v549 = vadd.f32 %v264, %v548
      %v550 = vpop.f32.mrf.mxu0
      %v551 = vpop.f32.mrf.mxu0
      %v552 = vadd.f32 %v264, %v551
      %v553 = vpop.f32.mrf.mxu0
      %554 = vmatprep.mubr.bf16.mxu0 0
      %555 = vmatmul.mubr.bf16.gmra.mxu0 %v344
      %v556 = vpop.f32.mrf.mxu0
      %v557 = vadd.f32 %v264, %v556
      %v558 = vpop.f32.mrf.mxu0
      %v559 = vpop.f32.mrf.mxu0
      %v560 = vadd.f32 %v264, %v559
      %v561 = vpop.f32.mrf.mxu0
      %562 = vmatprep.mubr.bf16.mxu0 0
      %563 = vmatmul.mubr.bf16.gmra.mxu0 %v345
      %v564 = vpop.f32.mrf.mxu0
      %v565 = vadd.f32 %v264, %v564
      %v566 = vpop.f32.mrf.mxu0
      %v567 = vpop.f32.mrf.mxu0
      %v568 = vadd.f32 %v264, %v567
      %v569 = vpop.f32.mrf.mxu0
      %570 = vdwg.mxu0
      %v571 = vmax.f32 %v445, 0.0
      %v572 = vmax.f32 %v448, 0.0
      %v573 = vmax.f32 %v453, 0.0
      %v574 = vmax.f32 %v456, 0.0
      %v575 = vmax.f32 %v461, 0.0
      %v576 = vmax.f32 %v464, 0.0
      %v577 = vmax.f32 %v469, 0.0
      %v578 = vmax.f32 %v472, 0.0
      %v579 = vmax.f32 %v477, 0.0
      %v580 = vmax.f32 %v480, 0.0
      %v581 = vmax.f32 %v485, 0.0
      %v582 = vmax.f32 %v488, 0.0
      %v583 = vmax.f32 %v493, 0.0
      %v584 = vmax.f32 %v496, 0.0
      %v585 = vmax.f32 %v501, 0.0
      %v586 = vmax.f32 %v504, 0.0
      %v587 = vmax.f32 %v509, 0.0
      %v588 = vmax.f32 %v512, 0.0
      %v589 = vmax.f32 %v517, 0.0
      %v590 = vmax.f32 %v520, 0.0
      %v591 = vmax.f32 %v525, 0.0
      %v592 = vmax.f32 %v528, 0.0
      %v593 = vmax.f32 %v533, 0.0
      %v594 = vmax.f32 %v536, 0.0
      %v595 = vmax.f32 %v541, 0.0
      %v596 = vmax.f32 %v544, 0.0
      %v597 = vmax.f32 %v549, 0.0
      %v598 = vmax.f32 %v552, 0.0
      %v599 = vmax.f32 %v557, 0.0
      %v600 = vmax.f32 %v560, 0.0
      %v601 = vmax.f32 %v565, 0.0
      %v602 = vmax.f32 %v568, 0.0
      %v603 = vpack.c.bf16 %v572, %v571
      %v604 = vpack.c.bf16 %v574, %v573
      %v605 = vpack.c.bf16 %v576, %v575
      %v606 = vpack.c.bf16 %v578, %v577
      %v607 = vpack.c.bf16 %v580, %v579
      %v608 = vpack.c.bf16 %v582, %v581
      %v609 = vpack.c.bf16 %v584, %v583
      %v610 = vpack.c.bf16 %v586, %v585
      %v611 = vpack.c.bf16 %v588, %v587
      %v612 = vpack.c.bf16 %v590, %v589
      %v613 = vpack.c.bf16 %v592, %v591
      %v614 = vpack.c.bf16 %v594, %v593
      %v615 = vpack.c.bf16 %v596, %v595
      %v616 = vpack.c.bf16 %v598, %v597
      %v617 = vpack.c.bf16 %v600, %v599
      %v618 = vpack.c.bf16 %v602, %v601
      %v635 = vunpack.c.l.b16 %v603
      %v636 = vunpack.c.h.b16 %v603
      %v637 = vunpack.c.l.b16 %v604
      %v638 = vunpack.c.h.b16 %v604
      %v639 = vunpack.c.l.b16 %v605
      %v640 = vunpack.c.h.b16 %v605
      %v641 = vunpack.c.l.b16 %v606
      %v642 = vunpack.c.h.b16 %v606
      %v643 = vunpack.c.l.b16 %v607
      %v644 = vunpack.c.h.b16 %v607
      %v645 = vunpack.c.l.b16 %v608
      %v646 = vunpack.c.h.b16 %v608
      %v647 = vunpack.c.l.b16 %v609
      %v648 = vunpack.c.h.b16 %v609
      %v649 = vunpack.c.l.b16 %v610
      %v650 = vunpack.c.h.b16 %v610
      %v651 = vunpack.c.l.b16 %v611
      %v652 = vunpack.c.h.b16 %v611
      %v653 = vunpack.c.l.b16 %v612
      %v654 = vunpack.c.h.b16 %v612
      %v655 = vunpack.c.l.b16 %v613
      %v656 = vunpack.c.h.b16 %v613
      %v657 = vunpack.c.l.b16 %v614
      %v658 = vunpack.c.h.b16 %v614
      %v659 = vunpack.c.l.b16 %v615
      %v660 = vunpack.c.h.b16 %v615
      %v661 = vunpack.c.l.b16 %v616
      %v662 = vunpack.c.h.b16 %v616
      %v663 = vunpack.c.l.b16 %v617
      %v664 = vunpack.c.h.b16 %v617
      %v665 = vunpack.c.l.b16 %v618
      %v666 = vunpack.c.h.b16 %v618
      %v667 = vpack.c.b16 %v635, %v635
      %v668 = vpack.c.b16 %v636, %v636
      %v669 = vpack.c.b16 %v637, %v637
      %v670 = vpack.c.b16 %v638, %v638
      %v671 = vpack.c.b16 %v639, %v639
      %v672 = vpack.c.b16 %v640, %v640
      %v673 = vpack.c.b16 %v641, %v641
      %v674 = vpack.c.b16 %v642, %v642
      %v675 = vpack.c.b16 %v643, %v643
      %v676 = vpack.c.b16 %v644, %v644
      %v677 = vpack.c.b16 %v645, %v645
      %v678 = vpack.c.b16 %v646, %v646
      %v679 = vpack.c.b16 %v647, %v647
      %v680 = vpack.c.b16 %v648, %v648
      %v681 = vpack.c.b16 %v649, %v649
      %v682 = vpack.c.b16 %v650, %v650
      %v683 = vpack.c.b16 %v651, %v651
      %v684 = vpack.c.b16 %v652, %v652
      %v685 = vpack.c.b16 %v653, %v653
      %v686 = vpack.c.b16 %v654, %v654
      %v687 = vpack.c.b16 %v655, %v655
      %v688 = vpack.c.b16 %v656, %v656
      %v689 = vpack.c.b16 %v657, %v657
      %v690 = vpack.c.b16 %v658, %v658
      %v691 = vpack.c.b16 %v659, %v659
      %v692 = vpack.c.b16 %v660, %v660
      %v693 = vpack.c.b16 %v661, %v661
      %v694 = vpack.c.b16 %v662, %v662
      %v695 = vpack.c.b16 %v663, %v663
      %v696 = vpack.c.b16 %v664, %v664
      %v697 = vpack.c.b16 %v665, %v665
      %v698 = vpack.c.b16 %v666, %v666
      %731 = vst [vmem:[%s208] sm:$0xf] %v667
      %732 = vst [vmem:[%s208 + $0x4] sm:$0xf] %v668
      %733 = vst [vmem:[%s208 + $0x8] sm:$0xf] %v669
      %734 = vst [vmem:[%s208 + $0xc] sm:$0xf] %v670
      %735 = vst [vmem:[%s208 + $0x10] sm:$0xf] %v671
      %736 = vst [vmem:[%s208 + $0x14] sm:$0xf] %v672
      %737 = vst [vmem:[%s208 + $0x18] sm:$0xf] %v673
      %738 = vst [vmem:[%s208 + $0x1c] sm:$0xf] %v674
      %739 = vst [vmem:[%s208 + $0x20] sm:$0xf] %v675
      %740 = vst [vmem:[%s208 + $0x24] sm:$0xf] %v676
      %741 = vst [vmem:[%s208 + $0x28] sm:$0xf] %v677
      %742 = vst [vmem:[%s208 + $0x2c] sm:$0xf] %v678
      %743 = vst [vmem:[%s208 + $0x30] sm:$0xf] %v679
      %744 = vst [vmem:[%s208 + $0x34] sm:$0xf] %v680
      %745 = vst [vmem:[%s208 + $0x38] sm:$0xf] %v681
      %746 = vst [vmem:[%s208 + $0x3c] sm:$0xf] %v682
      %747 = vst [vmem:[%s208 + $0x40] sm:$0xf] %v683
      %748 = vst [vmem:[%s208 + $0x44] sm:$0xf] %v684
      %749 = vst [vmem:[%s208 + $0x48] sm:$0xf] %v685
      %750 = vst [vmem:[%s208 + $0x4c] sm:$0xf] %v686
      %751 = vst [vmem:[%s208 + $0x50] sm:$0xf] %v687
      %752 = vst [vmem:[%s208 + $0x54] sm:$0xf] %v688
      %753 = vst [vmem:[%s208 + $0x58] sm:$0xf] %v689
      %754 = vst [vmem:[%s208 + $0x5c] sm:$0xf] %v690
      %755 = vst [vmem:[%s208 + $0x60] sm:$0xf] %v691
      %756 = vst [vmem:[%s208 + $0x64] sm:$0xf] %v692
      %757 = vst [vmem:[%s208 + $0x68] sm:$0xf] %v693
      %758 = vst [vmem:[%s208 + $0x6c] sm:$0xf] %v694
      %759 = vst [vmem:[%s208 + $0x70] sm:$0xf] %v695
      %760 = vst [vmem:[%s208 + $0x74] sm:$0xf] %v696
      %761 = vst [vmem:[%s208 + $0x78] sm:$0xf] %v697
      %762 = vst [vmem:[%s208 + $0x7c] sm:$0xf] %v698
      %s763 = smul.u32 32, %s19
      %p764 = scmp.lt.s32.totalorder %s18, 1
      %s765 = scalar_select %p764, %s18, 1
      %p766 = scmp.lt.s32.totalorder %s763, 31
      %s767 = scalar_select %p766, %s763, 31
      %s768 = smul.addr %s765, 32
      %s769 = sadd.s32 %s767, %s768
      %s770 = smul.addr %s769, 4
      %s771 = scalar_lea.vmem %s3, %s770
      // Predicated region
      $region33: #{lama_generator_forward.39} parent=31 // pred_check
        %p772 = pneg %p116
      $region34: #{lama_generator_forward.39} parent=31 // pred_check_branch
        %774 = sbr.rel (%p772) target = $region36
      $region35: #{lama_generator_forward.39} parent=31 // pred_region
        %s775 = smul.u32 32, %s19
      $region36: #{lama_generator_forward.39} parent=31 // pred_fallthru
        _
    $region32: #{lama_generator_forward.39} parent=5 // pred_fallthru
      _
    %p776 = scmp.le.s32.totalorder 2, %s9
    // Predicated region
    $region37: #{lama_generator_forward.39} parent=5 // pred_check
      %p777 = pneg %p776
    $region38: #{lama_generator_forward.39} parent=5 // pred_check_branch
      %779 = sbr.rel (%p777) target = $region40
    $region39: #{lama_generator_forward.39} parent=5 // pred_region
      %s780 = ssub.s32 %s9, 2
      // Predicated region
      $region41: #{lama_generator_forward.39} parent=39 // pred_check
        %p781 = pneg %p122
      $region42: #{lama_generator_forward.39} parent=39 // pred_check_branch
        %783 = sbr.rel (%p781) target = $region44
      $region43: #{lama_generator_forward.39} parent=39 // pred_region
        %s784 = smul.u32 32, %s21
        %p785 = scmp.lt.s32.totalorder %s20, 1
        %s786 = scalar_select %p785, %s20, 1
        %p787 = scmp.lt.s32.totalorder %s784, 31
        %s788 = scalar_select %p787, %s784, 31
        %s789 = smul.addr %s786, 32
        %s790 = sadd.s32 %s788, %s789
        %s791 = smul.addr %s790, 4
        %s792 = scalar_lea.vmem %s3, %s791
      $region44: #{lama_generator_forward.39} parent=39 // pred_fallthru
        _
    $region40: #{lama_generator_forward.39} parent=5 // pred_fallthru
      _
  $region6: #{lama_generator_forward.39} parent=0 // loop_footer
    %s13 = sadd.s32 1, %s9
  $region7: #{lama_generator_forward.39} parent=0 // loop_footer_branch
    %8 = sbr.rel target = $region3
  $region8: #{lama_generator_forward.39} parent=0 // loop_exit
    _

// kernel: lama_generator_forward.40
$region0: #{lama_generator_forward.40}
  #allocation0 [shape = 'u32[]', space=smem, size = 0x4, offset = 0x4, fixed_abs, tag = 'smem constant byte address 0x4 - core index']
  #allocation1 [shape = 'u32[144,128]{1,0:T(1,128)}', space=vmem, size = 0x12000, scoped, tag = 'internal scratch']
  %s0 = inlined_call_operand.vmem [shape: bf16[2,64,640], index: 0, kind: input, shape index: {}]
  %s1 = inlined_call_operand.vmem [shape: bf16[640,128], index: 1, kind: input, shape index: {}]
  %s2 = inlined_call_operand.vmem [shape: f32[1,128], index: 2, kind: input, shape index: {}]
  %s3 = inlined_call_operand.vmem [shape: bf16[2,64,128], index: 3, kind: output, shape index: {}]
  %s4 = sld [smem:[#allocation0]]
  $region45: #{lama_generator_forward.40} parent=0
    _
  %s6 = ssub.s32 1, %s4
  %s7 = scalar_select 0, %s6, %s4
  loop: start=0, step=1, limit=4
  $region2: #{lama_generator_forward.40} parent=0 // loop_pre_header
    _
  $region3: #{lama_generator_forward.40} parent=0 // loop_header
    %s9 = sphi 0, %s13
    %p10 = scmp.ge.s32.totalorder %s9, 4
    %s16 = sphi 0, %s28
    %s17 = sphi 0, %s24
    %s18 = sphi 0, %s16
    %s19 = sphi 0, %s17
    %s20 = sphi 0, %s18
    %s21 = sphi 0, %s19
    %s33 = sphi 0, %s35
    %s36 = sphi 0, %s33
    %s37 = sphi 0, %s36
    %s53 = sphi 0, %s37
    %s57 = sphi 0, %s57
    %s59 = sphi 0, %s57
    %s60 = sphi 0, %s59
    %s74 = sphi 0, %s60
    %s78 = sphi 0, %s78
    %s80 = sphi 0, %s78
    %s81 = sphi 0, %s80
    %s95 = sphi 0, %s81
    %s103 = sphi 0, %s105
    %s106 = sphi 0, %s103
    %s107 = sphi 0, %s106
    %s123 = sphi 0, %s107
  $region4: #{lama_generator_forward.40} parent=0 // loop_header_branch
    %12 = sbr.rel (%p10) target = $region8
  $region5: #{lama_generator_forward.40} parent=0 // loop_body
    %s14 = ssub.s32 %s9, 1
    %s15 = ssub.s32 %s9, 2
    %s22 = sadd.s32 1, %s17
    %p23 = scmp.ge.s32.totalorder %s22, 1
    %s24 = scalar_select %p23, 0, %s22
    %s25 = sadd.s32 1, %s16
    %s26 = scalar_select %p23, %s25, %s16
    %p27 = scmp.ge.s32.totalorder %s26, 2
    %s28 = scalar_select %p27, 0, %s26
    %s29 = ssub.s32 %s16, %s28
    %s30 = ssub.s32 %s17, %s24
    %s31 = sor.u32 %s29, %s30
    %p32 = scmp.eq.s32.totalorder %s31, 0
    %s34 = sadd.s32 %s33, 1
    %s35 = scalar_select %p32, %s33, %s34
    %p38 = pneg %p32
    %p39 = scmp.eq.s32.totalorder %s9, 1
    %p40 = por %p38, %p39
    %p41 = scmp.ne.s32.totalorder %s33, %s36
    %p42 = scmp.eq.s32.totalorder %s9, 0
    %p43 = por %p41, %p42
    %p44 = scmp.ne.s32.totalorder %s33, %s36
    %p45 = scmp.eq.s32.totalorder %s14, 1
    %p46 = por %p44, %p45
    %p47 = scmp.ne.s32.totalorder %s36, %s37
    %p48 = scmp.eq.s32.totalorder %s14, 0
    %p49 = por %p47, %p48
    %p50 = scmp.ne.s32.totalorder %s36, %s37
    %p51 = scmp.eq.s32.totalorder %s15, 1
    %p52 = por %p50, %p51
    %p54 = scmp.ne.s32.totalorder %s37, %s53
    %p55 = scmp.eq.s32.totalorder %s15, 0
    %p56 = por %p54, %p55
    %s58 = sadd.s32 %s57, 1
    %p61 = scmp.eq.s32.totalorder %s9, 1
    %p62 = scmp.ne.s32.totalorder %s57, %s59
    %p63 = scmp.eq.s32.totalorder %s9, 0
    %p64 = por %p62, %p63
    %p65 = scmp.ne.s32.totalorder %s57, %s59
    %p66 = scmp.eq.s32.totalorder %s14, 1
    %p67 = por %p65, %p66
    %p68 = scmp.ne.s32.totalorder %s59, %s60
    %p69 = scmp.eq.s32.totalorder %s14, 0
    %p70 = por %p68, %p69
    %p71 = scmp.ne.s32.totalorder %s59, %s60
    %p72 = scmp.eq.s32.totalorder %s15, 1
    %p73 = por %p71, %p72
    %p75 = scmp.ne.s32.totalorder %s60, %s74
    %p76 = scmp.eq.s32.totalorder %s15, 0
    %p77 = por %p75, %p76
    %s79 = sadd.s32 %s78, 1
    %p82 = scmp.eq.s32.totalorder %s9, 1
    %p83 = scmp.ne.s32.totalorder %s78, %s80
    %p84 = scmp.eq.s32.totalorder %s9, 0
    %p85 = por %p83, %p84
    %p86 = scmp.ne.s32.totalorder %s78, %s80
    %p87 = scmp.eq.s32.totalorder %s14, 1
    %p88 = por %p86, %p87
    %p89 = scmp.ne.s32.totalorder %s80, %s81
    %p90 = scmp.eq.s32.totalorder %s14, 0
    %p91 = por %p89, %p90
    %p92 = scmp.ne.s32.totalorder %s80, %s81
    %p93 = scmp.eq.s32.totalorder %s15, 1
    %p94 = por %p92, %p93
    %p96 = scmp.ne.s32.totalorder %s81, %s95
    %p97 = scmp.eq.s32.totalorder %s15, 0
    %p98 = por %p96, %p97
    %s99 = ssub.s32 %s16, %s28
    %s100 = ssub.s32 %s17, %s24
    %s101 = sor.u32 %s99, %s100
    %p102 = scmp.eq.s32.totalorder %s101, 0
    %s104 = sadd.s32 %s103, 1
    %s105 = scalar_select %p102, %s103, %s104
    %p108 = pneg %p102
    %p109 = scmp.eq.s32.totalorder %s9, 1
    %p110 = por %p108, %p109
    %p111 = scmp.ne.s32.totalorder %s103, %s106
    %p112 = scmp.eq.s32.totalorder %s9, 0
    %p113 = por %p111, %p112
    %p114 = scmp.ne.s32.totalorder %s103, %s106
    %p115 = scmp.eq.s32.totalorder %s14, 1
    %p116 = por %p114, %p115
    %p117 = scmp.ne.s32.totalorder %s106, %s107
    %p118 = scmp.eq.s32.totalorder %s14, 0
    %p119 = por %p117, %p118
    %p120 = scmp.ne.s32.totalorder %s106, %s107
    %p121 = scmp.eq.s32.totalorder %s15, 1
    %p122 = por %p120, %p121
    %p124 = scmp.ne.s32.totalorder %s107, %s123
    %p125 = scmp.eq.s32.totalorder %s15, 0
    %p126 = por %p124, %p125
    %p127 = scmp.le.s32.totalorder 1, %s9
    %p128 = scmp.lt.s32.totalorder %s9, 3
    %p129 = pnand %p127, %p128
    %p130 = pneg %p129
    // Predicated region
    $region9: #{lama_generator_forward.40} parent=5 // pred_check
      _
    $region10: #{lama_generator_forward.40} parent=5 // pred_check_branch
      %132 = sbr.rel (%p129) target = $region12
    $region11: #{lama_generator_forward.40} parent=5 // pred_region
      %s133 = ssub.s32 %s9, 1
      // Predicated region
      $region13: #{lama_generator_forward.40} parent=11 // pred_check
        %p134 = pneg %p70
      $region14: #{lama_generator_forward.40} parent=11 // pred_check_branch
        %136 = sbr.rel (%p134) target = $region16
      $region15: #{lama_generator_forward.40} parent=11 // pred_region
        _
      $region16: #{lama_generator_forward.40} parent=11 // pred_fallthru
        _
      // Predicated region
      $region17: #{lama_generator_forward.40} parent=11 // pred_check
        %p137 = pneg %p91
      $region18: #{lama_generator_forward.40} parent=11 // pred_check_branch
        %139 = sbr.rel (%p137) target = $region20
      $region19: #{lama_generator_forward.40} parent=11 // pred_region
        _
      $region20: #{lama_generator_forward.40} parent=11 // pred_fallthru
        _
    $region12: #{lama_generator_forward.40} parent=5 // pred_fallthru
      _
    %p140 = scmp.lt.s32.totalorder %s9, 2
    // Predicated region
    $region21: #{lama_generator_forward.40} parent=5 // pred_check
      %p141 = pneg %p140
    $region22: #{lama_generator_forward.40} parent=5 // pred_check_branch
      %143 = sbr.rel (%p141) target = $region24
    $region23: #{lama_generator_forward.40} parent=5 // pred_region
      // Predicated region
      $region25: #{lama_generator_forward.40} parent=23 // pred_check
        %p144 = pneg %p43
      $region26: #{lama_generator_forward.40} parent=23 // pred_check_branch
        %146 = sbr.rel (%p144) target = $region28
      $region27: #{lama_generator_forward.40} parent=23 // pred_region
        %s147 = smul.u32 8, %s17
        %p148 = scmp.lt.s32.totalorder %s16, 1
        %s149 = scalar_select %p148, %s16, 1
        %p150 = scmp.lt.s32.totalorder %s147, 7
        %s151 = scalar_select %p150, %s147, 7
        %s152 = smul.addr %s151, 5
        %s153 = smul.addr %s149, 40
        %s154 = sadd.s32 %s152, %s153
        %s155 = smul.addr %s154, 4
        %s156 = scalar_lea.vmem %s0, %s155
        %s157 = smul.u32 8, %s17
      $region28: #{lama_generator_forward.40} parent=23 // pred_fallthru
        _
    $region24: #{lama_generator_forward.40} parent=5 // pred_fallthru
      _
    %p158 = scmp.le.s32.totalorder 1, %s9
    %p159 = scmp.lt.s32.totalorder %s9, 3
    %p160 = pnand %p158, %p159
    %p161 = pneg %p160
    // Predicated region
    $region29: #{lama_generator_forward.40} parent=5 // pred_check
      _
    $region30: #{lama_generator_forward.40} parent=5 // pred_check_branch
      %163 = sbr.rel (%p160) target = $region32
    $region31: #{lama_generator_forward.40} parent=5 // pred_region
      %s164 = ssub.s32 %s9, 1
      %s165 = smul.u32 8, %s19
      %p166 = scmp.lt.s32.totalorder %s18, 1
      %s167 = scalar_select %p166, %s18, 1
      %p168 = scmp.lt.s32.totalorder %s165, 7
      %s169 = scalar_select %p168, %s165, 7
      %s170 = smul.addr %s169, 5
      %s171 = smul.addr %s167, 40
      %s172 = sadd.s32 %s170, %s171
      %s173 = smul.addr %s172, 4
      %s174 = scalar_lea.vmem %s0, %s173
      %p175 = pneg %p49
      %p176 = pneg %p46
      %p177 = pneg %p70
      %p178 = pneg %p67
      %p179 = pneg %p91
      %p180 = pneg %p88
      %p181 = pneg %p119
      %p182 = pneg %p116
      %s183 = smul.u32 8, %s19
      %p184 = scmp.lt.s32.totalorder %s18, 1
      %s185 = scalar_select %p184, %s18, 1
      %p186 = scmp.lt.s32.totalorder %s183, 7
      %s187 = scalar_select %p186, %s183, 7
      %s188 = smul.addr %s185, 8
      %s189 = sadd.s32 %s187, %s188
      %s190 = smul.addr %s189, 4
      %s191 = scalar_lea.vmem %s3, %s190
      %s192 = smul.u32 8, %s19
      %p193 = scmp.lt.s32.totalorder %s18, 1
      %s194 = scalar_select %p193, %s18, 1
      %p195 = scmp.lt.s32.totalorder %s192, 7
      %s196 = scalar_select %p195, %s192, 7
      %s197 = smul.addr %s196, 5
      %s198 = smul.addr %s194, 40
      %s199 = sadd.s32 %s197, %s198
      %s200 = smul.addr %s199, 4
      %s201 = scalar_lea.vmem %s0, %s200
      %s202 = smul.u32 8, %s19
      %s203 = smul.u32 8, %s19
      %p204 = scmp.lt.s32.totalorder %s18, 1
      %s205 = scalar_select %p204, %s18, 1
      %p206 = scmp.lt.s32.totalorder %s203, 7
      %s207 = scalar_select %p206, %s203, 7
      %s208 = smul.addr %s205, 8
      %s209 = sadd.s32 %s207, %s208
      %s210 = smul.addr %s209, 4
      %s211 = scalar_lea.vmem %s3, %s210
      %s212 = smul.u32 8, %s19
      %v214 = vld [vmem:[%s201] sm:$0xff]
      %v215 = vld [vmem:[%s201 + $0x8] sm:$0xff]
      %v216 = vld [vmem:[%s201 + $0x10] sm:$0xf]
      %v217 = vld [vmem:[%s201 + $0x14] sm:$0xff]
      %v218 = vld [vmem:[%s201 + $0x1c] sm:$0xff]
      %v219 = vld [vmem:[%s201 + $0x24] sm:$0xf]
      %v220 = vld [vmem:[%s201 + $0x28] sm:$0xff]
      %v221 = vld [vmem:[%s201 + $0x30] sm:$0xff]
      %v222 = vld [vmem:[%s201 + $0x38] sm:$0xf]
      %v223 = vld [vmem:[%s201 + $0x3c] sm:$0xff]
      %v224 = vld [vmem:[%s201 + $0x44] sm:$0xff]
      %v225 = vld [vmem:[%s201 + $0x4c] sm:$0xf]
      %v226 = vld [vmem:[%s201 + $0x50] sm:$0xff]
      %v227 = vld [vmem:[%s201 + $0x58] sm:$0xff]
      %v228 = vld [vmem:[%s201 + $0x60] sm:$0xf]
      %v229 = vld [vmem:[%s201 + $0x64] sm:$0xff]
      %v230 = vld [vmem:[%s201 + $0x6c] sm:$0xff]
      %v231 = vld [vmem:[%s201 + $0x74] sm:$0xf]
      %v232 = vld [vmem:[%s201 + $0x78] sm:$0xff]
      %v233 = vld [vmem:[%s201 + $0x80] sm:$0xff]
      %v234 = vld [vmem:[%s201 + $0x88] sm:$0xf]
      %v235 = vld [vmem:[%s201 + $0x8c] sm:$0xff]
      %v236 = vld [vmem:[%s201 + $0x94] sm:$0xff]
      %v237 = vld [vmem:[%s201 + $0x9c] sm:$0xf]
      %v238 = vld [vmem:[%s1] sm:$0xf]
      %v239 = vld [vmem:[%s1 + $0x4] sm:$0xf]
      %v240 = vld [vmem:[%s1 + $0x8] sm:$0xf]
      %v241 = vld [vmem:[%s1 + $0xc] sm:$0xf]
      %v242 = vld [vmem:[%s1 + $0x10] sm:$0xf]
      %v243 = vld [vmem:[%s1 + $0x14] sm:$0xf]
      %v244 = vld [vmem:[%s1 + $0x18] sm:$0xf]
      %v245 = vld [vmem:[%s1 + $0x1c] sm:$0xf]
      %v246 = vld [vmem:[%s1 + $0x20] sm:$0xf]
      %v247 = vld [vmem:[%s1 + $0x24] sm:$0xf]
      %v248 = vld [vmem:[%s1 + $0x28] sm:$0xf]
      %v249 = vld [vmem:[%s1 + $0x2c] sm:$0xf]
      %v250 = vld [vmem:[%s1 + $0x30] sm:$0xf]
      %v251 = vld [vmem:[%s1 + $0x34] sm:$0xf]
      %v252 = vld [vmem:[%s1 + $0x38] sm:$0xf]
      %v253 = vld [vmem:[%s1 + $0x3c] sm:$0xf]
      %v254 = vld [vmem:[%s1 + $0x40] sm:$0xf]
      %v255 = vld [vmem:[%s1 + $0x44] sm:$0xf]
      %v256 = vld [vmem:[%s1 + $0x48] sm:$0xf]
      %v257 = vld [vmem:[%s1 + $0x4c] sm:$0xf]
      %v258 = vld [vmem:[%s1 + $0x50] sm:$0xf]
      %v259 = vld [vmem:[%s1 + $0x54] sm:$0xf]
      %v260 = vld [vmem:[%s1 + $0x58] sm:$0xf]
      %v261 = vld [vmem:[%s1 + $0x5c] sm:$0xf]
      %v262 = vld [vmem:[%s1 + $0x60] sm:$0xf]
      %v263 = vld [vmem:[%s1 + $0x64] sm:$0xf]
      %v264 = vld [vmem:[%s1 + $0x68] sm:$0xf]
      %v265 = vld [vmem:[%s1 + $0x6c] sm:$0xf]
      %v266 = vld [vmem:[%s1 + $0x70] sm:$0xf]
      %v267 = vld [vmem:[%s1 + $0x74] sm:$0xf]
      %v268 = vld [vmem:[%s1 + $0x78] sm:$0xf]
      %v269 = vld [vmem:[%s1 + $0x7c] sm:$0xf]
      %v270 = vld [vmem:[%s1 + $0x80] sm:$0xf]
      %v271 = vld [vmem:[%s1 + $0x84] sm:$0xf]
      %v272 = vld [vmem:[%s1 + $0x88] sm:$0xf]
      %v273 = vld [vmem:[%s1 + $0x8c] sm:$0xf]
      %v274 = vld [vmem:[%s1 + $0x90] sm:$0xf]
      %v275 = vld [vmem:[%s1 + $0x94] sm:$0xf]
      %v276 = vld [vmem:[%s1 + $0x98] sm:$0xf]
      %v277 = vld [vmem:[%s1 + $0x9c] sm:$0xf]
      %v278 = vld [vmem:[%s1 + $0xa0] sm:$0xf]
      %v279 = vld [vmem:[%s1 + $0xa4] sm:$0xf]
      %v280 = vld [vmem:[%s1 + $0xa8] sm:$0xf]
      %v281 = vld [vmem:[%s1 + $0xac] sm:$0xf]
      %v282 = vld [vmem:[%s1 + $0xb0] sm:$0xf]
      %v283 = vld [vmem:[%s1 + $0xb4] sm:$0xf]
      %v284 = vld [vmem:[%s1 + $0xb8] sm:$0xf]
      %v285 = vld [vmem:[%s1 + $0xbc] sm:$0xf]
      %v286 = vld [vmem:[%s1 + $0xc0] sm:$0xf]
      %v287 = vld [vmem:[%s1 + $0xc4] sm:$0xf]
      %v288 = vld [vmem:[%s1 + $0xc8] sm:$0xf]
      %v289 = vld [vmem:[%s1 + $0xcc] sm:$0xf]
      %v290 = vld [vmem:[%s1 + $0xd0] sm:$0xf]
      %v291 = vld [vmem:[%s1 + $0xd4] sm:$0xf]
      %v292 = vld [vmem:[%s1 + $0xd8] sm:$0xf]
      %v293 = vld [vmem:[%s1 + $0xdc] sm:$0xf]
      %v294 = vld [vmem:[%s1 + $0xe0] sm:$0xf]
      %v295 = vld [vmem:[%s1 + $0xe4] sm:$0xf]
      %v296 = vld [vmem:[%s1 + $0xe8] sm:$0xf]
      %v297 = vld [vmem:[%s1 + $0xec] sm:$0xf]
      %v298 = vld [vmem:[%s1 + $0xf0] sm:$0xf]
      %v299 = vld [vmem:[%s1 + $0xf4] sm:$0xf]
      %v300 = vld [vmem:[%s1 + $0xf8] sm:$0xf]
      %v301 = vld [vmem:[%s1 + $0xfc] sm:$0xf]
      %v302 = vld [vmem:[%s1 + $0x100] sm:$0xf]
      %v303 = vld [vmem:[%s1 + $0x104] sm:$0xf]
      %v304 = vld [vmem:[%s1 + $0x108] sm:$0xf]
      %v305 = vld [vmem:[%s1 + $0x10c] sm:$0xf]
      %v306 = vld [vmem:[%s1 + $0x110] sm:$0xf]
      %v307 = vld [vmem:[%s1 + $0x114] sm:$0xf]
      %v308 = vld [vmem:[%s1 + $0x118] sm:$0xf]
      %v309 = vld [vmem:[%s1 + $0x11c] sm:$0xf]
      %v310 = vld [vmem:[%s1 + $0x120] sm:$0xf]
      %v311 = vld [vmem:[%s1 + $0x124] sm:$0xf]
      %v312 = vld [vmem:[%s1 + $0x128] sm:$0xf]
      %v313 = vld [vmem:[%s1 + $0x12c] sm:$0xf]
      %v314 = vld [vmem:[%s1 + $0x130] sm:$0xf]
      %v315 = vld [vmem:[%s1 + $0x134] sm:$0xf]
      %v316 = vld [vmem:[%s1 + $0x138] sm:$0xf]
      %v317 = vld [vmem:[%s1 + $0x13c] sm:$0xf]
      %v318 = vld [vmem:[%s2] sm:$0x1]
      %v320 = vlaneseq
      %v321 = vshrl.u32 %v320, 7
      %v322 = vsub.s32 0, %v321
      %v323 = vrot.slane %v318, %v322
      %v349 = vunpack.c.l.b16 %v214
      %v350 = vunpack.c.h.b16 %v214
      %v351 = vunpack.c.l.b16 %v215
      %v352 = vunpack.c.h.b16 %v215
      %v353 = vunpack.c.l.b16 %v216
      %v354 = vunpack.c.l.b16 %v217
      %v355 = vunpack.c.h.b16 %v217
      %v356 = vunpack.c.l.b16 %v218
      %v357 = vunpack.c.h.b16 %v218
      %v358 = vunpack.c.l.b16 %v219
      %v359 = vunpack.c.l.b16 %v220
      %v360 = vunpack.c.h.b16 %v220
      %v361 = vunpack.c.l.b16 %v221
      %v362 = vunpack.c.h.b16 %v221
      %v363 = vunpack.c.l.b16 %v222
      %v364 = vunpack.c.l.b16 %v223
      %v365 = vunpack.c.h.b16 %v223
      %v366 = vunpack.c.l.b16 %v224
      %v367 = vunpack.c.h.b16 %v224
      %v368 = vunpack.c.l.b16 %v225
      %v369 = vunpack.c.l.b16 %v226
      %v370 = vunpack.c.h.b16 %v226
      %v371 = vunpack.c.l.b16 %v227
      %v372 = vunpack.c.h.b16 %v227
      %v373 = vunpack.c.l.b16 %v228
      %v374 = vunpack.c.l.b16 %v229
      %v375 = vunpack.c.h.b16 %v229
      %v376 = vunpack.c.l.b16 %v230
      %v377 = vunpack.c.h.b16 %v230
      %v378 = vunpack.c.l.b16 %v231
      %v379 = vunpack.c.l.b16 %v232
      %v380 = vunpack.c.h.b16 %v232
      %v381 = vunpack.c.l.b16 %v233
      %v382 = vunpack.c.h.b16 %v233
      %v383 = vunpack.c.l.b16 %v234
      %v384 = vunpack.c.l.b16 %v235
      %v385 = vunpack.c.h.b16 %v235
      %v386 = vunpack.c.l.b16 %v236
      %v387 = vunpack.c.h.b16 %v236
      %v388 = vunpack.c.l.b16 %v237
      %v389 = vpack.c.b16 %v354, %v349
      %v390 = vpack.c.b16 %v355, %v350
      %v391 = vpack.c.b16 %v356, %v351
      %v392 = vpack.c.b16 %v357, %v352
      %v393 = vpack.c.b16 %v358, %v353
      %v394 = vpack.c.b16 %v364, %v359
      %v395 = vpack.c.b16 %v365, %v360
      %v396 = vpack.c.b16 %v366, %v361
      %v397 = vpack.c.b16 %v367, %v362
      %v398 = vpack.c.b16 %v368, %v363
      %v399 = vpack.c.b16 %v374, %v369
      %v400 = vpack.c.b16 %v375, %v370
      %v401 = vpack.c.b16 %v376, %v371
      %v402 = vpack.c.b16 %v377, %v372
      %v403 = vpack.c.b16 %v378, %v373
      %v404 = vpack.c.b16 %v384, %v379
      %v405 = vpack.c.b16 %v385, %v380
      %v406 = vpack.c.b16 %v386, %v381
      %v407 = vpack.c.b16 %v387, %v382
      %v408 = vpack.c.b16 %v388, %v383
      %v509 = vunpack.c.l.b16 %v238
      %v510 = vunpack.c.l.b16 %v239
      %v511 = vunpack.c.l.b16 %v240
      %v512 = vunpack.c.l.b16 %v241
      %v513 = vunpack.c.l.b16 %v242
      %v514 = vunpack.c.l.b16 %v243
      %v515 = vunpack.c.l.b16 %v244
      %v516 = vunpack.c.l.b16 %v245
      %v517 = vunpack.c.l.b16 %v246
      %v518 = vunpack.c.l.b16 %v247
      %v519 = vunpack.c.l.b16 %v248
      %v520 = vunpack.c.l.b16 %v249
      %v521 = vunpack.c.l.b16 %v250
      %v522 = vunpack.c.l.b16 %v251
      %v523 = vunpack.c.l.b16 %v252
      %v524 = vunpack.c.l.b16 %v253
      %v525 = vunpack.c.l.b16 %v254
      %v526 = vunpack.c.l.b16 %v255
      %v527 = vunpack.c.l.b16 %v256
      %v528 = vunpack.c.l.b16 %v257
      %v529 = vunpack.c.l.b16 %v258
      %v530 = vunpack.c.l.b16 %v259
      %v531 = vunpack.c.l.b16 %v260
      %v532 = vunpack.c.l.b16 %v261
      %v533 = vunpack.c.l.b16 %v262
      %v534 = vunpack.c.l.b16 %v263
      %v535 = vunpack.c.l.b16 %v264
      %v536 = vunpack.c.l.b16 %v265
      %v537 = vunpack.c.l.b16 %v266
      %v538 = vunpack.c.l.b16 %v267
      %v539 = vunpack.c.l.b16 %v268
      %v540 = vunpack.c.l.b16 %v269
      %v541 = vunpack.c.l.b16 %v270
      %v542 = vunpack.c.l.b16 %v271
      %v543 = vunpack.c.l.b16 %v272
      %v544 = vunpack.c.l.b16 %v273
      %v545 = vunpack.c.l.b16 %v274
      %v546 = vunpack.c.l.b16 %v275
      %v547 = vunpack.c.l.b16 %v276
      %v548 = vunpack.c.l.b16 %v277
      %v549 = vunpack.c.l.b16 %v278
      %v550 = vunpack.c.l.b16 %v279
      %v551 = vunpack.c.l.b16 %v280
      %v552 = vunpack.c.l.b16 %v281
      %v553 = vunpack.c.l.b16 %v282
      %v554 = vunpack.c.l.b16 %v283
      %v555 = vunpack.c.l.b16 %v284
      %v556 = vunpack.c.l.b16 %v285
      %v557 = vunpack.c.l.b16 %v286
      %v558 = vunpack.c.l.b16 %v287
      %v559 = vunpack.c.l.b16 %v288
      %v560 = vunpack.c.l.b16 %v289
      %v561 = vunpack.c.l.b16 %v290
      %v562 = vunpack.c.l.b16 %v291
      %v563 = vunpack.c.l.b16 %v292
      %v564 = vunpack.c.l.b16 %v293
      %v565 = vunpack.c.l.b16 %v294
      %v566 = vunpack.c.l.b16 %v295
      %v567 = vunpack.c.l.b16 %v296
      %v568 = vunpack.c.l.b16 %v297
      %v569 = vunpack.c.l.b16 %v298
      %v570 = vunpack.c.l.b16 %v299
      %v571 = vunpack.c.l.b16 %v300
      %v572 = vunpack.c.l.b16 %v301
      %v573 = vunpack.c.l.b16 %v302
      %v574 = vunpack.c.l.b16 %v303
      %v575 = vunpack.c.l.b16 %v304
      %v576 = vunpack.c.l.b16 %v305
      %v577 = vunpack.c.l.b16 %v306
      %v578 = vunpack.c.l.b16 %v307
      %v579 = vunpack.c.l.b16 %v308
      %v580 = vunpack.c.l.b16 %v309
      %v581 = vunpack.c.l.b16 %v310
      %v582 = vunpack.c.l.b16 %v311
      %v583 = vunpack.c.l.b16 %v312
      %v584 = vunpack.c.l.b16 %v313
      %v585 = vunpack.c.l.b16 %v314
      %v586 = vunpack.c.l.b16 %v315
      %v587 = vunpack.c.l.b16 %v316
      %v588 = vunpack.c.l.b16 %v317
      %v589 = vpack.c.b16 %v510, %v509
      %v590 = vpack.c.b16 %v512, %v511
      %v591 = vpack.c.b16 %v514, %v513
      %v592 = vpack.c.b16 %v516, %v515
      %v593 = vpack.c.b16 %v518, %v517
      %v594 = vpack.c.b16 %v520, %v519
      %v595 = vpack.c.b16 %v522, %v521
      %v596 = vpack.c.b16 %v524, %v523
      %v597 = vpack.c.b16 %v526, %v525
      %v598 = vpack.c.b16 %v528, %v527
      %v599 = vpack.c.b16 %v530, %v529
      %v600 = vpack.c.b16 %v532, %v531
      %v601 = vpack.c.b16 %v534, %v533
      %v602 = vpack.c.b16 %v536, %v535
      %v603 = vpack.c.b16 %v538, %v537
      %v604 = vpack.c.b16 %v540, %v539
      %v605 = vpack.c.b16 %v542, %v541
      %v606 = vpack.c.b16 %v544, %v543
      %v607 = vpack.c.b16 %v546, %v545
      %v608 = vpack.c.b16 %v548, %v547
      %v609 = vpack.c.b16 %v550, %v549
      %v610 = vpack.c.b16 %v552, %v551
      %v611 = vpack.c.b16 %v554, %v553
      %v612 = vpack.c.b16 %v556, %v555
      %v613 = vpack.c.b16 %v558, %v557
      %v614 = vpack.c.b16 %v560, %v559
      %v615 = vpack.c.b16 %v562, %v561
      %v616 = vpack.c.b16 %v564, %v563
      %v617 = vpack.c.b16 %v566, %v565
      %v618 = vpack.c.b16 %v568, %v567
      %v619 = vpack.c.b16 %v570, %v569
      %v620 = vpack.c.b16 %v572, %v571
      %v621 = vpack.c.b16 %v574, %v573
      %v622 = vpack.c.b16 %v576, %v575
      %v623 = vpack.c.b16 %v578, %v577
      %v624 = vpack.c.b16 %v580, %v579
      %v625 = vpack.c.b16 %v582, %v581
      %v626 = vpack.c.b16 %v584, %v583
      %v627 = vpack.c.b16 %v586, %v585
      %v628 = vpack.c.b16 %v588, %v587
      %669 = vmatprep.subr.bf16.mxu0 0
      %670 = vmatpush1.bf16.msra.mxu0 %v596
      %671 = vmatprep.subr.bf16.mxu0 0
      %672 = vmatpush1.bf16.msra.mxu0 %v595
      %673 = vmatprep.subr.bf16.mxu0 0
      %674 = vmatpush1.bf16.msra.mxu0 %v594
      %675 = vmatprep.subr.bf16.mxu0 0
      %676 = vmatpush1.bf16.msra.mxu0 %v593
      %677 = vmatprep.subr.bf16.mxu0 0
      %678 = vmatpush1.bf16.msra.mxu0 %v592
      %679 = vmatprep.subr.bf16.mxu0 0
      %680 = vmatpush1.bf16.msra.mxu0 %v591
      %681 = vmatprep.subr.bf16.mxu0 0
      %682 = vmatpush1.bf16.msra.mxu0 %v590
      %683 = vmatprep.subr.bf16.mxu0 0
      %684 = vmatpush1.bf16.msra.mxu0 %v589
      %685 = vmatprep.subr.bf16.mxu0 0
      %686 = vmatpush2.bf16.msra.mxu0 %v604
      %687 = vmatprep.subr.bf16.mxu0 0
      %688 = vmatpush2.bf16.msra.mxu0 %v603
      %689 = vmatprep.subr.bf16.mxu0 0
      %690 = vmatpush2.bf16.msra.mxu0 %v602
      %691 = vmatprep.subr.bf16.mxu0 0
      %692 = vmatpush2.bf16.msra.mxu0 %v601
      %693 = vmatprep.subr.bf16.mxu0 0
      %694 = vmatpush2.bf16.msra.mxu0 %v600
      %695 = vmatprep.subr.bf16.mxu0 0
      %696 = vmatpush2.bf16.msra.mxu0 %v599
      %697 = vmatprep.subr.bf16.mxu0 0
      %698 = vmatpush2.bf16.msra.mxu0 %v598
      %699 = vmatprep.subr.bf16.mxu0 0
      %700 = vmatpush2.bf16.msra.mxu0 %v597
      %701 = vmatprep.mubr.bf16.mxu0 %v390
      %702 = vmatmul.mubr.bf16.gmra.mxu0 %v389
      %v703 = vpop.f32.mrf.mxu0
      %v704 = vadd.f32 %v323, %v703
      %v705 = vpop.f32.mrf.mxu0
      %v706 = vpop.f32.mrf.mxu0
      %v707 = vadd.f32 %v323, %v706
      %v708 = vpop.f32.mrf.mxu0
      %709 = vmatprep.mubr.bf16.mxu0 %v395
      %710 = vmatmul.mubr.bf16.gmra.mxu0 %v394
      %v711 = vpop.f32.mrf.mxu0
      %v712 = vadd.f32 %v323, %v711
      %v713 = vpop.f32.mrf.mxu0
      %v714 = vpop.f32.mrf.mxu0
      %v715 = vadd.f32 %v323, %v714
      %v716 = vpop.f32.mrf.mxu0
      %717 = vmatprep.mubr.bf16.mxu0 %v400
      %718 = vmatmul.mubr.bf16.gmra.mxu0 %v399
      %v719 = vpop.f32.mrf.mxu0
      %v720 = vadd.f32 %v323, %v719
      %v721 = vpop.f32.mrf.mxu0
      %v722 = vpop.f32.mrf.mxu0
      %v723 = vadd.f32 %v323, %v722
      %v724 = vpop.f32.mrf.mxu0
      %725 = vmatprep.mubr.bf16.mxu0 %v405
      %726 = vmatmul.mubr.bf16.gmra.mxu0 %v404
      %v727 = vpop.f32.mrf.mxu0
      %v728 = vadd.f32 %v323, %v727
      %v729 = vpop.f32.mrf.mxu0
      %v730 = vpop.f32.mrf.mxu0
      %v731 = vadd.f32 %v323, %v730
      %v732 = vpop.f32.mrf.mxu0
      %733 = vdwg.mxu0
      %734 = vmatprep.subr.bf16.mxu0 0
      %735 = vmatpush1.bf16.msra.mxu0 %v612
      %736 = vmatprep.subr.bf16.mxu0 0
      %737 = vmatpush1.bf16.msra.mxu0 %v611
      %738 = vmatprep.subr.bf16.mxu0 0
      %739 = vmatpush1.bf16.msra.mxu0 %v610
      %740 = vmatprep.subr.bf16.mxu0 0
      %741 = vmatpush1.bf16.msra.mxu0 %v609
      %742 = vmatprep.subr.bf16.mxu0 0
      %743 = vmatpush1.bf16.msra.mxu0 %v608
      %744 = vmatprep.subr.bf16.mxu0 0
      %745 = vmatpush1.bf16.msra.mxu0 %v607
      %746 = vmatprep.subr.bf16.mxu0 0
      %747 = vmatpush1.bf16.msra.mxu0 %v606
      %748 = vmatprep.subr.bf16.mxu0 0
      %749 = vmatpush1.bf16.msra.mxu0 %v605
      %750 = vmatprep.subr.bf16.mxu0 0
      %751 = vmatpush2.bf16.msra.mxu0 %v620
      %752 = vmatprep.subr.bf16.mxu0 0
      %753 = vmatpush2.bf16.msra.mxu0 %v619
      %754 = vmatprep.subr.bf16.mxu0 0
      %755 = vmatpush2.bf16.msra.mxu0 %v618
      %756 = vmatprep.subr.bf16.mxu0 0
      %757 = vmatpush2.bf16.msra.mxu0 %v617
      %758 = vmatprep.subr.bf16.mxu0 0
      %759 = vmatpush2.bf16.msra.mxu0 %v616
      %760 = vmatprep.subr.bf16.mxu0 0
      %761 = vmatpush2.bf16.msra.mxu0 %v615
      %762 = vmatprep.subr.bf16.mxu0 0
      %763 = vmatpush2.bf16.msra.mxu0 %v614
      %764 = vmatprep.subr.bf16.mxu0 0
      %765 = vmatpush2.bf16.msra.mxu0 %v613
      %766 = vmatprep.mubr.bf16.mxu0 %v392
      %767 = vmatmul.mubr.bf16.gmra.mxu0 %v391
      %v768 = vpop.f32.mrf.mxu0
      %v769 = vadd.f32 %v704, %v768
      %v770 = vpop.f32.mrf.mxu0
      %v771 = vpop.f32.mrf.mxu0
      %v772 = vadd.f32 %v707, %v771
      %v773 = vpop.f32.mrf.mxu0
      %774 = vmatprep.mubr.bf16.mxu0 %v397
      %775 = vmatmul.mubr.bf16.gmra.mxu0 %v396
      %v776 = vpop.f32.mrf.mxu0
      %v777 = vadd.f32 %v712, %v776
      %v778 = vpop.f32.mrf.mxu0
      %v779 = vpop.f32.mrf.mxu0
      %v780 = vadd.f32 %v715, %v779
      %v781 = vpop.f32.mrf.mxu0
      %782 = vmatprep.mubr.bf16.mxu0 %v402
      %783 = vmatmul.mubr.bf16.gmra.mxu0 %v401
      %v784 = vpop.f32.mrf.mxu0
      %v785 = vadd.f32 %v720, %v784
      %v786 = vpop.f32.mrf.mxu0
      %v787 = vpop.f32.mrf.mxu0
      %v788 = vadd.f32 %v723, %v787
      %v789 = vpop.f32.mrf.mxu0
      %790 = vmatprep.mubr.bf16.mxu0 %v407
      %791 = vmatmul.mubr.bf16.gmra.mxu0 %v406
      %v792 = vpop.f32.mrf.mxu0
      %v793 = vadd.f32 %v728, %v792
      %v794 = vpop.f32.mrf.mxu0
      %v795 = vpop.f32.mrf.mxu0
      %v796 = vadd.f32 %v731, %v795
      %v797 = vpop.f32.mrf.mxu0
      %798 = vdwg.mxu0
      %799 = vmatprep.subr.bf16.mxu0 0
      %800 = vmatpush1.bf16.msra.mxu0 %v628
      %801 = vmatprep.subr.bf16.mxu0 0
      %802 = vmatpush1.bf16.msra.mxu0 %v627
      %803 = vmatprep.subr.bf16.mxu0 0
      %804 = vmatpush1.bf16.msra.mxu0 %v626
      %805 = vmatprep.subr.bf16.mxu0 0
      %806 = vmatpush1.bf16.msra.mxu0 %v625
      %807 = vmatprep.subr.bf16.mxu0 0
      %808 = vmatpush1.bf16.msra.mxu0 %v624
      %809 = vmatprep.subr.bf16.mxu0 0
      %810 = vmatpush1.bf16.msra.mxu0 %v623
      %811 = vmatprep.subr.bf16.mxu0 0
      %812 = vmatpush1.bf16.msra.mxu0 %v622
      %813 = vmatprep.subr.bf16.mxu0 0
      %814 = vmatpush1.bf16.msra.mxu0 %v621
      %815 = vmatprep.subr.bf16.mxu0 0
      %816 = vmatpush2.bf16.msra.mxu0 0
      %817 = vmatprep.subr.bf16.mxu0 0
      %818 = vmatpush2.bf16.msra.mxu0 0
      %819 = vmatprep.subr.bf16.mxu0 0
      %820 = vmatpush2.bf16.msra.mxu0 0
      %821 = vmatprep.subr.bf16.mxu0 0
      %822 = vmatpush2.bf16.msra.mxu0 0
      %823 = vmatprep.subr.bf16.mxu0 0
      %824 = vmatpush2.bf16.msra.mxu0 0
      %825 = vmatprep.subr.bf16.mxu0 0
      %826 = vmatpush2.bf16.msra.mxu0 0
      %827 = vmatprep.subr.bf16.mxu0 0
      %828 = vmatpush2.bf16.msra.mxu0 0
      %829 = vmatprep.subr.bf16.mxu0 0
      %830 = vmatpush2.bf16.msra.mxu0 0
      %831 = vmatprep.mubr.bf16.mxu0 0
      %832 = vmatmul.mubr.bf16.gmra.mxu0 %v393
      %v833 = vpop.f32.mrf.mxu0
      %v834 = vadd.f32 %v769, %v833
      %v835 = vpop.f32.mrf.mxu0
      %v836 = vpop.f32.mrf.mxu0
      %v837 = vadd.f32 %v772, %v836
      %v838 = vpop.f32.mrf.mxu0
      %839 = vmatprep.mubr.bf16.mxu0 0
      %840 = vmatmul.mubr.bf16.gmra.mxu0 %v398
      %v841 = vpop.f32.mrf.mxu0
      %v842 = vadd.f32 %v777, %v841
      %v843 = vpop.f32.mrf.mxu0
      %v844 = vpop.f32.mrf.mxu0
      %v845 = vadd.f32 %v780, %v844
      %v846 = vpop.f32.mrf.mxu0
      %847 = vmatprep.mubr.bf16.mxu0 0
      %848 = vmatmul.mubr.bf16.gmra.mxu0 %v403
      %v849 = vpop.f32.mrf.mxu0
      %v850 = vadd.f32 %v785, %v849
      %v851 = vpop.f32.mrf.mxu0
      %v852 = vpop.f32.mrf.mxu0
      %v853 = vadd.f32 %v788, %v852
      %v854 = vpop.f32.mrf.mxu0
      %855 = vmatprep.mubr.bf16.mxu0 0
      %856 = vmatmul.mubr.bf16.gmra.mxu0 %v408
      %v857 = vpop.f32.mrf.mxu0
      %v858 = vadd.f32 %v793, %v857
      %v859 = vpop.f32.mrf.mxu0
      %v860 = vpop.f32.mrf.mxu0
      %v861 = vadd.f32 %v796, %v860
      %v862 = vpop.f32.mrf.mxu0
      %863 = vdwg.mxu0
      %v864 = vpack.c.bf16 %v837, %v834
      %v865 = vpack.c.bf16 %v845, %v842
      %v866 = vpack.c.bf16 %v853, %v850
      %v867 = vpack.c.bf16 %v861, %v858
      %v872 = vunpack.c.l.b16 %v864
      %v873 = vunpack.c.h.b16 %v864
      %v874 = vunpack.c.l.b16 %v865
      %v875 = vunpack.c.h.b16 %v865
      %v876 = vunpack.c.l.b16 %v866
      %v877 = vunpack.c.h.b16 %v866
      %v878 = vunpack.c.l.b16 %v867
      %v879 = vunpack.c.h.b16 %v867
      %v880 = vpack.c.b16 %v872, %v872
      %v881 = vpack.c.b16 %v873, %v873
      %v882 = vpack.c.b16 %v874, %v874
      %v883 = vpack.c.b16 %v875, %v875
      %v884 = vpack.c.b16 %v876, %v876
      %v885 = vpack.c.b16 %v877, %v877
      %v886 = vpack.c.b16 %v878, %v878
      %v887 = vpack.c.b16 %v879, %v879
      %896 = vst [vmem:[%s211] sm:$0xf] %v880
      %897 = vst [vmem:[%s211 + $0x4] sm:$0xf] %v881
      %898 = vst [vmem:[%s211 + $0x8] sm:$0xf] %v882
      %899 = vst [vmem:[%s211 + $0xc] sm:$0xf] %v883
      %900 = vst [vmem:[%s211 + $0x10] sm:$0xf] %v884
      %901 = vst [vmem:[%s211 + $0x14] sm:$0xf] %v885
      %902 = vst [vmem:[%s211 + $0x18] sm:$0xf] %v886
      %903 = vst [vmem:[%s211 + $0x1c] sm:$0xf] %v887
      %s904 = smul.u32 8, %s19
      %p905 = scmp.lt.s32.totalorder %s18, 1
      %s906 = scalar_select %p905, %s18, 1
      %p907 = scmp.lt.s32.totalorder %s904, 7
      %s908 = scalar_select %p907, %s904, 7
      %s909 = smul.addr %s906, 8
      %s910 = sadd.s32 %s908, %s909
      %s911 = smul.addr %s910, 4
      %s912 = scalar_lea.vmem %s3, %s911
      // Predicated region
      $region33: #{lama_generator_forward.40} parent=31 // pred_check
        %p913 = pneg %p116
      $region34: #{lama_generator_forward.40} parent=31 // pred_check_branch
        %915 = sbr.rel (%p913) target = $region36
      $region35: #{lama_generator_forward.40} parent=31 // pred_region
        %s916 = smul.u32 8, %s19
      $region36: #{lama_generator_forward.40} parent=31 // pred_fallthru
        _
    $region32: #{lama_generator_forward.40} parent=5 // pred_fallthru
      _
    %p917 = scmp.le.s32.totalorder 2, %s9
    // Predicated region
    $region37: #{lama_generator_forward.40} parent=5 // pred_check
      %p918 = pneg %p917
    $region38: #{lama_generator_forward.40} parent=5 // pred_check_branch
      %920 = sbr.rel (%p918) target = $region40
    $region39: #{lama_generator_forward.40} parent=5 // pred_region
      %s921 = ssub.s32 %s9, 2
      // Predicated region
      $region41: #{lama_generator_forward.40} parent=39 // pred_check
        %p922 = pneg %p122
      $region42: #{lama_generator_forward.40} parent=39 // pred_check_branch
        %924 = sbr.rel (%p922) target = $region44
      $region43: #{lama_generator_forward.40} parent=39 // pred_region
        %s925 = smul.u32 8, %s21
        %p926 = scmp.lt.s32.totalorder %s20, 1
        %s927 = scalar_select %p926, %s20, 1
        %p928 = scmp.lt.s32.totalorder %s925, 7
        %s929 = scalar_select %p928, %s925, 7
        %s930 = smul.addr %s927, 8
        %s931 = sadd.s32 %s929, %s930
        %s932 = smul.addr %s931, 4
        %s933 = scalar_lea.vmem %s3, %s932
      $region44: #{lama_generator_forward.40} parent=39 // pred_fallthru
        _
    $region40: #{lama_generator_forward.40} parent=5 // pred_fallthru
      _
  $region6: #{lama_generator_forward.40} parent=0 // loop_footer
    %s13 = sadd.s32 1, %s9
  $region7: #{lama_generator_forward.40} parent=0 // loop_footer_branch
    %8 = sbr.rel target = $region3
  $region8: #{lama_generator_forward.40} parent=0 // loop_exit
    _

// kernel: reverse.36
$region0: #{reverse.36}
  #allocation0 [shape = 's32[1]{0}', space=sflag, size = 0x4, scoped, tag = 'scoped memory for reverse.36']
  %s0 = inlined_call_operand.vmem [shape: f32[2,64,8,3], index: 0, kind: input, shape index: {}]
  %s1 = inlined_call_operand.vmem [shape: f32[2,64,8,3], index: 1, kind: output, shape index: {}]
  %s2 = scalar_lea.vmem %s0, 16
  %v3 = vld [vmem:[%s2] sm:$0xff]
  %4 = vst [vmem:[%s1] sm:$0xff] %v3
  %s5 = scalar_lea.vmem %s0, 40
  %v6 = vld [vmem:[%s5] sm:$0xff]
  %s7 = scalar_lea.vmem %s1, 24
  %8 = vst [vmem:[%s7] sm:$0xff] %v6
  %s9 = scalar_lea.vmem %s0, 8
  %v10 = vld [vmem:[%s9] sm:$0xff]
  %s11 = scalar_lea.vmem %s1, 8
  %12 = vst [vmem:[%s11] sm:$0xff] %v10
  %s13 = scalar_lea.vmem %s0, 32
  %v14 = vld [vmem:[%s13] sm:$0xff]
  %s15 = scalar_lea.vmem %s1, 32
  %16 = vst [vmem:[%s15] sm:$0xff] %v14
  %v17 = vld [vmem:[%s0] sm:$0xff]
  %s18 = scalar_lea.vmem %s1, 16
  %19 = vst [vmem:[%s18] sm:$0xff] %v17
  %s20 = scalar_lea.vmem %s0, 24
  %v21 = vld [vmem:[%s20] sm:$0xff]
  %s22 = scalar_lea.vmem %s1, 40
  %23 = vst [vmem:[%s22] sm:$0xff] %v21

// kernel: lama_generator_forward.41
$region0: #{lama_generator_forward.41}
  #allocation0 [shape = 'u32[]', space=smem, size = 0x4, offset = 0x4, fixed_abs, tag = 'smem constant byte address 0x4 - core index']
  #allocation1 [shape = 'u32[144,128]{1,0:T(1,128)}', space=vmem, size = 0x12000, scoped, tag = 'internal scratch']
  %s0 = inlined_call_operand.vmem [shape: bf16[2,40,64], index: 0, kind: input, shape index: {}]
  %s1 = inlined_call_operand.vmem [shape: bf16[2,40,64], index: 1, kind: input, shape index: {}]
  %s2 = inlined_call_operand.vmem [shape: bf16[64,128], index: 2, kind: input, shape index: {}]
  %s3 = inlined_call_operand.vmem [shape: bf16[64,128], index: 3, kind: input, shape index: {}]
  %s4 = inlined_call_operand.vmem [shape: f32[1,128], index: 4, kind: input, shape index: {}]
  %s5 = inlined_call_operand.vmem [shape: bf16[2,40,128], index: 5, kind: output, shape index: {}]
  %s6 = sld [smem:[#allocation0]]
  $region53: #{lama_generator_forward.41} parent=0
    _
  %s8 = ssub.s32 1, %s6
  %s9 = scalar_select 0, %s8, %s6
  loop: start=0, step=1, limit=4
  $region2: #{lama_generator_forward.41} parent=0 // loop_pre_header
    _
  $region3: #{lama_generator_forward.41} parent=0 // loop_header
    %s11 = sphi 0, %s15
    %p12 = scmp.ge.s32.totalorder %s11, 4
    %s18 = sphi 0, %s30
    %s19 = sphi 0, %s26
    %s20 = sphi 0, %s18
    %s21 = sphi 0, %s19
    %s22 = sphi 0, %s20
    %s23 = sphi 0, %s21
    %s35 = sphi 0, %s37
    %s38 = sphi 0, %s35
    %s39 = sphi 0, %s38
    %s55 = sphi 0, %s39
    %s63 = sphi 0, %s65
    %s66 = sphi 0, %s63
    %s67 = sphi 0, %s66
    %s83 = sphi 0, %s67
    %s87 = sphi 0, %s87
    %s89 = sphi 0, %s87
    %s90 = sphi 0, %s89
    %s104 = sphi 0, %s90
    %s108 = sphi 0, %s108
    %s110 = sphi 0, %s108
    %s111 = sphi 0, %s110
    %s125 = sphi 0, %s111
    %s129 = sphi 0, %s129
    %s131 = sphi 0, %s129
    %s132 = sphi 0, %s131
    %s146 = sphi 0, %s132
    %s154 = sphi 0, %s156
    %s157 = sphi 0, %s154
    %s158 = sphi 0, %s157
    %s174 = sphi 0, %s158
  $region4: #{lama_generator_forward.41} parent=0 // loop_header_branch
    %14 = sbr.rel (%p12) target = $region8
  $region5: #{lama_generator_forward.41} parent=0 // loop_body
    %s16 = ssub.s32 %s11, 1
    %s17 = ssub.s32 %s11, 2
    %s24 = sadd.s32 1, %s19
    %p25 = scmp.ge.s32.totalorder %s24, 1
    %s26 = scalar_select %p25, 0, %s24
    %s27 = sadd.s32 1, %s18
    %s28 = scalar_select %p25, %s27, %s18
    %p29 = scmp.ge.s32.totalorder %s28, 2
    %s30 = scalar_select %p29, 0, %s28
    %s31 = ssub.s32 %s18, %s30
    %s32 = ssub.s32 %s19, %s26
    %s33 = sor.u32 %s31, %s32
    %p34 = scmp.eq.s32.totalorder %s33, 0
    %s36 = sadd.s32 %s35, 1
    %s37 = scalar_select %p34, %s35, %s36
    %p40 = pneg %p34
    %p41 = scmp.eq.s32.totalorder %s11, 1
    %p42 = por %p40, %p41
    %p43 = scmp.ne.s32.totalorder %s35, %s38
    %p44 = scmp.eq.s32.totalorder %s11, 0
    %p45 = por %p43, %p44
    %p46 = scmp.ne.s32.totalorder %s35, %s38
    %p47 = scmp.eq.s32.totalorder %s16, 1
    %p48 = por %p46, %p47
    %p49 = scmp.ne.s32.totalorder %s38, %s39
    %p50 = scmp.eq.s32.totalorder %s16, 0
    %p51 = por %p49, %p50
    %p52 = scmp.ne.s32.totalorder %s38, %s39
    %p53 = scmp.eq.s32.totalorder %s17, 1
    %p54 = por %p52, %p53
    %p56 = scmp.ne.s32.totalorder %s39, %s55
    %p57 = scmp.eq.s32.totalorder %s17, 0
    %p58 = por %p56, %p57
    %s59 = ssub.s32 %s18, %s30
    %s60 = ssub.s32 %s19, %s26
    %s61 = sor.u32 %s59, %s60
    %p62 = scmp.eq.s32.totalorder %s61, 0
    %s64 = sadd.s32 %s63, 1
    %s65 = scalar_select %p62, %s63, %s64
    %p68 = pneg %p62
    %p69 = scmp.eq.s32.totalorder %s11, 1
    %p70 = por %p68, %p69
    %p71 = scmp.ne.s32.totalorder %s63, %s66
    %p72 = scmp.eq.s32.totalorder %s11, 0
    %p73 = por %p71, %p72
    %p74 = scmp.ne.s32.totalorder %s63, %s66
    %p75 = scmp.eq.s32.totalorder %s16, 1
    %p76 = por %p74, %p75
    %p77 = scmp.ne.s32.totalorder %s66, %s67
    %p78 = scmp.eq.s32.totalorder %s16, 0
    %p79 = por %p77, %p78
    %p80 = scmp.ne.s32.totalorder %s66, %s67
    %p81 = scmp.eq.s32.totalorder %s17, 1
    %p82 = por %p80, %p81
    %p84 = scmp.ne.s32.totalorder %s67, %s83
    %p85 = scmp.eq.s32.totalorder %s17, 0
    %p86 = por %p84, %p85
    %s88 = sadd.s32 %s87, 1
    %p91 = scmp.eq.s32.totalorder %s11, 1
    %p92 = scmp.ne.s32.totalorder %s87, %s89
    %p93 = scmp.eq.s32.totalorder %s11, 0
    %p94 = por %p92, %p93
    %p95 = scmp.ne.s32.totalorder %s87, %s89
    %p96 = scmp.eq.s32.totalorder %s16, 1
    %p97 = por %p95, %p96
    %p98 = scmp.ne.s32.totalorder %s89, %s90
    %p99 = scmp.eq.s32.totalorder %s16, 0
    %p100 = por %p98, %p99
    %p101 = scmp.ne.s32.totalorder %s89, %s90
    %p102 = scmp.eq.s32.totalorder %s17, 1
    %p103 = por %p101, %p102
    %p105 = scmp.ne.s32.totalorder %s90, %s104
    %p106 = scmp.eq.s32.totalorder %s17, 0
    %p107 = por %p105, %p106
    %s109 = sadd.s32 %s108, 1
    %p112 = scmp.eq.s32.totalorder %s11, 1
    %p113 = scmp.ne.s32.totalorder %s108, %s110
    %p114 = scmp.eq.s32.totalorder %s11, 0
    %p115 = por %p113, %p114
    %p116 = scmp.ne.s32.totalorder %s108, %s110
    %p117 = scmp.eq.s32.totalorder %s16, 1
    %p118 = por %p116, %p117
    %p119 = scmp.ne.s32.totalorder %s110, %s111
    %p120 = scmp.eq.s32.totalorder %s16, 0
    %p121 = por %p119, %p120
    %p122 = scmp.ne.s32.totalorder %s110, %s111
    %p123 = scmp.eq.s32.totalorder %s17, 1
    %p124 = por %p122, %p123
    %p126 = scmp.ne.s32.totalorder %s111, %s125
    %p127 = scmp.eq.s32.totalorder %s17, 0
    %p128 = por %p126, %p127
    %s130 = sadd.s32 %s129, 1
    %p133 = scmp.eq.s32.totalorder %s11, 1
    %p134 = scmp.ne.s32.totalorder %s129, %s131
    %p135 = scmp.eq.s32.totalorder %s11, 0
    %p136 = por %p134, %p135
    %p137 = scmp.ne.s32.totalorder %s129, %s131
    %p138 = scmp.eq.s32.totalorder %s16, 1
    %p139 = por %p137, %p138
    %p140 = scmp.ne.s32.totalorder %s131, %s132
    %p141 = scmp.eq.s32.totalorder %s16, 0
    %p142 = por %p140, %p141
    %p143 = scmp.ne.s32.totalorder %s131, %s132
    %p144 = scmp.eq.s32.totalorder %s17, 1
    %p145 = por %p143, %p144
    %p147 = scmp.ne.s32.totalorder %s132, %s146
    %p148 = scmp.eq.s32.totalorder %s17, 0
    %p149 = por %p147, %p148
    %s150 = ssub.s32 %s18, %s30
    %s151 = ssub.s32 %s19, %s26
    %s152 = sor.u32 %s150, %s151
    %p153 = scmp.eq.s32.totalorder %s152, 0
    %s155 = sadd.s32 %s154, 1
    %s156 = scalar_select %p153, %s154, %s155
    %p159 = pneg %p153
    %p160 = scmp.eq.s32.totalorder %s11, 1
    %p161 = por %p159, %p160
    %p162 = scmp.ne.s32.totalorder %s154, %s157
    %p163 = scmp.eq.s32.totalorder %s11, 0
    %p164 = por %p162, %p163
    %p165 = scmp.ne.s32.totalorder %s154, %s157
    %p166 = scmp.eq.s32.totalorder %s16, 1
    %p167 = por %p165, %p166
    %p168 = scmp.ne.s32.totalorder %s157, %s158
    %p169 = scmp.eq.s32.totalorder %s16, 0
    %p170 = por %p168, %p169
    %p171 = scmp.ne.s32.totalorder %s157, %s158
    %p172 = scmp.eq.s32.totalorder %s17, 1
    %p173 = por %p171, %p172
    %p175 = scmp.ne.s32.totalorder %s158, %s174
    %p176 = scmp.eq.s32.totalorder %s17, 0
    %p177 = por %p175, %p176
    %p178 = scmp.le.s32.totalorder 1, %s11
    %p179 = scmp.lt.s32.totalorder %s11, 3
    %p180 = pnand %p178, %p179
    %p181 = pneg %p180
    // Predicated region
    $region9: #{lama_generator_forward.41} parent=5 // pred_check
      _
    $region10: #{lama_generator_forward.41} parent=5 // pred_check_branch
      %183 = sbr.rel (%p180) target = $region12
    $region11: #{lama_generator_forward.41} parent=5 // pred_region
      %s184 = ssub.s32 %s11, 1
      // Predicated region
      $region13: #{lama_generator_forward.41} parent=11 // pred_check
        %p185 = pneg %p100
      $region14: #{lama_generator_forward.41} parent=11 // pred_check_branch
        %187 = sbr.rel (%p185) target = $region16
      $region15: #{lama_generator_forward.41} parent=11 // pred_region
        _
      $region16: #{lama_generator_forward.41} parent=11 // pred_fallthru
        _
      // Predicated region
      $region17: #{lama_generator_forward.41} parent=11 // pred_check
        %p188 = pneg %p121
      $region18: #{lama_generator_forward.41} parent=11 // pred_check_branch
        %190 = sbr.rel (%p188) target = $region20
      $region19: #{lama_generator_forward.41} parent=11 // pred_region
        _
      $region20: #{lama_generator_forward.41} parent=11 // pred_fallthru
        _
      // Predicated region
      $region21: #{lama_generator_forward.41} parent=11 // pred_check
        %p191 = pneg %p142
      $region22: #{lama_generator_forward.41} parent=11 // pred_check_branch
        %193 = sbr.rel (%p191) target = $region24
      $region23: #{lama_generator_forward.41} parent=11 // pred_region
        _
      $region24: #{lama_generator_forward.41} parent=11 // pred_fallthru
        _
    $region12: #{lama_generator_forward.41} parent=5 // pred_fallthru
      _
    %p194 = scmp.lt.s32.totalorder %s11, 2
    // Predicated region
    $region25: #{lama_generator_forward.41} parent=5 // pred_check
      %p195 = pneg %p194
    $region26: #{lama_generator_forward.41} parent=5 // pred_check_branch
      %197 = sbr.rel (%p195) target = $region28
    $region27: #{lama_generator_forward.41} parent=5 // pred_region
      // Predicated region
      $region29: #{lama_generator_forward.41} parent=27 // pred_check
        %p198 = pneg %p45
      $region30: #{lama_generator_forward.41} parent=27 // pred_check_branch
        %200 = sbr.rel (%p198) target = $region32
      $region31: #{lama_generator_forward.41} parent=27 // pred_region
        %s201 = smul.u32 5, %s19
        %p202 = scmp.lt.s32.totalorder %s18, 1
        %s203 = scalar_select %p202, %s18, 1
        %p204 = scmp.lt.s32.totalorder %s201, 4
        %s205 = scalar_select %p204, %s201, 4
        %s206 = smul.addr %s203, 5
        %s207 = sadd.s32 %s205, %s206
        %s208 = smul.addr %s207, 4
        %s209 = scalar_lea.vmem %s0, %s208
        %s210 = smul.u32 5, %s19
      $region32: #{lama_generator_forward.41} parent=27 // pred_fallthru
        _
      // Predicated region
      $region33: #{lama_generator_forward.41} parent=27 // pred_check
        %p211 = pneg %p73
      $region34: #{lama_generator_forward.41} parent=27 // pred_check_branch
        %213 = sbr.rel (%p211) target = $region36
      $region35: #{lama_generator_forward.41} parent=27 // pred_region
        %s214 = smul.u32 5, %s19
        %p215 = scmp.lt.s32.totalorder %s18, 1
        %s216 = scalar_select %p215, %s18, 1
        %p217 = scmp.lt.s32.totalorder %s214, 4
        %s218 = scalar_select %p217, %s214, 4
        %s219 = smul.addr %s216, 5
        %s220 = sadd.s32 %s218, %s219
        %s221 = smul.addr %s220, 4
        %s222 = scalar_lea.vmem %s1, %s221
        %s223 = smul.u32 5, %s19
      $region36: #{lama_generator_forward.41} parent=27 // pred_fallthru
        _
    $region28: #{lama_generator_forward.41} parent=5 // pred_fallthru
      _
    %p224 = scmp.le.s32.totalorder 1, %s11
    %p225 = scmp.lt.s32.totalorder %s11, 3
    %p226 = pnand %p224, %p225
    %p227 = pneg %p226
    // Predicated region
    $region37: #{lama_generator_forward.41} parent=5 // pred_check
      _
    $region38: #{lama_generator_forward.41} parent=5 // pred_check_branch
      %229 = sbr.rel (%p226) target = $region40
    $region39: #{lama_generator_forward.41} parent=5 // pred_region
      %s230 = ssub.s32 %s11, 1
      %s231 = smul.u32 5, %s21
      %p232 = scmp.lt.s32.totalorder %s20, 1
      %s233 = scalar_select %p232, %s20, 1
      %p234 = scmp.lt.s32.totalorder %s231, 4
      %s235 = scalar_select %p234, %s231, 4
      %s236 = smul.addr %s233, 5
      %s237 = sadd.s32 %s235, %s236
      %s238 = smul.addr %s237, 4
      %s239 = scalar_lea.vmem %s0, %s238
      %p240 = pneg %p51
      %p241 = pneg %p48
      %s242 = smul.u32 5, %s21
      %p243 = scmp.lt.s32.totalorder %s20, 1
      %s244 = scalar_select %p243, %s20, 1
      %p245 = scmp.lt.s32.totalorder %s242, 4
      %s246 = scalar_select %p245, %s242, 4
      %s247 = smul.addr %s244, 5
      %s248 = sadd.s32 %s246, %s247
      %s249 = smul.addr %s248, 4
      %s250 = scalar_lea.vmem %s1, %s249
      %p251 = pneg %p79
      %p252 = pneg %p76
      %p253 = pneg %p100
      %p254 = pneg %p97
      %p255 = pneg %p121
      %p256 = pneg %p118
      %p257 = pneg %p142
      %p258 = pneg %p139
      %p259 = pneg %p170
      %p260 = pneg %p167
      %s261 = smul.u32 5, %s21
      %p262 = scmp.lt.s32.totalorder %s20, 1
      %s263 = scalar_select %p262, %s20, 1
      %p264 = scmp.lt.s32.totalorder %s261, 4
      %s265 = scalar_select %p264, %s261, 4
      %s266 = smul.addr %s263, 5
      %s267 = sadd.s32 %s265, %s266
      %s268 = smul.addr %s267, 4
      %s269 = scalar_lea.vmem %s5, %s268
      %s270 = smul.u32 5, %s21
      %p271 = scmp.lt.s32.totalorder %s20, 1
      %s272 = scalar_select %p271, %s20, 1
      %p273 = scmp.lt.s32.totalorder %s270, 4
      %s274 = scalar_select %p273, %s270, 4
      %s275 = smul.addr %s272, 5
      %s276 = sadd.s32 %s274, %s275
      %s277 = smul.addr %s276, 4
      %s278 = scalar_lea.vmem %s0, %s277
      %s279 = smul.u32 5, %s21
      %s280 = smul.u32 5, %s21
      %p281 = scmp.lt.s32.totalorder %s20, 1
      %s282 = scalar_select %p281, %s20, 1
      %p283 = scmp.lt.s32.totalorder %s280, 4
      %s284 = scalar_select %p283, %s280, 4
      %s285 = smul.addr %s282, 5
      %s286 = sadd.s32 %s284, %s285
      %s287 = smul.addr %s286, 4
      %s288 = scalar_lea.vmem %s1, %s287
      %s289 = smul.u32 5, %s21
      %s290 = smul.u32 5, %s21
      %p291 = scmp.lt.s32.totalorder %s20, 1
      %s292 = scalar_select %p291, %s20, 1
      %p293 = scmp.lt.s32.totalorder %s290, 4
      %s294 = scalar_select %p293, %s290, 4
      %s295 = smul.addr %s292, 5
      %s296 = sadd.s32 %s294, %s295
      %s297 = smul.addr %s296, 4
      %s298 = scalar_lea.vmem %s5, %s297
      %s299 = smul.u32 5, %s21
      %v301 = vld [vmem:[%s278] sm:$0xf]
      %v302 = vld [vmem:[%s278 + $0x4] sm:$0xf]
      %v303 = vld [vmem:[%s278 + $0x8] sm:$0xf]
      %v304 = vld [vmem:[%s278 + $0xc] sm:$0xf]
      %v305 = vld [vmem:[%s278 + $0x10] sm:$0xf]
      %v306 = vld [vmem:[%s2] sm:$0xf]
      %v307 = vld [vmem:[%s2 + $0x4] sm:$0xf]
      %v308 = vld [vmem:[%s2 + $0x8] sm:$0xf]
      %v309 = vld [vmem:[%s2 + $0xc] sm:$0xf]
      %v310 = vld [vmem:[%s2 + $0x10] sm:$0xf]
      %v311 = vld [vmem:[%s2 + $0x14] sm:$0xf]
      %v312 = vld [vmem:[%s2 + $0x18] sm:$0xf]
      %v313 = vld [vmem:[%s2 + $0x1c] sm:$0xf]
      %v314 = vld [vmem:[%s288] sm:$0xf]
      %v315 = vld [vmem:[%s288 + $0x4] sm:$0xf]
      %v316 = vld [vmem:[%s288 + $0x8] sm:$0xf]
      %v317 = vld [vmem:[%s288 + $0xc] sm:$0xf]
      %v318 = vld [vmem:[%s288 + $0x10] sm:$0xf]
      %v319 = vld [vmem:[%s3] sm:$0xf]
      %v320 = vld [vmem:[%s3 + $0x4] sm:$0xf]
      %v321 = vld [vmem:[%s3 + $0x8] sm:$0xf]
      %v322 = vld [vmem:[%s3 + $0xc] sm:$0xf]
      %v323 = vld [vmem:[%s3 + $0x10] sm:$0xf]
      %v324 = vld [vmem:[%s3 + $0x14] sm:$0xf]
      %v325 = vld [vmem:[%s3 + $0x18] sm:$0xf]
      %v326 = vld [vmem:[%s3 + $0x1c] sm:$0xf]
      %v332 = vunpack.c.l.b16 %v314
      %v333 = vunpack.c.l.b16 %v315
      %v334 = vunpack.c.l.b16 %v316
      %v335 = vunpack.c.l.b16 %v317
      %v336 = vunpack.c.l.b16 %v318
      %v337 = vpack.c.b16 %v333, %v332
      %v338 = vpack.c.b16 %v335, %v334
      %v339 = vpack.c.b16 %v336, %v336
      %v348 = vunpack.c.l.b16 %v319
      %v349 = vunpack.c.l.b16 %v320
      %v350 = vunpack.c.l.b16 %v321
      %v351 = vunpack.c.l.b16 %v322
      %v352 = vunpack.c.l.b16 %v323
      %v353 = vunpack.c.l.b16 %v324
      %v354 = vunpack.c.l.b16 %v325
      %v355 = vunpack.c.l.b16 %v326
      %v356 = vpack.c.b16 %v349, %v348
      %v357 = vpack.c.b16 %v351, %v350
      %v358 = vpack.c.b16 %v353, %v352
      %v359 = vpack.c.b16 %v355, %v354
      %vm364 = vcmask 523264
      %v366 = vsel %vm364, %v337, 0
      %v369 = vsel %vm364, %v338, 0
      %v372 = vsel %vm364, %v339, 0
      %374 = vmatprep.subr.bf16.mxu0 0
      %375 = vmatpush1.bf16.msra.mxu0 0
      %376 = vmatprep.subr.bf16.mxu0 0
      %377 = vmatpush1.bf16.msra.mxu0 0
      %378 = vmatprep.subr.bf16.mxu0 0
      %379 = vmatpush1.bf16.msra.mxu0 0
      %380 = vmatprep.subr.bf16.mxu0 0
      %381 = vmatpush1.bf16.msra.mxu0 0
      %382 = vmatprep.subr.bf16.mxu0 0
      %383 = vmatpush1.bf16.msra.mxu0 %v359
      %384 = vmatprep.subr.bf16.mxu0 0
      %385 = vmatpush1.bf16.msra.mxu0 %v358
      %386 = vmatprep.subr.bf16.mxu0 0
      %387 = vmatpush1.bf16.msra.mxu0 %v357
      %388 = vmatprep.subr.bf16.mxu0 0
      %389 = vmatpush1.bf16.msra.mxu0 %v356
      %390 = vmatprep.subr.bf16.mxu0 0
      %391 = vmatpush2.bf16.msra.mxu0 0
      %392 = vmatprep.subr.bf16.mxu0 0
      %393 = vmatpush2.bf16.msra.mxu0 0
      %394 = vmatprep.subr.bf16.mxu0 0
      %395 = vmatpush2.bf16.msra.mxu0 0
      %396 = vmatprep.subr.bf16.mxu0 0
      %397 = vmatpush2.bf16.msra.mxu0 0
      %398 = vmatprep.subr.bf16.mxu0 0
      %399 = vmatpush2.bf16.msra.mxu0 0
      %400 = vmatprep.subr.bf16.mxu0 0
      %401 = vmatpush2.bf16.msra.mxu0 0
      %402 = vmatprep.subr.bf16.mxu0 0
      %403 = vmatpush2.bf16.msra.mxu0 0
      %404 = vmatprep.subr.bf16.mxu0 0
      %405 = vmatpush2.bf16.msra.mxu0 0
      %406 = vmatprep.mubr.bf16.mxu0 0
      %407 = vmatmul.mubr.bf16.gmra.mxu0 %v366
      %v408 = vpop.f32.mrf.mxu0
      %v409 = vadd.f32 0.0, %v408
      %v410 = vpop.f32.mrf.mxu0
      %v411 = vpop.f32.mrf.mxu0
      %v412 = vadd.f32 0.0, %v411
      %v413 = vpop.f32.mrf.mxu0
      %414 = vmatprep.mubr.bf16.mxu0 0
      %415 = vmatmul.mubr.bf16.gmra.mxu0 %v369
      %v416 = vpop.f32.mrf.mxu0
      %v417 = vadd.f32 0.0, %v416
      %v418 = vpop.f32.mrf.mxu0
      %v419 = vpop.f32.mrf.mxu0
      %v420 = vadd.f32 0.0, %v419
      %v421 = vpop.f32.mrf.mxu0
      %422 = vmatprep.mubr.bf16.mxu0 0
      %423 = vmatmul.mubr.bf16.gmra.mxu0 %v372
      %v424 = vpop.f32.mrf.mxu0
      %v425 = vadd.f32 0.0, %v424
      %v426 = vpop.f32.mrf.mxu0
      %v427 = vpop.f32.mrf.mxu0
      %v428 = vpop.f32.mrf.mxu0
      %429 = vdwg.mxu0
      %v435 = vunpack.c.l.b16 %v301
      %v436 = vunpack.c.l.b16 %v302
      %v437 = vunpack.c.l.b16 %v303
      %v438 = vunpack.c.l.b16 %v304
      %v439 = vunpack.c.l.b16 %v305
      %v440 = vpack.c.b16 %v436, %v435
      %v441 = vpack.c.b16 %v438, %v437
      %v442 = vpack.c.b16 %v439, %v439
      %v451 = vunpack.c.l.b16 %v306
      %v452 = vunpack.c.l.b16 %v307
      %v453 = vunpack.c.l.b16 %v308
      %v454 = vunpack.c.l.b16 %v309
      %v455 = vunpack.c.l.b16 %v310
      %v456 = vunpack.c.l.b16 %v311
      %v457 = vunpack.c.l.b16 %v312
      %v458 = vunpack.c.l.b16 %v313
      %v459 = vpack.c.b16 %v452, %v451
      %v460 = vpack.c.b16 %v454, %v453
      %v461 = vpack.c.b16 %v456, %v455
      %v462 = vpack.c.b16 %v458, %v457
      %v468 = vsel %vm364, %v440, 0
      %v471 = vsel %vm364, %v441, 0
      %v474 = vsel %vm364, %v442, 0
      %476 = vmatprep.subr.bf16.mxu0 0
      %477 = vmatpush1.bf16.msra.mxu0 0
      %478 = vmatprep.subr.bf16.mxu0 0
      %479 = vmatpush1.bf16.msra.mxu0 0
      %480 = vmatprep.subr.bf16.mxu0 0
      %481 = vmatpush1.bf16.msra.mxu0 0
      %482 = vmatprep.subr.bf16.mxu0 0
      %483 = vmatpush1.bf16.msra.mxu0 0
      %484 = vmatprep.subr.bf16.mxu0 0
      %485 = vmatpush1.bf16.msra.mxu0 %v462
      %486 = vmatprep.subr.bf16.mxu0 0
      %487 = vmatpush1.bf16.msra.mxu0 %v461
      %488 = vmatprep.subr.bf16.mxu0 0
      %489 = vmatpush1.bf16.msra.mxu0 %v460
      %490 = vmatprep.subr.bf16.mxu0 0
      %491 = vmatpush1.bf16.msra.mxu0 %v459
      %492 = vmatprep.subr.bf16.mxu0 0
      %493 = vmatpush2.bf16.msra.mxu0 0
      %494 = vmatprep.subr.bf16.mxu0 0
      %495 = vmatpush2.bf16.msra.mxu0 0
      %496 = vmatprep.subr.bf16.mxu0 0
      %497 = vmatpush2.bf16.msra.mxu0 0
      %498 = vmatprep.subr.bf16.mxu0 0
      %499 = vmatpush2.bf16.msra.mxu0 0
      %500 = vmatprep.subr.bf16.mxu0 0
      %501 = vmatpush2.bf16.msra.mxu0 0
      %502 = vmatprep.subr.bf16.mxu0 0
      %503 = vmatpush2.bf16.msra.mxu0 0
      %504 = vmatprep.subr.bf16.mxu0 0
      %505 = vmatpush2.bf16.msra.mxu0 0
      %506 = vmatprep.subr.bf16.mxu0 0
      %507 = vmatpush2.bf16.msra.mxu0 0
      %508 = vmatprep.mubr.bf16.mxu0 0
      %509 = vmatmul.mubr.bf16.gmra.mxu0 %v468
      %v510 = vpop.f32.mrf.mxu0
      %v511 = vadd.f32 %v409, %v510
      %v512 = vpop.f32.mrf.mxu0
      %v513 = vpop.f32.mrf.mxu0
      %v514 = vadd.f32 %v412, %v513
      %v515 = vpop.f32.mrf.mxu0
      %516 = vmatprep.mubr.bf16.mxu0 0
      %517 = vmatmul.mubr.bf16.gmra.mxu0 %v471
      %v518 = vpop.f32.mrf.mxu0
      %v519 = vadd.f32 %v417, %v518
      %v520 = vpop.f32.mrf.mxu0
      %v521 = vpop.f32.mrf.mxu0
      %v522 = vadd.f32 %v420, %v521
      %v523 = vpop.f32.mrf.mxu0
      %524 = vmatprep.mubr.bf16.mxu0 0
      %525 = vmatmul.mubr.bf16.gmra.mxu0 %v474
      %v526 = vpop.f32.mrf.mxu0
      %v527 = vadd.f32 %v425, %v526
      %v528 = vpop.f32.mrf.mxu0
      %v529 = vpop.f32.mrf.mxu0
      %v530 = vpop.f32.mrf.mxu0
      %531 = vdwg.mxu0
      %v532 = vld [vmem:[%s4] sm:$0x1]
      %v534 = vlaneseq
      %v535 = vshrl.u32 %v534, 7
      %v536 = vsub.s32 0, %v535
      %v537 = vrot.slane %v532, %v536
      %v539 = vadd.f32 %v511, %v537
      %v540 = vadd.f32 %v514, %v537
      %v541 = vadd.f32 %v519, %v537
      %v542 = vadd.f32 %v522, %v537
      %v543 = vadd.f32 %v527, %v537
      %v544 = vmax.f32 %v539, 0.0
      %v545 = vmax.f32 %v540, 0.0
      %v546 = vmax.f32 %v541, 0.0
      %v547 = vmax.f32 %v542, 0.0
      %v548 = vmax.f32 %v543, 0.0
      %v549 = vpack.c.bf16 %v545, %v544
      %v550 = vpack.c.bf16 %v547, %v546
      %v551 = vpack.c.bf16 %v548, %v548
      %v555 = vunpack.c.l.b16 %v549
      %v556 = vunpack.c.h.b16 %v549
      %v557 = vunpack.c.l.b16 %v550
      %v558 = vunpack.c.h.b16 %v550
      %v559 = vunpack.c.l.b16 %v551
      %v560 = vpack.c.b16 %v555, %v555
      %v561 = vpack.c.b16 %v556, %v556
      %v562 = vpack.c.b16 %v557, %v557
      %v563 = vpack.c.b16 %v558, %v558
      %v564 = vpack.c.b16 %v559, %v559
      %570 = vst [vmem:[%s298] sm:$0xf] %v560
      %571 = vst [vmem:[%s298 + $0x4] sm:$0xf] %v561
      %572 = vst [vmem:[%s298 + $0x8] sm:$0xf] %v562
      %573 = vst [vmem:[%s298 + $0xc] sm:$0xf] %v563
      %574 = vst [vmem:[%s298 + $0x10] sm:$0xf] %v564
      %s575 = smul.u32 5, %s21
      %p576 = scmp.lt.s32.totalorder %s20, 1
      %s577 = scalar_select %p576, %s20, 1
      %p578 = scmp.lt.s32.totalorder %s575, 4
      %s579 = scalar_select %p578, %s575, 4
      %s580 = smul.addr %s577, 5
      %s581 = sadd.s32 %s579, %s580
      %s582 = smul.addr %s581, 4
      %s583 = scalar_lea.vmem %s5, %s582
      // Predicated region
      $region41: #{lama_generator_forward.41} parent=39 // pred_check
        %p584 = pneg %p167
      $region42: #{lama_generator_forward.41} parent=39 // pred_check_branch
        %586 = sbr.rel (%p584) target = $region44
      $region43: #{lama_generator_forward.41} parent=39 // pred_region
        %s587 = smul.u32 5, %s21
      $region44: #{lama_generator_forward.41} parent=39 // pred_fallthru
        _
    $region40: #{lama_generator_forward.41} parent=5 // pred_fallthru
      _
    %p588 = scmp.le.s32.totalorder 2, %s11
    // Predicated region
    $region45: #{lama_generator_forward.41} parent=5 // pred_check
      %p589 = pneg %p588
    $region46: #{lama_generator_forward.41} parent=5 // pred_check_branch
      %591 = sbr.rel (%p589) target = $region48
    $region47: #{lama_generator_forward.41} parent=5 // pred_region
      %s592 = ssub.s32 %s11, 2
      // Predicated region
      $region49: #{lama_generator_forward.41} parent=47 // pred_check
        %p593 = pneg %p173
      $region50: #{lama_generator_forward.41} parent=47 // pred_check_branch
        %595 = sbr.rel (%p593) target = $region52
      $region51: #{lama_generator_forward.41} parent=47 // pred_region
        %s596 = smul.u32 5, %s23
        %p597 = scmp.lt.s32.totalorder %s22, 1
        %s598 = scalar_select %p597, %s22, 1
        %p599 = scmp.lt.s32.totalorder %s596, 4
        %s600 = scalar_select %p599, %s596, 4
        %s601 = smul.addr %s598, 5
        %s602 = sadd.s32 %s600, %s601
        %s603 = smul.addr %s602, 4
        %s604 = scalar_lea.vmem %s5, %s603
      $region52: #{lama_generator_forward.41} parent=47 // pred_fallthru
        _
    $region48: #{lama_generator_forward.41} parent=5 // pred_fallthru
      _
  $region6: #{lama_generator_forward.41} parent=0 // loop_footer
    %s15 = sadd.s32 1, %s11
  $region7: #{lama_generator_forward.41} parent=0 // loop_footer_branch
    %10 = sbr.rel target = $region3
  $region8: #{lama_generator_forward.41} parent=0 // loop_exit
    _

// kernel: lama_generator_forward.42
$region0: #{lama_generator_forward.42}
  #allocation0 [shape = 'u32[]', space=smem, size = 0x4, offset = 0x4, fixed_abs, tag = 'smem constant byte address 0x4 - core index']
  #allocation1 [shape = 'u32[144,128]{1,0:T(1,128)}', space=vmem, size = 0x12000, scoped, tag = 'internal scratch']
  %s0 = inlined_call_operand.vmem [shape: bf16[2,64,640], index: 0, kind: input, shape index: {}]
  %s1 = inlined_call_operand.vmem [shape: bf16[640,128], index: 1, kind: input, shape index: {}]
  %s2 = inlined_call_operand.vmem [shape: f32[1,128], index: 2, kind: input, shape index: {}]
  %s3 = inlined_call_operand.vmem [shape: bf16[2,64,128], index: 3, kind: input, shape index: {}]
  %s4 = inlined_call_operand.vmem [shape: bf16[2,64,128], index: 4, kind: output, shape index: {}]
  %s5 = sld [smem:[#allocation0]]
  $region49: #{lama_generator_forward.42} parent=0
    _
  %s7 = ssub.s32 1, %s5
  %s8 = scalar_select 0, %s7, %s5
  loop: start=0, step=1, limit=4
  $region2: #{lama_generator_forward.42} parent=0 // loop_pre_header
    _
  $region3: #{lama_generator_forward.42} parent=0 // loop_header
    %s10 = sphi 0, %s14
    %p11 = scmp.ge.s32.totalorder %s10, 4
    %s17 = sphi 0, %s29
    %s18 = sphi 0, %s25
    %s19 = sphi 0, %s17
    %s20 = sphi 0, %s18
    %s21 = sphi 0, %s19
    %s22 = sphi 0, %s20
    %s34 = sphi 0, %s36
    %s37 = sphi 0, %s34
    %s38 = sphi 0, %s37
    %s54 = sphi 0, %s38
    %s58 = sphi 0, %s58
    %s60 = sphi 0, %s58
    %s61 = sphi 0, %s60
    %s75 = sphi 0, %s61
    %s79 = sphi 0, %s79
    %s81 = sphi 0, %s79
    %s82 = sphi 0, %s81
    %s96 = sphi 0, %s82
    %s104 = sphi 0, %s106
    %s107 = sphi 0, %s104
    %s108 = sphi 0, %s107
    %s124 = sphi 0, %s108
    %s132 = sphi 0, %s134
    %s135 = sphi 0, %s132
    %s136 = sphi 0, %s135
    %s152 = sphi 0, %s136
  $region4: #{lama_generator_forward.42} parent=0 // loop_header_branch
    %13 = sbr.rel (%p11) target = $region8
  $region5: #{lama_generator_forward.42} parent=0 // loop_body
    %s15 = ssub.s32 %s10, 1
    %s16 = ssub.s32 %s10, 2
    %s23 = sadd.s32 1, %s18
    %p24 = scmp.ge.s32.totalorder %s23, 1
    %s25 = scalar_select %p24, 0, %s23
    %s26 = sadd.s32 1, %s17
    %s27 = scalar_select %p24, %s26, %s17
    %p28 = scmp.ge.s32.totalorder %s27, 2
    %s29 = scalar_select %p28, 0, %s27
    %s30 = ssub.s32 %s17, %s29
    %s31 = ssub.s32 %s18, %s25
    %s32 = sor.u32 %s30, %s31
    %p33 = scmp.eq.s32.totalorder %s32, 0
    %s35 = sadd.s32 %s34, 1
    %s36 = scalar_select %p33, %s34, %s35
    %p39 = pneg %p33
    %p40 = scmp.eq.s32.totalorder %s10, 1
    %p41 = por %p39, %p40
    %p42 = scmp.ne.s32.totalorder %s34, %s37
    %p43 = scmp.eq.s32.totalorder %s10, 0
    %p44 = por %p42, %p43
    %p45 = scmp.ne.s32.totalorder %s34, %s37
    %p46 = scmp.eq.s32.totalorder %s15, 1
    %p47 = por %p45, %p46
    %p48 = scmp.ne.s32.totalorder %s37, %s38
    %p49 = scmp.eq.s32.totalorder %s15, 0
    %p50 = por %p48, %p49
    %p51 = scmp.ne.s32.totalorder %s37, %s38
    %p52 = scmp.eq.s32.totalorder %s16, 1
    %p53 = por %p51, %p52
    %p55 = scmp.ne.s32.totalorder %s38, %s54
    %p56 = scmp.eq.s32.totalorder %s16, 0
    %p57 = por %p55, %p56
    %s59 = sadd.s32 %s58, 1
    %p62 = scmp.eq.s32.totalorder %s10, 1
    %p63 = scmp.ne.s32.totalorder %s58, %s60
    %p64 = scmp.eq.s32.totalorder %s10, 0
    %p65 = por %p63, %p64
    %p66 = scmp.ne.s32.totalorder %s58, %s60
    %p67 = scmp.eq.s32.totalorder %s15, 1
    %p68 = por %p66, %p67
    %p69 = scmp.ne.s32.totalorder %s60, %s61
    %p70 = scmp.eq.s32.totalorder %s15, 0
    %p71 = por %p69, %p70
    %p72 = scmp.ne.s32.totalorder %s60, %s61
    %p73 = scmp.eq.s32.totalorder %s16, 1
    %p74 = por %p72, %p73
    %p76 = scmp.ne.s32.totalorder %s61, %s75
    %p77 = scmp.eq.s32.totalorder %s16, 0
    %p78 = por %p76, %p77
    %s80 = sadd.s32 %s79, 1
    %p83 = scmp.eq.s32.totalorder %s10, 1
    %p84 = scmp.ne.s32.totalorder %s79, %s81
    %p85 = scmp.eq.s32.totalorder %s10, 0
    %p86 = por %p84, %p85
    %p87 = scmp.ne.s32.totalorder %s79, %s81
    %p88 = scmp.eq.s32.totalorder %s15, 1
    %p89 = por %p87, %p88
    %p90 = scmp.ne.s32.totalorder %s81, %s82
    %p91 = scmp.eq.s32.totalorder %s15, 0
    %p92 = por %p90, %p91
    %p93 = scmp.ne.s32.totalorder %s81, %s82
    %p94 = scmp.eq.s32.totalorder %s16, 1
    %p95 = por %p93, %p94
    %p97 = scmp.ne.s32.totalorder %s82, %s96
    %p98 = scmp.eq.s32.totalorder %s16, 0
    %p99 = por %p97, %p98
    %s100 = ssub.s32 %s17, %s29
    %s101 = ssub.s32 %s18, %s25
    %s102 = sor.u32 %s100, %s101
    %p103 = scmp.eq.s32.totalorder %s102, 0
    %s105 = sadd.s32 %s104, 1
    %s106 = scalar_select %p103, %s104, %s105
    %p109 = pneg %p103
    %p110 = scmp.eq.s32.totalorder %s10, 1
    %p111 = por %p109, %p110
    %p112 = scmp.ne.s32.totalorder %s104, %s107
    %p113 = scmp.eq.s32.totalorder %s10, 0
    %p114 = por %p112, %p113
    %p115 = scmp.ne.s32.totalorder %s104, %s107
    %p116 = scmp.eq.s32.totalorder %s15, 1
    %p117 = por %p115, %p116
    %p118 = scmp.ne.s32.totalorder %s107, %s108
    %p119 = scmp.eq.s32.totalorder %s15, 0
    %p120 = por %p118, %p119
    %p121 = scmp.ne.s32.totalorder %s107, %s108
    %p122 = scmp.eq.s32.totalorder %s16, 1
    %p123 = por %p121, %p122
    %p125 = scmp.ne.s32.totalorder %s108, %s124
    %p126 = scmp.eq.s32.totalorder %s16, 0
    %p127 = por %p125, %p126
    %s128 = ssub.s32 %s17, %s29
    %s129 = ssub.s32 %s18, %s25
    %s130 = sor.u32 %s128, %s129
    %p131 = scmp.eq.s32.totalorder %s130, 0
    %s133 = sadd.s32 %s132, 1
    %s134 = scalar_select %p131, %s132, %s133
    %p137 = pneg %p131
    %p138 = scmp.eq.s32.totalorder %s10, 1
    %p139 = por %p137, %p138
    %p140 = scmp.ne.s32.totalorder %s132, %s135
    %p141 = scmp.eq.s32.totalorder %s10, 0
    %p142 = por %p140, %p141
    %p143 = scmp.ne.s32.totalorder %s132, %s135
    %p144 = scmp.eq.s32.totalorder %s15, 1
    %p145 = por %p143, %p144
    %p146 = scmp.ne.s32.totalorder %s135, %s136
    %p147 = scmp.eq.s32.totalorder %s15, 0
    %p148 = por %p146, %p147
    %p149 = scmp.ne.s32.totalorder %s135, %s136
    %p150 = scmp.eq.s32.totalorder %s16, 1
    %p151 = por %p149, %p150
    %p153 = scmp.ne.s32.totalorder %s136, %s152
    %p154 = scmp.eq.s32.totalorder %s16, 0
    %p155 = por %p153, %p154
    %p156 = scmp.le.s32.totalorder 1, %s10
    %p157 = scmp.lt.s32.totalorder %s10, 3
    %p158 = pnand %p156, %p157
    %p159 = pneg %p158
    // Predicated region
    $region9: #{lama_generator_forward.42} parent=5 // pred_check
      _
    $region10: #{lama_generator_forward.42} parent=5 // pred_check_branch
      %161 = sbr.rel (%p158) target = $region12
    $region11: #{lama_generator_forward.42} parent=5 // pred_region
      %s162 = ssub.s32 %s10, 1
      // Predicated region
      $region13: #{lama_generator_forward.42} parent=11 // pred_check
        %p163 = pneg %p71
      $region14: #{lama_generator_forward.42} parent=11 // pred_check_branch
        %165 = sbr.rel (%p163) target = $region16
      $region15: #{lama_generator_forward.42} parent=11 // pred_region
        _
      $region16: #{lama_generator_forward.42} parent=11 // pred_fallthru
        _
      // Predicated region
      $region17: #{lama_generator_forward.42} parent=11 // pred_check
        %p166 = pneg %p92
      $region18: #{lama_generator_forward.42} parent=11 // pred_check_branch
        %168 = sbr.rel (%p166) target = $region20
      $region19: #{lama_generator_forward.42} parent=11 // pred_region
        _
      $region20: #{lama_generator_forward.42} parent=11 // pred_fallthru
        _
    $region12: #{lama_generator_forward.42} parent=5 // pred_fallthru
      _
    %p169 = scmp.lt.s32.totalorder %s10, 2
    // Predicated region
    $region21: #{lama_generator_forward.42} parent=5 // pred_check
      %p170 = pneg %p169
    $region22: #{lama_generator_forward.42} parent=5 // pred_check_branch
      %172 = sbr.rel (%p170) target = $region24
    $region23: #{lama_generator_forward.42} parent=5 // pred_region
      // Predicated region
      $region25: #{lama_generator_forward.42} parent=23 // pred_check
        %p173 = pneg %p44
      $region26: #{lama_generator_forward.42} parent=23 // pred_check_branch
        %175 = sbr.rel (%p173) target = $region28
      $region27: #{lama_generator_forward.42} parent=23 // pred_region
        %s176 = smul.u32 8, %s18
        %p177 = scmp.lt.s32.totalorder %s17, 1
        %s178 = scalar_select %p177, %s17, 1
        %p179 = scmp.lt.s32.totalorder %s176, 7
        %s180 = scalar_select %p179, %s176, 7
        %s181 = smul.addr %s180, 5
        %s182 = smul.addr %s178, 40
        %s183 = sadd.s32 %s181, %s182
        %s184 = smul.addr %s183, 4
        %s185 = scalar_lea.vmem %s0, %s184
        %s186 = smul.u32 8, %s18
      $region28: #{lama_generator_forward.42} parent=23 // pred_fallthru
        _
      // Predicated region
      $region29: #{lama_generator_forward.42} parent=23 // pred_check
        %p187 = pneg %p114
      $region30: #{lama_generator_forward.42} parent=23 // pred_check_branch
        %189 = sbr.rel (%p187) target = $region32
      $region31: #{lama_generator_forward.42} parent=23 // pred_region
        %s190 = smul.u32 8, %s18
        %p191 = scmp.lt.s32.totalorder %s17, 1
        %s192 = scalar_select %p191, %s17, 1
        %p193 = scmp.lt.s32.totalorder %s190, 7
        %s194 = scalar_select %p193, %s190, 7
        %s195 = smul.addr %s192, 8
        %s196 = sadd.s32 %s194, %s195
        %s197 = smul.addr %s196, 4
        %s198 = scalar_lea.vmem %s3, %s197
        %s199 = smul.u32 8, %s18
      $region32: #{lama_generator_forward.42} parent=23 // pred_fallthru
        _
    $region24: #{lama_generator_forward.42} parent=5 // pred_fallthru
      _
    %p200 = scmp.le.s32.totalorder 1, %s10
    %p201 = scmp.lt.s32.totalorder %s10, 3
    %p202 = pnand %p200, %p201
    %p203 = pneg %p202
    // Predicated region
    $region33: #{lama_generator_forward.42} parent=5 // pred_check
      _
    $region34: #{lama_generator_forward.42} parent=5 // pred_check_branch
      %205 = sbr.rel (%p202) target = $region36
    $region35: #{lama_generator_forward.42} parent=5 // pred_region
      %s206 = ssub.s32 %s10, 1
      %s207 = smul.u32 8, %s20
      %p208 = scmp.lt.s32.totalorder %s19, 1
      %s209 = scalar_select %p208, %s19, 1
      %p210 = scmp.lt.s32.totalorder %s207, 7
      %s211 = scalar_select %p210, %s207, 7
      %s212 = smul.addr %s211, 5
      %s213 = smul.addr %s209, 40
      %s214 = sadd.s32 %s212, %s213
      %s215 = smul.addr %s214, 4
      %s216 = scalar_lea.vmem %s0, %s215
      %p217 = pneg %p50
      %p218 = pneg %p47
      %p219 = pneg %p71
      %p220 = pneg %p68
      %p221 = pneg %p92
      %p222 = pneg %p89
      %s223 = smul.u32 8, %s20
      %p224 = scmp.lt.s32.totalorder %s19, 1
      %s225 = scalar_select %p224, %s19, 1
      %p226 = scmp.lt.s32.totalorder %s223, 7
      %s227 = scalar_select %p226, %s223, 7
      %s228 = smul.addr %s225, 8
      %s229 = sadd.s32 %s227, %s228
      %s230 = smul.addr %s229, 4
      %s231 = scalar_lea.vmem %s3, %s230
      %p232 = pneg %p120
      %p233 = pneg %p117
      %p234 = pneg %p148
      %p235 = pneg %p145
      %s236 = smul.u32 8, %s20
      %p237 = scmp.lt.s32.totalorder %s19, 1
      %s238 = scalar_select %p237, %s19, 1
      %p239 = scmp.lt.s32.totalorder %s236, 7
      %s240 = scalar_select %p239, %s236, 7
      %s241 = smul.addr %s238, 8
      %s242 = sadd.s32 %s240, %s241
      %s243 = smul.addr %s242, 4
      %s244 = scalar_lea.vmem %s4, %s243
      %s245 = smul.u32 8, %s20
      %p246 = scmp.lt.s32.totalorder %s19, 1
      %s247 = scalar_select %p246, %s19, 1
      %p248 = scmp.lt.s32.totalorder %s245, 7
      %s249 = scalar_select %p248, %s245, 7
      %s250 = smul.addr %s249, 5
      %s251 = smul.addr %s247, 40
      %s252 = sadd.s32 %s250, %s251
      %s253 = smul.addr %s252, 4
      %s254 = scalar_lea.vmem %s0, %s253
      %s255 = smul.u32 8, %s20
      %s256 = smul.u32 8, %s20
      %p257 = scmp.lt.s32.totalorder %s19, 1
      %s258 = scalar_select %p257, %s19, 1
      %p259 = scmp.lt.s32.totalorder %s256, 7
      %s260 = scalar_select %p259, %s256, 7
      %s261 = smul.addr %s258, 8
      %s262 = sadd.s32 %s260, %s261
      %s263 = smul.addr %s262, 4
      %s264 = scalar_lea.vmem %s3, %s263
      %s265 = smul.u32 8, %s20
      %s266 = smul.u32 8, %s20
      %p267 = scmp.lt.s32.totalorder %s19, 1
      %s268 = scalar_select %p267, %s19, 1
      %p269 = scmp.lt.s32.totalorder %s266, 7
      %s270 = scalar_select %p269, %s266, 7
      %s271 = smul.addr %s268, 8
      %s272 = sadd.s32 %s270, %s271
      %s273 = smul.addr %s272, 4
      %s274 = scalar_lea.vmem %s4, %s273
      %s275 = smul.u32 8, %s20
      %v277 = vld [vmem:[%s254] sm:$0xff]
      %v278 = vld [vmem:[%s254 + $0x8] sm:$0xff]
      %v279 = vld [vmem:[%s254 + $0x10] sm:$0xf]
      %v280 = vld [vmem:[%s254 + $0x14] sm:$0xff]
      %v281 = vld [vmem:[%s254 + $0x1c] sm:$0xff]
      %v282 = vld [vmem:[%s254 + $0x24] sm:$0xf]
      %v283 = vld [vmem:[%s254 + $0x28] sm:$0xff]
      %v284 = vld [vmem:[%s254 + $0x30] sm:$0xff]
      %v285 = vld [vmem:[%s254 + $0x38] sm:$0xf]
      %v286 = vld [vmem:[%s254 + $0x3c] sm:$0xff]
      %v287 = vld [vmem:[%s254 + $0x44] sm:$0xff]
      %v288 = vld [vmem:[%s254 + $0x4c] sm:$0xf]
      %v289 = vld [vmem:[%s254 + $0x50] sm:$0xff]
      %v290 = vld [vmem:[%s254 + $0x58] sm:$0xff]
      %v291 = vld [vmem:[%s254 + $0x60] sm:$0xf]
      %v292 = vld [vmem:[%s254 + $0x64] sm:$0xff]
      %v293 = vld [vmem:[%s254 + $0x6c] sm:$0xff]
      %v294 = vld [vmem:[%s254 + $0x74] sm:$0xf]
      %v295 = vld [vmem:[%s254 + $0x78] sm:$0xff]
      %v296 = vld [vmem:[%s254 + $0x80] sm:$0xff]
      %v297 = vld [vmem:[%s254 + $0x88] sm:$0xf]
      %v298 = vld [vmem:[%s254 + $0x8c] sm:$0xff]
      %v299 = vld [vmem:[%s254 + $0x94] sm:$0xff]
      %v300 = vld [vmem:[%s254 + $0x9c] sm:$0xf]
      %v301 = vld [vmem:[%s1] sm:$0xf]
      %v302 = vld [vmem:[%s1 + $0x4] sm:$0xf]
      %v303 = vld [vmem:[%s1 + $0x8] sm:$0xf]
      %v304 = vld [vmem:[%s1 + $0xc] sm:$0xf]
      %v305 = vld [vmem:[%s1 + $0x10] sm:$0xf]
      %v306 = vld [vmem:[%s1 + $0x14] sm:$0xf]
      %v307 = vld [vmem:[%s1 + $0x18] sm:$0xf]
      %v308 = vld [vmem:[%s1 + $0x1c] sm:$0xf]
      %v309 = vld [vmem:[%s1 + $0x20] sm:$0xf]
      %v310 = vld [vmem:[%s1 + $0x24] sm:$0xf]
      %v311 = vld [vmem:[%s1 + $0x28] sm:$0xf]
      %v312 = vld [vmem:[%s1 + $0x2c] sm:$0xf]
      %v313 = vld [vmem:[%s1 + $0x30] sm:$0xf]
      %v314 = vld [vmem:[%s1 + $0x34] sm:$0xf]
      %v315 = vld [vmem:[%s1 + $0x38] sm:$0xf]
      %v316 = vld [vmem:[%s1 + $0x3c] sm:$0xf]
      %v317 = vld [vmem:[%s1 + $0x40] sm:$0xf]
      %v318 = vld [vmem:[%s1 + $0x44] sm:$0xf]
      %v319 = vld [vmem:[%s1 + $0x48] sm:$0xf]
      %v320 = vld [vmem:[%s1 + $0x4c] sm:$0xf]
      %v321 = vld [vmem:[%s1 + $0x50] sm:$0xf]
      %v322 = vld [vmem:[%s1 + $0x54] sm:$0xf]
      %v323 = vld [vmem:[%s1 + $0x58] sm:$0xf]
      %v324 = vld [vmem:[%s1 + $0x5c] sm:$0xf]
      %v325 = vld [vmem:[%s1 + $0x60] sm:$0xf]
      %v326 = vld [vmem:[%s1 + $0x64] sm:$0xf]
      %v327 = vld [vmem:[%s1 + $0x68] sm:$0xf]
      %v328 = vld [vmem:[%s1 + $0x6c] sm:$0xf]
      %v329 = vld [vmem:[%s1 + $0x70] sm:$0xf]
      %v330 = vld [vmem:[%s1 + $0x74] sm:$0xf]
      %v331 = vld [vmem:[%s1 + $0x78] sm:$0xf]
      %v332 = vld [vmem:[%s1 + $0x7c] sm:$0xf]
      %v333 = vld [vmem:[%s1 + $0x80] sm:$0xf]
      %v334 = vld [vmem:[%s1 + $0x84] sm:$0xf]
      %v335 = vld [vmem:[%s1 + $0x88] sm:$0xf]
      %v336 = vld [vmem:[%s1 + $0x8c] sm:$0xf]
      %v337 = vld [vmem:[%s1 + $0x90] sm:$0xf]
      %v338 = vld [vmem:[%s1 + $0x94] sm:$0xf]
      %v339 = vld [vmem:[%s1 + $0x98] sm:$0xf]
      %v340 = vld [vmem:[%s1 + $0x9c] sm:$0xf]
      %v341 = vld [vmem:[%s1 + $0xa0] sm:$0xf]
      %v342 = vld [vmem:[%s1 + $0xa4] sm:$0xf]
      %v343 = vld [vmem:[%s1 + $0xa8] sm:$0xf]
      %v344 = vld [vmem:[%s1 + $0xac] sm:$0xf]
      %v345 = vld [vmem:[%s1 + $0xb0] sm:$0xf]
      %v346 = vld [vmem:[%s1 + $0xb4] sm:$0xf]
      %v347 = vld [vmem:[%s1 + $0xb8] sm:$0xf]
      %v348 = vld [vmem:[%s1 + $0xbc] sm:$0xf]
      %v349 = vld [vmem:[%s1 + $0xc0] sm:$0xf]
      %v350 = vld [vmem:[%s1 + $0xc4] sm:$0xf]
      %v351 = vld [vmem:[%s1 + $0xc8] sm:$0xf]
      %v352 = vld [vmem:[%s1 + $0xcc] sm:$0xf]
      %v353 = vld [vmem:[%s1 + $0xd0] sm:$0xf]
      %v354 = vld [vmem:[%s1 + $0xd4] sm:$0xf]
      %v355 = vld [vmem:[%s1 + $0xd8] sm:$0xf]
      %v356 = vld [vmem:[%s1 + $0xdc] sm:$0xf]
      %v357 = vld [vmem:[%s1 + $0xe0] sm:$0xf]
      %v358 = vld [vmem:[%s1 + $0xe4] sm:$0xf]
      %v359 = vld [vmem:[%s1 + $0xe8] sm:$0xf]
      %v360 = vld [vmem:[%s1 + $0xec] sm:$0xf]
      %v361 = vld [vmem:[%s1 + $0xf0] sm:$0xf]
      %v362 = vld [vmem:[%s1 + $0xf4] sm:$0xf]
      %v363 = vld [vmem:[%s1 + $0xf8] sm:$0xf]
      %v364 = vld [vmem:[%s1 + $0xfc] sm:$0xf]
      %v365 = vld [vmem:[%s1 + $0x100] sm:$0xf]
      %v366 = vld [vmem:[%s1 + $0x104] sm:$0xf]
      %v367 = vld [vmem:[%s1 + $0x108] sm:$0xf]
      %v368 = vld [vmem:[%s1 + $0x10c] sm:$0xf]
      %v369 = vld [vmem:[%s1 + $0x110] sm:$0xf]
      %v370 = vld [vmem:[%s1 + $0x114] sm:$0xf]
      %v371 = vld [vmem:[%s1 + $0x118] sm:$0xf]
      %v372 = vld [vmem:[%s1 + $0x11c] sm:$0xf]
      %v373 = vld [vmem:[%s1 + $0x120] sm:$0xf]
      %v374 = vld [vmem:[%s1 + $0x124] sm:$0xf]
      %v375 = vld [vmem:[%s1 + $0x128] sm:$0xf]
      %v376 = vld [vmem:[%s1 + $0x12c] sm:$0xf]
      %v377 = vld [vmem:[%s1 + $0x130] sm:$0xf]
      %v378 = vld [vmem:[%s1 + $0x134] sm:$0xf]
      %v379 = vld [vmem:[%s1 + $0x138] sm:$0xf]
      %v380 = vld [vmem:[%s1 + $0x13c] sm:$0xf]
      %v381 = vld [vmem:[%s2] sm:$0x1]
      %v383 = vlaneseq
      %v384 = vshrl.u32 %v383, 7
      %v385 = vsub.s32 0, %v384
      %v386 = vrot.slane %v381, %v385
      %v412 = vunpack.c.l.b16 %v277
      %v413 = vunpack.c.h.b16 %v277
      %v414 = vunpack.c.l.b16 %v278
      %v415 = vunpack.c.h.b16 %v278
      %v416 = vunpack.c.l.b16 %v279
      %v417 = vunpack.c.l.b16 %v280
      %v418 = vunpack.c.h.b16 %v280
      %v419 = vunpack.c.l.b16 %v281
      %v420 = vunpack.c.h.b16 %v281
      %v421 = vunpack.c.l.b16 %v282
      %v422 = vunpack.c.l.b16 %v283
      %v423 = vunpack.c.h.b16 %v283
      %v424 = vunpack.c.l.b16 %v284
      %v425 = vunpack.c.h.b16 %v284
      %v426 = vunpack.c.l.b16 %v285
      %v427 = vunpack.c.l.b16 %v286
      %v428 = vunpack.c.h.b16 %v286
      %v429 = vunpack.c.l.b16 %v287
      %v430 = vunpack.c.h.b16 %v287
      %v431 = vunpack.c.l.b16 %v288
      %v432 = vunpack.c.l.b16 %v289
      %v433 = vunpack.c.h.b16 %v289
      %v434 = vunpack.c.l.b16 %v290
      %v435 = vunpack.c.h.b16 %v290
      %v436 = vunpack.c.l.b16 %v291
      %v437 = vunpack.c.l.b16 %v292
      %v438 = vunpack.c.h.b16 %v292
      %v439 = vunpack.c.l.b16 %v293
      %v440 = vunpack.c.h.b16 %v293
      %v441 = vunpack.c.l.b16 %v294
      %v442 = vunpack.c.l.b16 %v295
      %v443 = vunpack.c.h.b16 %v295
      %v444 = vunpack.c.l.b16 %v296
      %v445 = vunpack.c.h.b16 %v296
      %v446 = vunpack.c.l.b16 %v297
      %v447 = vunpack.c.l.b16 %v298
      %v448 = vunpack.c.h.b16 %v298
      %v449 = vunpack.c.l.b16 %v299
      %v450 = vunpack.c.h.b16 %v299
      %v451 = vunpack.c.l.b16 %v300
      %v452 = vpack.c.b16 %v417, %v412
      %v453 = vpack.c.b16 %v418, %v413
      %v454 = vpack.c.b16 %v419, %v414
      %v455 = vpack.c.b16 %v420, %v415
      %v456 = vpack.c.b16 %v421, %v416
      %v457 = vpack.c.b16 %v427, %v422
      %v458 = vpack.c.b16 %v428, %v423
      %v459 = vpack.c.b16 %v429, %v424
      %v460 = vpack.c.b16 %v430, %v425
      %v461 = vpack.c.b16 %v431, %v426
      %v462 = vpack.c.b16 %v437, %v432
      %v463 = vpack.c.b16 %v438, %v433
      %v464 = vpack.c.b16 %v439, %v434
      %v465 = vpack.c.b16 %v440, %v435
      %v466 = vpack.c.b16 %v441, %v436
      %v467 = vpack.c.b16 %v447, %v442
      %v468 = vpack.c.b16 %v448, %v443
      %v469 = vpack.c.b16 %v449, %v444
      %v470 = vpack.c.b16 %v450, %v445
      %v471 = vpack.c.b16 %v451, %v446
      %v572 = vunpack.c.l.b16 %v301
      %v573 = vunpack.c.l.b16 %v302
      %v574 = vunpack.c.l.b16 %v303
      %v575 = vunpack.c.l.b16 %v304
      %v576 = vunpack.c.l.b16 %v305
      %v577 = vunpack.c.l.b16 %v306
      %v578 = vunpack.c.l.b16 %v307
      %v579 = vunpack.c.l.b16 %v308
      %v580 = vunpack.c.l.b16 %v309
      %v581 = vunpack.c.l.b16 %v310
      %v582 = vunpack.c.l.b16 %v311
      %v583 = vunpack.c.l.b16 %v312
      %v584 = vunpack.c.l.b16 %v313
      %v585 = vunpack.c.l.b16 %v314
      %v586 = vunpack.c.l.b16 %v315
      %v587 = vunpack.c.l.b16 %v316
      %v588 = vunpack.c.l.b16 %v317
      %v589 = vunpack.c.l.b16 %v318
      %v590 = vunpack.c.l.b16 %v319
      %v591 = vunpack.c.l.b16 %v320
      %v592 = vunpack.c.l.b16 %v321
      %v593 = vunpack.c.l.b16 %v322
      %v594 = vunpack.c.l.b16 %v323
      %v595 = vunpack.c.l.b16 %v324
      %v596 = vunpack.c.l.b16 %v325
      %v597 = vunpack.c.l.b16 %v326
      %v598 = vunpack.c.l.b16 %v327
      %v599 = vunpack.c.l.b16 %v328
      %v600 = vunpack.c.l.b16 %v329
      %v601 = vunpack.c.l.b16 %v330
      %v602 = vunpack.c.l.b16 %v331
      %v603 = vunpack.c.l.b16 %v332
      %v604 = vunpack.c.l.b16 %v333
      %v605 = vunpack.c.l.b16 %v334
      %v606 = vunpack.c.l.b16 %v335
      %v607 = vunpack.c.l.b16 %v336
      %v608 = vunpack.c.l.b16 %v337
      %v609 = vunpack.c.l.b16 %v338
      %v610 = vunpack.c.l.b16 %v339
      %v611 = vunpack.c.l.b16 %v340
      %v612 = vunpack.c.l.b16 %v341
      %v613 = vunpack.c.l.b16 %v342
      %v614 = vunpack.c.l.b16 %v343
      %v615 = vunpack.c.l.b16 %v344
      %v616 = vunpack.c.l.b16 %v345
      %v617 = vunpack.c.l.b16 %v346
      %v618 = vunpack.c.l.b16 %v347
      %v619 = vunpack.c.l.b16 %v348
      %v620 = vunpack.c.l.b16 %v349
      %v621 = vunpack.c.l.b16 %v350
      %v622 = vunpack.c.l.b16 %v351
      %v623 = vunpack.c.l.b16 %v352
      %v624 = vunpack.c.l.b16 %v353
      %v625 = vunpack.c.l.b16 %v354
      %v626 = vunpack.c.l.b16 %v355
      %v627 = vunpack.c.l.b16 %v356
      %v628 = vunpack.c.l.b16 %v357
      %v629 = vunpack.c.l.b16 %v358
      %v630 = vunpack.c.l.b16 %v359
      %v631 = vunpack.c.l.b16 %v360
      %v632 = vunpack.c.l.b16 %v361
      %v633 = vunpack.c.l.b16 %v362
      %v634 = vunpack.c.l.b16 %v363
      %v635 = vunpack.c.l.b16 %v364
      %v636 = vunpack.c.l.b16 %v365
      %v637 = vunpack.c.l.b16 %v366
      %v638 = vunpack.c.l.b16 %v367
      %v639 = vunpack.c.l.b16 %v368
      %v640 = vunpack.c.l.b16 %v369
      %v641 = vunpack.c.l.b16 %v370
      %v642 = vunpack.c.l.b16 %v371
      %v643 = vunpack.c.l.b16 %v372
      %v644 = vunpack.c.l.b16 %v373
      %v645 = vunpack.c.l.b16 %v374
      %v646 = vunpack.c.l.b16 %v375
      %v647 = vunpack.c.l.b16 %v376
      %v648 = vunpack.c.l.b16 %v377
      %v649 = vunpack.c.l.b16 %v378
      %v650 = vunpack.c.l.b16 %v379
      %v651 = vunpack.c.l.b16 %v380
      %v652 = vpack.c.b16 %v573, %v572
      %v653 = vpack.c.b16 %v575, %v574
      %v654 = vpack.c.b16 %v577, %v576
      %v655 = vpack.c.b16 %v579, %v578
      %v656 = vpack.c.b16 %v581, %v580
      %v657 = vpack.c.b16 %v583, %v582
      %v658 = vpack.c.b16 %v585, %v584
      %v659 = vpack.c.b16 %v587, %v586
      %v660 = vpack.c.b16 %v589, %v588
      %v661 = vpack.c.b16 %v591, %v590
      %v662 = vpack.c.b16 %v593, %v592
      %v663 = vpack.c.b16 %v595, %v594
      %v664 = vpack.c.b16 %v597, %v596
      %v665 = vpack.c.b16 %v599, %v598
      %v666 = vpack.c.b16 %v601, %v600
      %v667 = vpack.c.b16 %v603, %v602
      %v668 = vpack.c.b16 %v605, %v604
      %v669 = vpack.c.b16 %v607, %v606
      %v670 = vpack.c.b16 %v609, %v608
      %v671 = vpack.c.b16 %v611, %v610
      %v672 = vpack.c.b16 %v613, %v612
      %v673 = vpack.c.b16 %v615, %v614
      %v674 = vpack.c.b16 %v617, %v616
      %v675 = vpack.c.b16 %v619, %v618
      %v676 = vpack.c.b16 %v621, %v620
      %v677 = vpack.c.b16 %v623, %v622
      %v678 = vpack.c.b16 %v625, %v624
      %v679 = vpack.c.b16 %v627, %v626
      %v680 = vpack.c.b16 %v629, %v628
      %v681 = vpack.c.b16 %v631, %v630
      %v682 = vpack.c.b16 %v633, %v632
      %v683 = vpack.c.b16 %v635, %v634
      %v684 = vpack.c.b16 %v637, %v636
      %v685 = vpack.c.b16 %v639, %v638
      %v686 = vpack.c.b16 %v641, %v640
      %v687 = vpack.c.b16 %v643, %v642
      %v688 = vpack.c.b16 %v645, %v644
      %v689 = vpack.c.b16 %v647, %v646
      %v690 = vpack.c.b16 %v649, %v648
      %v691 = vpack.c.b16 %v651, %v650
      %732 = vmatprep.subr.bf16.mxu0 0
      %733 = vmatpush1.bf16.msra.mxu0 %v659
      %734 = vmatprep.subr.bf16.mxu0 0
      %735 = vmatpush1.bf16.msra.mxu0 %v658
      %736 = vmatprep.subr.bf16.mxu0 0
      %737 = vmatpush1.bf16.msra.mxu0 %v657
      %738 = vmatprep.subr.bf16.mxu0 0
      %739 = vmatpush1.bf16.msra.mxu0 %v656
      %740 = vmatprep.subr.bf16.mxu0 0
      %741 = vmatpush1.bf16.msra.mxu0 %v655
      %742 = vmatprep.subr.bf16.mxu0 0
      %743 = vmatpush1.bf16.msra.mxu0 %v654
      %744 = vmatprep.subr.bf16.mxu0 0
      %745 = vmatpush1.bf16.msra.mxu0 %v653
      %746 = vmatprep.subr.bf16.mxu0 0
      %747 = vmatpush1.bf16.msra.mxu0 %v652
      %748 = vmatprep.subr.bf16.mxu0 0
      %749 = vmatpush2.bf16.msra.mxu0 %v667
      %750 = vmatprep.subr.bf16.mxu0 0
      %751 = vmatpush2.bf16.msra.mxu0 %v666
      %752 = vmatprep.subr.bf16.mxu0 0
      %753 = vmatpush2.bf16.msra.mxu0 %v665
      %754 = vmatprep.subr.bf16.mxu0 0
      %755 = vmatpush2.bf16.msra.mxu0 %v664
      %756 = vmatprep.subr.bf16.mxu0 0
      %757 = vmatpush2.bf16.msra.mxu0 %v663
      %758 = vmatprep.subr.bf16.mxu0 0
      %759 = vmatpush2.bf16.msra.mxu0 %v662
      %760 = vmatprep.subr.bf16.mxu0 0
      %761 = vmatpush2.bf16.msra.mxu0 %v661
      %762 = vmatprep.subr.bf16.mxu0 0
      %763 = vmatpush2.bf16.msra.mxu0 %v660
      %764 = vmatprep.mubr.bf16.mxu0 %v453
      %765 = vmatmul.mubr.bf16.gmra.mxu0 %v452
      %v766 = vpop.f32.mrf.mxu0
      %v767 = vadd.f32 %v386, %v766
      %v768 = vpop.f32.mrf.mxu0
      %v769 = vpop.f32.mrf.mxu0
      %v770 = vadd.f32 %v386, %v769
      %v771 = vpop.f32.mrf.mxu0
      %772 = vmatprep.mubr.bf16.mxu0 %v458
      %773 = vmatmul.mubr.bf16.gmra.mxu0 %v457
      %v774 = vpop.f32.mrf.mxu0
      %v775 = vadd.f32 %v386, %v774
      %v776 = vpop.f32.mrf.mxu0
      %v777 = vpop.f32.mrf.mxu0
      %v778 = vadd.f32 %v386, %v777
      %v779 = vpop.f32.mrf.mxu0
      %780 = vmatprep.mubr.bf16.mxu0 %v463
      %781 = vmatmul.mubr.bf16.gmra.mxu0 %v462
      %v782 = vpop.f32.mrf.mxu0
      %v783 = vadd.f32 %v386, %v782
      %v784 = vpop.f32.mrf.mxu0
      %v785 = vpop.f32.mrf.mxu0
      %v786 = vadd.f32 %v386, %v785
      %v787 = vpop.f32.mrf.mxu0
      %788 = vmatprep.mubr.bf16.mxu0 %v468
      %789 = vmatmul.mubr.bf16.gmra.mxu0 %v467
      %v790 = vpop.f32.mrf.mxu0
      %v791 = vadd.f32 %v386, %v790
      %v792 = vpop.f32.mrf.mxu0
      %v793 = vpop.f32.mrf.mxu0
      %v794 = vadd.f32 %v386, %v793
      %v795 = vpop.f32.mrf.mxu0
      %796 = vdwg.mxu0
      %797 = vmatprep.subr.bf16.mxu0 0
      %798 = vmatpush1.bf16.msra.mxu0 %v675
      %799 = vmatprep.subr.bf16.mxu0 0
      %800 = vmatpush1.bf16.msra.mxu0 %v674
      %801 = vmatprep.subr.bf16.mxu0 0
      %802 = vmatpush1.bf16.msra.mxu0 %v673
      %803 = vmatprep.subr.bf16.mxu0 0
      %804 = vmatpush1.bf16.msra.mxu0 %v672
      %805 = vmatprep.subr.bf16.mxu0 0
      %806 = vmatpush1.bf16.msra.mxu0 %v671
      %807 = vmatprep.subr.bf16.mxu0 0
      %808 = vmatpush1.bf16.msra.mxu0 %v670
      %809 = vmatprep.subr.bf16.mxu0 0
      %810 = vmatpush1.bf16.msra.mxu0 %v669
      %811 = vmatprep.subr.bf16.mxu0 0
      %812 = vmatpush1.bf16.msra.mxu0 %v668
      %813 = vmatprep.subr.bf16.mxu0 0
      %814 = vmatpush2.bf16.msra.mxu0 %v683
      %815 = vmatprep.subr.bf16.mxu0 0
      %816 = vmatpush2.bf16.msra.mxu0 %v682
      %817 = vmatprep.subr.bf16.mxu0 0
      %818 = vmatpush2.bf16.msra.mxu0 %v681
      %819 = vmatprep.subr.bf16.mxu0 0
      %820 = vmatpush2.bf16.msra.mxu0 %v680
      %821 = vmatprep.subr.bf16.mxu0 0
      %822 = vmatpush2.bf16.msra.mxu0 %v679
      %823 = vmatprep.subr.bf16.mxu0 0
      %824 = vmatpush2.bf16.msra.mxu0 %v678
      %825 = vmatprep.subr.bf16.mxu0 0
      %826 = vmatpush2.bf16.msra.mxu0 %v677
      %827 = vmatprep.subr.bf16.mxu0 0
      %828 = vmatpush2.bf16.msra.mxu0 %v676
      %829 = vmatprep.mubr.bf16.mxu0 %v455
      %830 = vmatmul.mubr.bf16.gmra.mxu0 %v454
      %v831 = vpop.f32.mrf.mxu0
      %v832 = vadd.f32 %v767, %v831
      %v833 = vpop.f32.mrf.mxu0
      %v834 = vpop.f32.mrf.mxu0
      %v835 = vadd.f32 %v770, %v834
      %v836 = vpop.f32.mrf.mxu0
      %837 = vmatprep.mubr.bf16.mxu0 %v460
      %838 = vmatmul.mubr.bf16.gmra.mxu0 %v459
      %v839 = vpop.f32.mrf.mxu0
      %v840 = vadd.f32 %v775, %v839
      %v841 = vpop.f32.mrf.mxu0
      %v842 = vpop.f32.mrf.mxu0
      %v843 = vadd.f32 %v778, %v842
      %v844 = vpop.f32.mrf.mxu0
      %845 = vmatprep.mubr.bf16.mxu0 %v465
      %846 = vmatmul.mubr.bf16.gmra.mxu0 %v464
      %v847 = vpop.f32.mrf.mxu0
      %v848 = vadd.f32 %v783, %v847
      %v849 = vpop.f32.mrf.mxu0
      %v850 = vpop.f32.mrf.mxu0
      %v851 = vadd.f32 %v786, %v850
      %v852 = vpop.f32.mrf.mxu0
      %853 = vmatprep.mubr.bf16.mxu0 %v470
      %854 = vmatmul.mubr.bf16.gmra.mxu0 %v469
      %v855 = vpop.f32.mrf.mxu0
      %v856 = vadd.f32 %v791, %v855
      %v857 = vpop.f32.mrf.mxu0
      %v858 = vpop.f32.mrf.mxu0
      %v859 = vadd.f32 %v794, %v858
      %v860 = vpop.f32.mrf.mxu0
      %861 = vdwg.mxu0
      %862 = vmatprep.subr.bf16.mxu0 0
      %863 = vmatpush1.bf16.msra.mxu0 %v691
      %864 = vmatprep.subr.bf16.mxu0 0
      %865 = vmatpush1.bf16.msra.mxu0 %v690
      %866 = vmatprep.subr.bf16.mxu0 0
      %867 = vmatpush1.bf16.msra.mxu0 %v689
      %868 = vmatprep.subr.bf16.mxu0 0
      %869 = vmatpush1.bf16.msra.mxu0 %v688
      %870 = vmatprep.subr.bf16.mxu0 0
      %871 = vmatpush1.bf16.msra.mxu0 %v687
      %872 = vmatprep.subr.bf16.mxu0 0
      %873 = vmatpush1.bf16.msra.mxu0 %v686
      %874 = vmatprep.subr.bf16.mxu0 0
      %875 = vmatpush1.bf16.msra.mxu0 %v685
      %876 = vmatprep.subr.bf16.mxu0 0
      %877 = vmatpush1.bf16.msra.mxu0 %v684
      %878 = vmatprep.subr.bf16.mxu0 0
      %879 = vmatpush2.bf16.msra.mxu0 0
      %880 = vmatprep.subr.bf16.mxu0 0
      %881 = vmatpush2.bf16.msra.mxu0 0
      %882 = vmatprep.subr.bf16.mxu0 0
      %883 = vmatpush2.bf16.msra.mxu0 0
      %884 = vmatprep.subr.bf16.mxu0 0
      %885 = vmatpush2.bf16.msra.mxu0 0
      %886 = vmatprep.subr.bf16.mxu0 0
      %887 = vmatpush2.bf16.msra.mxu0 0
      %888 = vmatprep.subr.bf16.mxu0 0
      %889 = vmatpush2.bf16.msra.mxu0 0
      %890 = vmatprep.subr.bf16.mxu0 0
      %891 = vmatpush2.bf16.msra.mxu0 0
      %892 = vmatprep.subr.bf16.mxu0 0
      %893 = vmatpush2.bf16.msra.mxu0 0
      %894 = vmatprep.mubr.bf16.mxu0 0
      %895 = vmatmul.mubr.bf16.gmra.mxu0 %v456
      %v896 = vpop.f32.mrf.mxu0
      %v897 = vadd.f32 %v832, %v896
      %v898 = vpop.f32.mrf.mxu0
      %v899 = vpop.f32.mrf.mxu0
      %v900 = vadd.f32 %v835, %v899
      %v901 = vpop.f32.mrf.mxu0
      %902 = vmatprep.mubr.bf16.mxu0 0
      %903 = vmatmul.mubr.bf16.gmra.mxu0 %v461
      %v904 = vpop.f32.mrf.mxu0
      %v905 = vadd.f32 %v840, %v904
      %v906 = vpop.f32.mrf.mxu0
      %v907 = vpop.f32.mrf.mxu0
      %v908 = vadd.f32 %v843, %v907
      %v909 = vpop.f32.mrf.mxu0
      %910 = vmatprep.mubr.bf16.mxu0 0
      %911 = vmatmul.mubr.bf16.gmra.mxu0 %v466
      %v912 = vpop.f32.mrf.mxu0
      %v913 = vadd.f32 %v848, %v912
      %v914 = vpop.f32.mrf.mxu0
      %v915 = vpop.f32.mrf.mxu0
      %v916 = vadd.f32 %v851, %v915
      %v917 = vpop.f32.mrf.mxu0
      %918 = vmatprep.mubr.bf16.mxu0 0
      %919 = vmatmul.mubr.bf16.gmra.mxu0 %v471
      %v920 = vpop.f32.mrf.mxu0
      %v921 = vadd.f32 %v856, %v920
      %v922 = vpop.f32.mrf.mxu0
      %v923 = vpop.f32.mrf.mxu0
      %v924 = vadd.f32 %v859, %v923
      %v925 = vpop.f32.mrf.mxu0
      %926 = vdwg.mxu0
      %v927 = vld [vmem:[%s264] sm:$0xf]
      %v928 = vld [vmem:[%s264 + $0x4] sm:$0xf]
      %v929 = vld [vmem:[%s264 + $0x8] sm:$0xf]
      %v930 = vld [vmem:[%s264 + $0xc] sm:$0xf]
      %v931 = vld [vmem:[%s264 + $0x10] sm:$0xf]
      %v932 = vld [vmem:[%s264 + $0x14] sm:$0xf]
      %v933 = vld [vmem:[%s264 + $0x18] sm:$0xf]
      %v934 = vld [vmem:[%s264 + $0x1c] sm:$0xf]
      %v935 = vunpack.c.l.bf16 %v927
      %v936 = vunpack.c.l.bf16 %v928
      %v937 = vunpack.c.l.bf16 %v929
      %v938 = vunpack.c.l.bf16 %v930
      %v939 = vunpack.c.l.bf16 %v931
      %v940 = vunpack.c.l.bf16 %v932
      %v941 = vunpack.c.l.bf16 %v933
      %v942 = vunpack.c.l.bf16 %v934
      %v943 = vadd.f32 %v897, %v935
      %v944 = vadd.f32 %v900, %v936
      %v945 = vadd.f32 %v905, %v937
      %v946 = vadd.f32 %v908, %v938
      %v947 = vadd.f32 %v913, %v939
      %v948 = vadd.f32 %v916, %v940
      %v949 = vadd.f32 %v921, %v941
      %v950 = vadd.f32 %v924, %v942
      %v951 = vmax.f32 %v943, 0.0
      %v952 = vmax.f32 %v944, 0.0
      %v953 = vmax.f32 %v945, 0.0
      %v954 = vmax.f32 %v946, 0.0
      %v955 = vmax.f32 %v947, 0.0
      %v956 = vmax.f32 %v948, 0.0
      %v957 = vmax.f32 %v949, 0.0
      %v958 = vmax.f32 %v950, 0.0
      %v959 = vpack.c.bf16 %v952, %v951
      %v960 = vpack.c.bf16 %v954, %v953
      %v961 = vpack.c.bf16 %v956, %v955
      %v962 = vpack.c.bf16 %v958, %v957
      %v967 = vunpack.c.l.b16 %v959
      %v968 = vunpack.c.h.b16 %v959
      %v969 = vunpack.c.l.b16 %v960
      %v970 = vunpack.c.h.b16 %v960
      %v971 = vunpack.c.l.b16 %v961
      %v972 = vunpack.c.h.b16 %v961
      %v973 = vunpack.c.l.b16 %v962
      %v974 = vunpack.c.h.b16 %v962
      %v975 = vpack.c.b16 %v967, %v967
      %v976 = vpack.c.b16 %v968, %v968
      %v977 = vpack.c.b16 %v969, %v969
      %v978 = vpack.c.b16 %v970, %v970
      %v979 = vpack.c.b16 %v971, %v971
      %v980 = vpack.c.b16 %v972, %v972
      %v981 = vpack.c.b16 %v973, %v973
      %v982 = vpack.c.b16 %v974, %v974
      %991 = vst [vmem:[%s274] sm:$0xf] %v975
      %992 = vst [vmem:[%s274 + $0x4] sm:$0xf] %v976
      %993 = vst [vmem:[%s274 + $0x8] sm:$0xf] %v977
      %994 = vst [vmem:[%s274 + $0xc] sm:$0xf] %v978
      %995 = vst [vmem:[%s274 + $0x10] sm:$0xf] %v979
      %996 = vst [vmem:[%s274 + $0x14] sm:$0xf] %v980
      %997 = vst [vmem:[%s274 + $0x18] sm:$0xf] %v981
      %998 = vst [vmem:[%s274 + $0x1c] sm:$0xf] %v982
      %s999 = smul.u32 8, %s20
      %p1000 = scmp.lt.s32.totalorder %s19, 1
      %s1001 = scalar_select %p1000, %s19, 1
      %p1002 = scmp.lt.s32.totalorder %s999, 7
      %s1003 = scalar_select %p1002, %s999, 7
      %s1004 = smul.addr %s1001, 8
      %s1005 = sadd.s32 %s1003, %s1004
      %s1006 = smul.addr %s1005, 4
      %s1007 = scalar_lea.vmem %s4, %s1006
      // Predicated region
      $region37: #{lama_generator_forward.42} parent=35 // pred_check
        %p1008 = pneg %p145
      $region38: #{lama_generator_forward.42} parent=35 // pred_check_branch
        %1010 = sbr.rel (%p1008) target = $region40
      $region39: #{lama_generator_forward.42} parent=35 // pred_region
        %s1011 = smul.u32 8, %s20
      $region40: #{lama_generator_forward.42} parent=35 // pred_fallthru
        _
    $region36: #{lama_generator_forward.42} parent=5 // pred_fallthru
      _
    %p1012 = scmp.le.s32.totalorder 2, %s10
    // Predicated region
    $region41: #{lama_generator_forward.42} parent=5 // pred_check
      %p1013 = pneg %p1012
    $region42: #{lama_generator_forward.42} parent=5 // pred_check_branch
      %1015 = sbr.rel (%p1013) target = $region44
    $region43: #{lama_generator_forward.42} parent=5 // pred_region
      %s1016 = ssub.s32 %s10, 2
      // Predicated region
      $region45: #{lama_generator_forward.42} parent=43 // pred_check
        %p1017 = pneg %p151
      $region46: #{lama_generator_forward.42} parent=43 // pred_check_branch
        %1019 = sbr.rel (%p1017) target = $region48
      $region47: #{lama_generator_forward.42} parent=43 // pred_region
        %s1020 = smul.u32 8, %s22
        %p1021 = scmp.lt.s32.totalorder %s21, 1
        %s1022 = scalar_select %p1021, %s21, 1
        %p1023 = scmp.lt.s32.totalorder %s1020, 7
        %s1024 = scalar_select %p1023, %s1020, 7
        %s1025 = smul.addr %s1022, 8
        %s1026 = sadd.s32 %s1024, %s1025
        %s1027 = smul.addr %s1026, 4
        %s1028 = scalar_lea.vmem %s4, %s1027
      $region48: #{lama_generator_forward.42} parent=43 // pred_fallthru
        _
    $region44: #{lama_generator_forward.42} parent=5 // pred_fallthru
      _
  $region6: #{lama_generator_forward.42} parent=0 // loop_footer
    %s14 = sadd.s32 1, %s10
  $region7: #{lama_generator_forward.42} parent=0 // loop_footer_branch
    %9 = sbr.rel target = $region3
  $region8: #{lama_generator_forward.42} parent=0 // loop_exit
    _

// kernel: lama_generator_forward.44
$region0: #{lama_generator_forward.44}
  #allocation0 [shape = 'u32[]', space=smem, size = 0x4, offset = 0x4, fixed_abs, tag = 'smem constant byte address 0x4 - core index']
  #allocation1 [shape = 'u32[144,128]{1,0:T(1,128)}', space=vmem, size = 0x12000, scoped, tag = 'internal scratch']
  %s0 = inlined_call_operand.vmem [shape: bf16[2,64,640], index: 0, kind: input, shape index: {}]
  %s1 = inlined_call_operand.vmem [shape: bf16[640,128], index: 1, kind: input, shape index: {}]
  %s2 = inlined_call_operand.vmem [shape: f32[1,128], index: 2, kind: input, shape index: {}]
  %s3 = inlined_call_operand.vmem [shape: bf16[2,64,128], index: 3, kind: input, shape index: {}]
  %s4 = inlined_call_operand.vmem [shape: bf16[2,64,128], index: 4, kind: input, shape index: {}]
  %s5 = inlined_call_operand.vmem [shape: bf16[2,64,128], index: 5, kind: output, shape index: {}]
  %s6 = sld [smem:[#allocation0]]
  $region53: #{lama_generator_forward.44} parent=0
    _
  %s8 = ssub.s32 1, %s6
  %s9 = scalar_select 0, %s8, %s6
  loop: start=0, step=1, limit=4
  $region2: #{lama_generator_forward.44} parent=0 // loop_pre_header
    _
  $region3: #{lama_generator_forward.44} parent=0 // loop_header
    %s11 = sphi 0, %s15
    %p12 = scmp.ge.s32.totalorder %s11, 4
    %s18 = sphi 0, %s30
    %s19 = sphi 0, %s26
    %s20 = sphi 0, %s18
    %s21 = sphi 0, %s19
    %s22 = sphi 0, %s20
    %s23 = sphi 0, %s21
    %s35 = sphi 0, %s37
    %s38 = sphi 0, %s35
    %s39 = sphi 0, %s38
    %s55 = sphi 0, %s39
    %s59 = sphi 0, %s59
    %s61 = sphi 0, %s59
    %s62 = sphi 0, %s61
    %s76 = sphi 0, %s62
    %s80 = sphi 0, %s80
    %s82 = sphi 0, %s80
    %s83 = sphi 0, %s82
    %s97 = sphi 0, %s83
    %s105 = sphi 0, %s107
    %s108 = sphi 0, %s105
    %s109 = sphi 0, %s108
    %s125 = sphi 0, %s109
    %s133 = sphi 0, %s135
    %s136 = sphi 0, %s133
    %s137 = sphi 0, %s136
    %s153 = sphi 0, %s137
    %s161 = sphi 0, %s163
    %s164 = sphi 0, %s161
    %s165 = sphi 0, %s164
    %s181 = sphi 0, %s165
  $region4: #{lama_generator_forward.44} parent=0 // loop_header_branch
    %14 = sbr.rel (%p12) target = $region8
  $region5: #{lama_generator_forward.44} parent=0 // loop_body
    %s16 = ssub.s32 %s11, 1
    %s17 = ssub.s32 %s11, 2
    %s24 = sadd.s32 1, %s19
    %p25 = scmp.ge.s32.totalorder %s24, 1
    %s26 = scalar_select %p25, 0, %s24
    %s27 = sadd.s32 1, %s18
    %s28 = scalar_select %p25, %s27, %s18
    %p29 = scmp.ge.s32.totalorder %s28, 2
    %s30 = scalar_select %p29, 0, %s28
    %s31 = ssub.s32 %s18, %s30
    %s32 = ssub.s32 %s19, %s26
    %s33 = sor.u32 %s31, %s32
    %p34 = scmp.eq.s32.totalorder %s33, 0
    %s36 = sadd.s32 %s35, 1
    %s37 = scalar_select %p34, %s35, %s36
    %p40 = pneg %p34
    %p41 = scmp.eq.s32.totalorder %s11, 1
    %p42 = por %p40, %p41
    %p43 = scmp.ne.s32.totalorder %s35, %s38
    %p44 = scmp.eq.s32.totalorder %s11, 0
    %p45 = por %p43, %p44
    %p46 = scmp.ne.s32.totalorder %s35, %s38
    %p47 = scmp.eq.s32.totalorder %s16, 1
    %p48 = por %p46, %p47
    %p49 = scmp.ne.s32.totalorder %s38, %s39
    %p50 = scmp.eq.s32.totalorder %s16, 0
    %p51 = por %p49, %p50
    %p52 = scmp.ne.s32.totalorder %s38, %s39
    %p53 = scmp.eq.s32.totalorder %s17, 1
    %p54 = por %p52, %p53
    %p56 = scmp.ne.s32.totalorder %s39, %s55
    %p57 = scmp.eq.s32.totalorder %s17, 0
    %p58 = por %p56, %p57
    %s60 = sadd.s32 %s59, 1
    %p63 = scmp.eq.s32.totalorder %s11, 1
    %p64 = scmp.ne.s32.totalorder %s59, %s61
    %p65 = scmp.eq.s32.totalorder %s11, 0
    %p66 = por %p64, %p65
    %p67 = scmp.ne.s32.totalorder %s59, %s61
    %p68 = scmp.eq.s32.totalorder %s16, 1
    %p69 = por %p67, %p68
    %p70 = scmp.ne.s32.totalorder %s61, %s62
    %p71 = scmp.eq.s32.totalorder %s16, 0
    %p72 = por %p70, %p71
    %p73 = scmp.ne.s32.totalorder %s61, %s62
    %p74 = scmp.eq.s32.totalorder %s17, 1
    %p75 = por %p73, %p74
    %p77 = scmp.ne.s32.totalorder %s62, %s76
    %p78 = scmp.eq.s32.totalorder %s17, 0
    %p79 = por %p77, %p78
    %s81 = sadd.s32 %s80, 1
    %p84 = scmp.eq.s32.totalorder %s11, 1
    %p85 = scmp.ne.s32.totalorder %s80, %s82
    %p86 = scmp.eq.s32.totalorder %s11, 0
    %p87 = por %p85, %p86
    %p88 = scmp.ne.s32.totalorder %s80, %s82
    %p89 = scmp.eq.s32.totalorder %s16, 1
    %p90 = por %p88, %p89
    %p91 = scmp.ne.s32.totalorder %s82, %s83
    %p92 = scmp.eq.s32.totalorder %s16, 0
    %p93 = por %p91, %p92
    %p94 = scmp.ne.s32.totalorder %s82, %s83
    %p95 = scmp.eq.s32.totalorder %s17, 1
    %p96 = por %p94, %p95
    %p98 = scmp.ne.s32.totalorder %s83, %s97
    %p99 = scmp.eq.s32.totalorder %s17, 0
    %p100 = por %p98, %p99
    %s101 = ssub.s32 %s18, %s30
    %s102 = ssub.s32 %s19, %s26
    %s103 = sor.u32 %s101, %s102
    %p104 = scmp.eq.s32.totalorder %s103, 0
    %s106 = sadd.s32 %s105, 1
    %s107 = scalar_select %p104, %s105, %s106
    %p110 = pneg %p104
    %p111 = scmp.eq.s32.totalorder %s11, 1
    %p112 = por %p110, %p111
    %p113 = scmp.ne.s32.totalorder %s105, %s108
    %p114 = scmp.eq.s32.totalorder %s11, 0
    %p115 = por %p113, %p114
    %p116 = scmp.ne.s32.totalorder %s105, %s108
    %p117 = scmp.eq.s32.totalorder %s16, 1
    %p118 = por %p116, %p117
    %p119 = scmp.ne.s32.totalorder %s108, %s109
    %p120 = scmp.eq.s32.totalorder %s16, 0
    %p121 = por %p119, %p120
    %p122 = scmp.ne.s32.totalorder %s108, %s109
    %p123 = scmp.eq.s32.totalorder %s17, 1
    %p124 = por %p122, %p123
    %p126 = scmp.ne.s32.totalorder %s109, %s125
    %p127 = scmp.eq.s32.totalorder %s17, 0
    %p128 = por %p126, %p127
    %s129 = ssub.s32 %s18, %s30
    %s130 = ssub.s32 %s19, %s26
    %s131 = sor.u32 %s129, %s130
    %p132 = scmp.eq.s32.totalorder %s131, 0
    %s134 = sadd.s32 %s133, 1
    %s135 = scalar_select %p132, %s133, %s134
    %p138 = pneg %p132
    %p139 = scmp.eq.s32.totalorder %s11, 1
    %p140 = por %p138, %p139
    %p141 = scmp.ne.s32.totalorder %s133, %s136
    %p142 = scmp.eq.s32.totalorder %s11, 0
    %p143 = por %p141, %p142
    %p144 = scmp.ne.s32.totalorder %s133, %s136
    %p145 = scmp.eq.s32.totalorder %s16, 1
    %p146 = por %p144, %p145
    %p147 = scmp.ne.s32.totalorder %s136, %s137
    %p148 = scmp.eq.s32.totalorder %s16, 0
    %p149 = por %p147, %p148
    %p150 = scmp.ne.s32.totalorder %s136, %s137
    %p151 = scmp.eq.s32.totalorder %s17, 1
    %p152 = por %p150, %p151
    %p154 = scmp.ne.s32.totalorder %s137, %s153
    %p155 = scmp.eq.s32.totalorder %s17, 0
    %p156 = por %p154, %p155
    %s157 = ssub.s32 %s18, %s30
    %s158 = ssub.s32 %s19, %s26
    %s159 = sor.u32 %s157, %s158
    %p160 = scmp.eq.s32.totalorder %s159, 0
    %s162 = sadd.s32 %s161, 1
    %s163 = scalar_select %p160, %s161, %s162
    %p166 = pneg %p160
    %p167 = scmp.eq.s32.totalorder %s11, 1
    %p168 = por %p166, %p167
    %p169 = scmp.ne.s32.totalorder %s161, %s164
    %p170 = scmp.eq.s32.totalorder %s11, 0
    %p171 = por %p169, %p170
    %p172 = scmp.ne.s32.totalorder %s161, %s164
    %p173 = scmp.eq.s32.totalorder %s16, 1
    %p174 = por %p172, %p173
    %p175 = scmp.ne.s32.totalorder %s164, %s165
    %p176 = scmp.eq.s32.totalorder %s16, 0
    %p177 = por %p175, %p176
    %p178 = scmp.ne.s32.totalorder %s164, %s165
    %p179 = scmp.eq.s32.totalorder %s17, 1
    %p180 = por %p178, %p179
    %p182 = scmp.ne.s32.totalorder %s165, %s181
    %p183 = scmp.eq.s32.totalorder %s17, 0
    %p184 = por %p182, %p183
    %p185 = scmp.le.s32.totalorder 1, %s11
    %p186 = scmp.lt.s32.totalorder %s11, 3
    %p187 = pnand %p185, %p186
    %p188 = pneg %p187
    // Predicated region
    $region9: #{lama_generator_forward.44} parent=5 // pred_check
      _
    $region10: #{lama_generator_forward.44} parent=5 // pred_check_branch
      %190 = sbr.rel (%p187) target = $region12
    $region11: #{lama_generator_forward.44} parent=5 // pred_region
      %s191 = ssub.s32 %s11, 1
      // Predicated region
      $region13: #{lama_generator_forward.44} parent=11 // pred_check
        %p192 = pneg %p72
      $region14: #{lama_generator_forward.44} parent=11 // pred_check_branch
        %194 = sbr.rel (%p192) target = $region16
      $region15: #{lama_generator_forward.44} parent=11 // pred_region
        _
      $region16: #{lama_generator_forward.44} parent=11 // pred_fallthru
        _
      // Predicated region
      $region17: #{lama_generator_forward.44} parent=11 // pred_check
        %p195 = pneg %p93
      $region18: #{lama_generator_forward.44} parent=11 // pred_check_branch
        %197 = sbr.rel (%p195) target = $region20
      $region19: #{lama_generator_forward.44} parent=11 // pred_region
        _
      $region20: #{lama_generator_forward.44} parent=11 // pred_fallthru
        _
    $region12: #{lama_generator_forward.44} parent=5 // pred_fallthru
      _
    %p198 = scmp.lt.s32.totalorder %s11, 2
    // Predicated region
    $region21: #{lama_generator_forward.44} parent=5 // pred_check
      %p199 = pneg %p198
    $region22: #{lama_generator_forward.44} parent=5 // pred_check_branch
      %201 = sbr.rel (%p199) target = $region24
    $region23: #{lama_generator_forward.44} parent=5 // pred_region
      // Predicated region
      $region25: #{lama_generator_forward.44} parent=23 // pred_check
        %p202 = pneg %p45
      $region26: #{lama_generator_forward.44} parent=23 // pred_check_branch
        %204 = sbr.rel (%p202) target = $region28
      $region27: #{lama_generator_forward.44} parent=23 // pred_region
        %s205 = smul.u32 8, %s19
        %p206 = scmp.lt.s32.totalorder %s18, 1
        %s207 = scalar_select %p206, %s18, 1
        %p208 = scmp.lt.s32.totalorder %s205, 7
        %s209 = scalar_select %p208, %s205, 7
        %s210 = smul.addr %s209, 5
        %s211 = smul.addr %s207, 40
        %s212 = sadd.s32 %s210, %s211
        %s213 = smul.addr %s212, 4
        %s214 = scalar_lea.vmem %s0, %s213
        %s215 = smul.u32 8, %s19
      $region28: #{lama_generator_forward.44} parent=23 // pred_fallthru
        _
      // Predicated region
      $region29: #{lama_generator_forward.44} parent=23 // pred_check
        %p216 = pneg %p115
      $region30: #{lama_generator_forward.44} parent=23 // pred_check_branch
        %218 = sbr.rel (%p216) target = $region32
      $region31: #{lama_generator_forward.44} parent=23 // pred_region
        %s219 = smul.u32 8, %s19
        %p220 = scmp.lt.s32.totalorder %s18, 1
        %s221 = scalar_select %p220, %s18, 1
        %p222 = scmp.lt.s32.totalorder %s219, 7
        %s223 = scalar_select %p222, %s219, 7
        %s224 = smul.addr %s221, 8
        %s225 = sadd.s32 %s223, %s224
        %s226 = smul.addr %s225, 4
        %s227 = scalar_lea.vmem %s3, %s226
        %s228 = smul.u32 8, %s19
      $region32: #{lama_generator_forward.44} parent=23 // pred_fallthru
        _
      // Predicated region
      $region33: #{lama_generator_forward.44} parent=23 // pred_check
        %p229 = pneg %p143
      $region34: #{lama_generator_forward.44} parent=23 // pred_check_branch
        %231 = sbr.rel (%p229) target = $region36
      $region35: #{lama_generator_forward.44} parent=23 // pred_region
        %s232 = smul.u32 8, %s19
        %p233 = scmp.lt.s32.totalorder %s18, 1
        %s234 = scalar_select %p233, %s18, 1
        %p235 = scmp.lt.s32.totalorder %s232, 7
        %s236 = scalar_select %p235, %s232, 7
        %s237 = smul.addr %s234, 8
        %s238 = sadd.s32 %s236, %s237
        %s239 = smul.addr %s238, 4
        %s240 = scalar_lea.vmem %s4, %s239
        %s241 = smul.u32 8, %s19
      $region36: #{lama_generator_forward.44} parent=23 // pred_fallthru
        _
    $region24: #{lama_generator_forward.44} parent=5 // pred_fallthru
      _
    %p242 = scmp.le.s32.totalorder 1, %s11
    %p243 = scmp.lt.s32.totalorder %s11, 3
    %p244 = pnand %p242, %p243
    %p245 = pneg %p244
    // Predicated region
    $region37: #{lama_generator_forward.44} parent=5 // pred_check
      _
    $region38: #{lama_generator_forward.44} parent=5 // pred_check_branch
      %247 = sbr.rel (%p244) target = $region40
    $region39: #{lama_generator_forward.44} parent=5 // pred_region
      %s248 = ssub.s32 %s11, 1
      %s249 = smul.u32 8, %s21
      %p250 = scmp.lt.s32.totalorder %s20, 1
      %s251 = scalar_select %p250, %s20, 1
      %p252 = scmp.lt.s32.totalorder %s249, 7
      %s253 = scalar_select %p252, %s249, 7
      %s254 = smul.addr %s253, 5
      %s255 = smul.addr %s251, 40
      %s256 = sadd.s32 %s254, %s255
      %s257 = smul.addr %s256, 4
      %s258 = scalar_lea.vmem %s0, %s257
      %p259 = pneg %p51
      %p260 = pneg %p48
      %p261 = pneg %p72
      %p262 = pneg %p69
      %p263 = pneg %p93
      %p264 = pneg %p90
      %s265 = smul.u32 8, %s21
      %p266 = scmp.lt.s32.totalorder %s20, 1
      %s267 = scalar_select %p266, %s20, 1
      %p268 = scmp.lt.s32.totalorder %s265, 7
      %s269 = scalar_select %p268, %s265, 7
      %s270 = smul.addr %s267, 8
      %s271 = sadd.s32 %s269, %s270
      %s272 = smul.addr %s271, 4
      %s273 = scalar_lea.vmem %s3, %s272
      %p274 = pneg %p121
      %p275 = pneg %p118
      %s276 = smul.u32 8, %s21
      %p277 = scmp.lt.s32.totalorder %s20, 1
      %s278 = scalar_select %p277, %s20, 1
      %p279 = scmp.lt.s32.totalorder %s276, 7
      %s280 = scalar_select %p279, %s276, 7
      %s281 = smul.addr %s278, 8
      %s282 = sadd.s32 %s280, %s281
      %s283 = smul.addr %s282, 4
      %s284 = scalar_lea.vmem %s4, %s283
      %p285 = pneg %p149
      %p286 = pneg %p146
      %p287 = pneg %p177
      %p288 = pneg %p174
      %s289 = smul.u32 8, %s21
      %p290 = scmp.lt.s32.totalorder %s20, 1
      %s291 = scalar_select %p290, %s20, 1
      %p292 = scmp.lt.s32.totalorder %s289, 7
      %s293 = scalar_select %p292, %s289, 7
      %s294 = smul.addr %s291, 8
      %s295 = sadd.s32 %s293, %s294
      %s296 = smul.addr %s295, 4
      %s297 = scalar_lea.vmem %s5, %s296
      %s298 = smul.u32 8, %s21
      %p299 = scmp.lt.s32.totalorder %s20, 1
      %s300 = scalar_select %p299, %s20, 1
      %p301 = scmp.lt.s32.totalorder %s298, 7
      %s302 = scalar_select %p301, %s298, 7
      %s303 = smul.addr %s302, 5
      %s304 = smul.addr %s300, 40
      %s305 = sadd.s32 %s303, %s304
      %s306 = smul.addr %s305, 4
      %s307 = scalar_lea.vmem %s0, %s306
      %s308 = smul.u32 8, %s21
      %s309 = smul.u32 8, %s21
      %p310 = scmp.lt.s32.totalorder %s20, 1
      %s311 = scalar_select %p310, %s20, 1
      %p312 = scmp.lt.s32.totalorder %s309, 7
      %s313 = scalar_select %p312, %s309, 7
      %s314 = smul.addr %s311, 8
      %s315 = sadd.s32 %s313, %s314
      %s316 = smul.addr %s315, 4
      %s317 = scalar_lea.vmem %s3, %s316
      %s318 = smul.u32 8, %s21
      %s319 = smul.u32 8, %s21
      %p320 = scmp.lt.s32.totalorder %s20, 1
      %s321 = scalar_select %p320, %s20, 1
      %p322 = scmp.lt.s32.totalorder %s319, 7
      %s323 = scalar_select %p322, %s319, 7
      %s324 = smul.addr %s321, 8
      %s325 = sadd.s32 %s323, %s324
      %s326 = smul.addr %s325, 4
      %s327 = scalar_lea.vmem %s4, %s326
      %s328 = smul.u32 8, %s21
      %s329 = smul.u32 8, %s21
      %p330 = scmp.lt.s32.totalorder %s20, 1
      %s331 = scalar_select %p330, %s20, 1
      %p332 = scmp.lt.s32.totalorder %s329, 7
      %s333 = scalar_select %p332, %s329, 7
      %s334 = smul.addr %s331, 8
      %s335 = sadd.s32 %s333, %s334
      %s336 = smul.addr %s335, 4
      %s337 = scalar_lea.vmem %s5, %s336
      %s338 = smul.u32 8, %s21
      %v340 = vld [vmem:[%s307] sm:$0xff]
      %v341 = vld [vmem:[%s307 + $0x8] sm:$0xff]
      %v342 = vld [vmem:[%s307 + $0x10] sm:$0xf]
      %v343 = vld [vmem:[%s307 + $0x14] sm:$0xff]
      %v344 = vld [vmem:[%s307 + $0x1c] sm:$0xff]
      %v345 = vld [vmem:[%s307 + $0x24] sm:$0xf]
      %v346 = vld [vmem:[%s307 + $0x28] sm:$0xff]
      %v347 = vld [vmem:[%s307 + $0x30] sm:$0xff]
      %v348 = vld [vmem:[%s307 + $0x38] sm:$0xf]
      %v349 = vld [vmem:[%s307 + $0x3c] sm:$0xff]
      %v350 = vld [vmem:[%s307 + $0x44] sm:$0xff]
      %v351 = vld [vmem:[%s307 + $0x4c] sm:$0xf]
      %v352 = vld [vmem:[%s307 + $0x50] sm:$0xff]
      %v353 = vld [vmem:[%s307 + $0x58] sm:$0xff]
      %v354 = vld [vmem:[%s307 + $0x60] sm:$0xf]
      %v355 = vld [vmem:[%s307 + $0x64] sm:$0xff]
      %v356 = vld [vmem:[%s307 + $0x6c] sm:$0xff]
      %v357 = vld [vmem:[%s307 + $0x74] sm:$0xf]
      %v358 = vld [vmem:[%s307 + $0x78] sm:$0xff]
      %v359 = vld [vmem:[%s307 + $0x80] sm:$0xff]
      %v360 = vld [vmem:[%s307 + $0x88] sm:$0xf]
      %v361 = vld [vmem:[%s307 + $0x8c] sm:$0xff]
      %v362 = vld [vmem:[%s307 + $0x94] sm:$0xff]
      %v363 = vld [vmem:[%s307 + $0x9c] sm:$0xf]
      %v364 = vld [vmem:[%s1] sm:$0xf]
      %v365 = vld [vmem:[%s1 + $0x4] sm:$0xf]
      %v366 = vld [vmem:[%s1 + $0x8] sm:$0xf]
      %v367 = vld [vmem:[%s1 + $0xc] sm:$0xf]
      %v368 = vld [vmem:[%s1 + $0x10] sm:$0xf]
      %v369 = vld [vmem:[%s1 + $0x14] sm:$0xf]
      %v370 = vld [vmem:[%s1 + $0x18] sm:$0xf]
      %v371 = vld [vmem:[%s1 + $0x1c] sm:$0xf]
      %v372 = vld [vmem:[%s1 + $0x20] sm:$0xf]
      %v373 = vld [vmem:[%s1 + $0x24] sm:$0xf]
      %v374 = vld [vmem:[%s1 + $0x28] sm:$0xf]
      %v375 = vld [vmem:[%s1 + $0x2c] sm:$0xf]
      %v376 = vld [vmem:[%s1 + $0x30] sm:$0xf]
      %v377 = vld [vmem:[%s1 + $0x34] sm:$0xf]
      %v378 = vld [vmem:[%s1 + $0x38] sm:$0xf]
      %v379 = vld [vmem:[%s1 + $0x3c] sm:$0xf]
      %v380 = vld [vmem:[%s1 + $0x40] sm:$0xf]
      %v381 = vld [vmem:[%s1 + $0x44] sm:$0xf]
      %v382 = vld [vmem:[%s1 + $0x48] sm:$0xf]
      %v383 = vld [vmem:[%s1 + $0x4c] sm:$0xf]
      %v384 = vld [vmem:[%s1 + $0x50] sm:$0xf]
      %v385 = vld [vmem:[%s1 + $0x54] sm:$0xf]
      %v386 = vld [vmem:[%s1 + $0x58] sm:$0xf]
      %v387 = vld [vmem:[%s1 + $0x5c] sm:$0xf]
      %v388 = vld [vmem:[%s1 + $0x60] sm:$0xf]
      %v389 = vld [vmem:[%s1 + $0x64] sm:$0xf]
      %v390 = vld [vmem:[%s1 + $0x68] sm:$0xf]
      %v391 = vld [vmem:[%s1 + $0x6c] sm:$0xf]
      %v392 = vld [vmem:[%s1 + $0x70] sm:$0xf]
      %v393 = vld [vmem:[%s1 + $0x74] sm:$0xf]
      %v394 = vld [vmem:[%s1 + $0x78] sm:$0xf]
      %v395 = vld [vmem:[%s1 + $0x7c] sm:$0xf]
      %v396 = vld [vmem:[%s1 + $0x80] sm:$0xf]
      %v397 = vld [vmem:[%s1 + $0x84] sm:$0xf]
      %v398 = vld [vmem:[%s1 + $0x88] sm:$0xf]
      %v399 = vld [vmem:[%s1 + $0x8c] sm:$0xf]
      %v400 = vld [vmem:[%s1 + $0x90] sm:$0xf]
      %v401 = vld [vmem:[%s1 + $0x94] sm:$0xf]
      %v402 = vld [vmem:[%s1 + $0x98] sm:$0xf]
      %v403 = vld [vmem:[%s1 + $0x9c] sm:$0xf]
      %v404 = vld [vmem:[%s1 + $0xa0] sm:$0xf]
      %v405 = vld [vmem:[%s1 + $0xa4] sm:$0xf]
      %v406 = vld [vmem:[%s1 + $0xa8] sm:$0xf]
      %v407 = vld [vmem:[%s1 + $0xac] sm:$0xf]
      %v408 = vld [vmem:[%s1 + $0xb0] sm:$0xf]
      %v409 = vld [vmem:[%s1 + $0xb4] sm:$0xf]
      %v410 = vld [vmem:[%s1 + $0xb8] sm:$0xf]
      %v411 = vld [vmem:[%s1 + $0xbc] sm:$0xf]
      %v412 = vld [vmem:[%s1 + $0xc0] sm:$0xf]
      %v413 = vld [vmem:[%s1 + $0xc4] sm:$0xf]
      %v414 = vld [vmem:[%s1 + $0xc8] sm:$0xf]
      %v415 = vld [vmem:[%s1 + $0xcc] sm:$0xf]
      %v416 = vld [vmem:[%s1 + $0xd0] sm:$0xf]
      %v417 = vld [vmem:[%s1 + $0xd4] sm:$0xf]
      %v418 = vld [vmem:[%s1 + $0xd8] sm:$0xf]
      %v419 = vld [vmem:[%s1 + $0xdc] sm:$0xf]
      %v420 = vld [vmem:[%s1 + $0xe0] sm:$0xf]
      %v421 = vld [vmem:[%s1 + $0xe4] sm:$0xf]
      %v422 = vld [vmem:[%s1 + $0xe8] sm:$0xf]
      %v423 = vld [vmem:[%s1 + $0xec] sm:$0xf]
      %v424 = vld [vmem:[%s1 + $0xf0] sm:$0xf]
      %v425 = vld [vmem:[%s1 + $0xf4] sm:$0xf]
      %v426 = vld [vmem:[%s1 + $0xf8] sm:$0xf]
      %v427 = vld [vmem:[%s1 + $0xfc] sm:$0xf]
      %v428 = vld [vmem:[%s1 + $0x100] sm:$0xf]
      %v429 = vld [vmem:[%s1 + $0x104] sm:$0xf]
      %v430 = vld [vmem:[%s1 + $0x108] sm:$0xf]
      %v431 = vld [vmem:[%s1 + $0x10c] sm:$0xf]
      %v432 = vld [vmem:[%s1 + $0x110] sm:$0xf]
      %v433 = vld [vmem:[%s1 + $0x114] sm:$0xf]
      %v434 = vld [vmem:[%s1 + $0x118] sm:$0xf]
      %v435 = vld [vmem:[%s1 + $0x11c] sm:$0xf]
      %v436 = vld [vmem:[%s1 + $0x120] sm:$0xf]
      %v437 = vld [vmem:[%s1 + $0x124] sm:$0xf]
      %v438 = vld [vmem:[%s1 + $0x128] sm:$0xf]
      %v439 = vld [vmem:[%s1 + $0x12c] sm:$0xf]
      %v440 = vld [vmem:[%s1 + $0x130] sm:$0xf]
      %v441 = vld [vmem:[%s1 + $0x134] sm:$0xf]
      %v442 = vld [vmem:[%s1 + $0x138] sm:$0xf]
      %v443 = vld [vmem:[%s1 + $0x13c] sm:$0xf]
      %v444 = vld [vmem:[%s2] sm:$0x1]
      %v446 = vlaneseq
      %v447 = vshrl.u32 %v446, 7
      %v448 = vsub.s32 0, %v447
      %v449 = vrot.slane %v444, %v448
      %v475 = vunpack.c.l.b16 %v340
      %v476 = vunpack.c.h.b16 %v340
      %v477 = vunpack.c.l.b16 %v341
      %v478 = vunpack.c.h.b16 %v341
      %v479 = vunpack.c.l.b16 %v342
      %v480 = vunpack.c.l.b16 %v343
      %v481 = vunpack.c.h.b16 %v343
      %v482 = vunpack.c.l.b16 %v344
      %v483 = vunpack.c.h.b16 %v344
      %v484 = vunpack.c.l.b16 %v345
      %v485 = vunpack.c.l.b16 %v346
      %v486 = vunpack.c.h.b16 %v346
      %v487 = vunpack.c.l.b16 %v347
      %v488 = vunpack.c.h.b16 %v347
      %v489 = vunpack.c.l.b16 %v348
      %v490 = vunpack.c.l.b16 %v349
      %v491 = vunpack.c.h.b16 %v349
      %v492 = vunpack.c.l.b16 %v350
      %v493 = vunpack.c.h.b16 %v350
      %v494 = vunpack.c.l.b16 %v351
      %v495 = vunpack.c.l.b16 %v352
      %v496 = vunpack.c.h.b16 %v352
      %v497 = vunpack.c.l.b16 %v353
      %v498 = vunpack.c.h.b16 %v353
      %v499 = vunpack.c.l.b16 %v354
      %v500 = vunpack.c.l.b16 %v355
      %v501 = vunpack.c.h.b16 %v355
      %v502 = vunpack.c.l.b16 %v356
      %v503 = vunpack.c.h.b16 %v356
      %v504 = vunpack.c.l.b16 %v357
      %v505 = vunpack.c.l.b16 %v358
      %v506 = vunpack.c.h.b16 %v358
      %v507 = vunpack.c.l.b16 %v359
      %v508 = vunpack.c.h.b16 %v359
      %v509 = vunpack.c.l.b16 %v360
      %v510 = vunpack.c.l.b16 %v361
      %v511 = vunpack.c.h.b16 %v361
      %v512 = vunpack.c.l.b16 %v362
      %v513 = vunpack.c.h.b16 %v362
      %v514 = vunpack.c.l.b16 %v363
      %v515 = vpack.c.b16 %v480, %v475
      %v516 = vpack.c.b16 %v481, %v476
      %v517 = vpack.c.b16 %v482, %v477
      %v518 = vpack.c.b16 %v483, %v478
      %v519 = vpack.c.b16 %v484, %v479
      %v520 = vpack.c.b16 %v490, %v485
      %v521 = vpack.c.b16 %v491, %v486
      %v522 = vpack.c.b16 %v492, %v487
      %v523 = vpack.c.b16 %v493, %v488
      %v524 = vpack.c.b16 %v494, %v489
      %v525 = vpack.c.b16 %v500, %v495
      %v526 = vpack.c.b16 %v501, %v496
      %v527 = vpack.c.b16 %v502, %v497
      %v528 = vpack.c.b16 %v503, %v498
      %v529 = vpack.c.b16 %v504, %v499
      %v530 = vpack.c.b16 %v510, %v505
      %v531 = vpack.c.b16 %v511, %v506
      %v532 = vpack.c.b16 %v512, %v507
      %v533 = vpack.c.b16 %v513, %v508
      %v534 = vpack.c.b16 %v514, %v509
      %v635 = vunpack.c.l.b16 %v364
      %v636 = vunpack.c.l.b16 %v365
      %v637 = vunpack.c.l.b16 %v366
      %v638 = vunpack.c.l.b16 %v367
      %v639 = vunpack.c.l.b16 %v368
      %v640 = vunpack.c.l.b16 %v369
      %v641 = vunpack.c.l.b16 %v370
      %v642 = vunpack.c.l.b16 %v371
      %v643 = vunpack.c.l.b16 %v372
      %v644 = vunpack.c.l.b16 %v373
      %v645 = vunpack.c.l.b16 %v374
      %v646 = vunpack.c.l.b16 %v375
      %v647 = vunpack.c.l.b16 %v376
      %v648 = vunpack.c.l.b16 %v377
      %v649 = vunpack.c.l.b16 %v378
      %v650 = vunpack.c.l.b16 %v379
      %v651 = vunpack.c.l.b16 %v380
      %v652 = vunpack.c.l.b16 %v381
      %v653 = vunpack.c.l.b16 %v382
      %v654 = vunpack.c.l.b16 %v383
      %v655 = vunpack.c.l.b16 %v384
      %v656 = vunpack.c.l.b16 %v385
      %v657 = vunpack.c.l.b16 %v386
      %v658 = vunpack.c.l.b16 %v387
      %v659 = vunpack.c.l.b16 %v388
      %v660 = vunpack.c.l.b16 %v389
      %v661 = vunpack.c.l.b16 %v390
      %v662 = vunpack.c.l.b16 %v391
      %v663 = vunpack.c.l.b16 %v392
      %v664 = vunpack.c.l.b16 %v393
      %v665 = vunpack.c.l.b16 %v394
      %v666 = vunpack.c.l.b16 %v395
      %v667 = vunpack.c.l.b16 %v396
      %v668 = vunpack.c.l.b16 %v397
      %v669 = vunpack.c.l.b16 %v398
      %v670 = vunpack.c.l.b16 %v399
      %v671 = vunpack.c.l.b16 %v400
      %v672 = vunpack.c.l.b16 %v401
      %v673 = vunpack.c.l.b16 %v402
      %v674 = vunpack.c.l.b16 %v403
      %v675 = vunpack.c.l.b16 %v404
      %v676 = vunpack.c.l.b16 %v405
      %v677 = vunpack.c.l.b16 %v406
      %v678 = vunpack.c.l.b16 %v407
      %v679 = vunpack.c.l.b16 %v408
      %v680 = vunpack.c.l.b16 %v409
      %v681 = vunpack.c.l.b16 %v410
      %v682 = vunpack.c.l.b16 %v411
      %v683 = vunpack.c.l.b16 %v412
      %v684 = vunpack.c.l.b16 %v413
      %v685 = vunpack.c.l.b16 %v414
      %v686 = vunpack.c.l.b16 %v415
      %v687 = vunpack.c.l.b16 %v416
      %v688 = vunpack.c.l.b16 %v417
      %v689 = vunpack.c.l.b16 %v418
      %v690 = vunpack.c.l.b16 %v419
      %v691 = vunpack.c.l.b16 %v420
      %v692 = vunpack.c.l.b16 %v421
      %v693 = vunpack.c.l.b16 %v422
      %v694 = vunpack.c.l.b16 %v423
      %v695 = vunpack.c.l.b16 %v424
      %v696 = vunpack.c.l.b16 %v425
      %v697 = vunpack.c.l.b16 %v426
      %v698 = vunpack.c.l.b16 %v427
      %v699 = vunpack.c.l.b16 %v428
      %v700 = vunpack.c.l.b16 %v429
      %v701 = vunpack.c.l.b16 %v430
      %v702 = vunpack.c.l.b16 %v431
      %v703 = vunpack.c.l.b16 %v432
      %v704 = vunpack.c.l.b16 %v433
      %v705 = vunpack.c.l.b16 %v434
      %v706 = vunpack.c.l.b16 %v435
      %v707 = vunpack.c.l.b16 %v436
      %v708 = vunpack.c.l.b16 %v437
      %v709 = vunpack.c.l.b16 %v438
      %v710 = vunpack.c.l.b16 %v439
      %v711 = vunpack.c.l.b16 %v440
      %v712 = vunpack.c.l.b16 %v441
      %v713 = vunpack.c.l.b16 %v442
      %v714 = vunpack.c.l.b16 %v443
      %v715 = vpack.c.b16 %v636, %v635
      %v716 = vpack.c.b16 %v638, %v637
      %v717 = vpack.c.b16 %v640, %v639
      %v718 = vpack.c.b16 %v642, %v641
      %v719 = vpack.c.b16 %v644, %v643
      %v720 = vpack.c.b16 %v646, %v645
      %v721 = vpack.c.b16 %v648, %v647
      %v722 = vpack.c.b16 %v650, %v649
      %v723 = vpack.c.b16 %v652, %v651
      %v724 = vpack.c.b16 %v654, %v653
      %v725 = vpack.c.b16 %v656, %v655
      %v726 = vpack.c.b16 %v658, %v657
      %v727 = vpack.c.b16 %v660, %v659
      %v728 = vpack.c.b16 %v662, %v661
      %v729 = vpack.c.b16 %v664, %v663
      %v730 = vpack.c.b16 %v666, %v665
      %v731 = vpack.c.b16 %v668, %v667
      %v732 = vpack.c.b16 %v670, %v669
      %v733 = vpack.c.b16 %v672, %v671
      %v734 = vpack.c.b16 %v674, %v673
      %v735 = vpack.c.b16 %v676, %v675
      %v736 = vpack.c.b16 %v678, %v677
      %v737 = vpack.c.b16 %v680, %v679
      %v738 = vpack.c.b16 %v682, %v681
      %v739 = vpack.c.b16 %v684, %v683
      %v740 = vpack.c.b16 %v686, %v685
      %v741 = vpack.c.b16 %v688, %v687
      %v742 = vpack.c.b16 %v690, %v689
      %v743 = vpack.c.b16 %v692, %v691
      %v744 = vpack.c.b16 %v694, %v693
      %v745 = vpack.c.b16 %v696, %v695
      %v746 = vpack.c.b16 %v698, %v697
      %v747 = vpack.c.b16 %v700, %v699
      %v748 = vpack.c.b16 %v702, %v701
      %v749 = vpack.c.b16 %v704, %v703
      %v750 = vpack.c.b16 %v706, %v705
      %v751 = vpack.c.b16 %v708, %v707
      %v752 = vpack.c.b16 %v710, %v709
      %v753 = vpack.c.b16 %v712, %v711
      %v754 = vpack.c.b16 %v714, %v713
      %795 = vmatprep.subr.bf16.mxu0 0
      %796 = vmatpush1.bf16.msra.mxu0 %v722
      %797 = vmatprep.subr.bf16.mxu0 0
      %798 = vmatpush1.bf16.msra.mxu0 %v721
      %799 = vmatprep.subr.bf16.mxu0 0
      %800 = vmatpush1.bf16.msra.mxu0 %v720
      %801 = vmatprep.subr.bf16.mxu0 0
      %802 = vmatpush1.bf16.msra.mxu0 %v719
      %803 = vmatprep.subr.bf16.mxu0 0
      %804 = vmatpush1.bf16.msra.mxu0 %v718
      %805 = vmatprep.subr.bf16.mxu0 0
      %806 = vmatpush1.bf16.msra.mxu0 %v717
      %807 = vmatprep.subr.bf16.mxu0 0
      %808 = vmatpush1.bf16.msra.mxu0 %v716
      %809 = vmatprep.subr.bf16.mxu0 0
      %810 = vmatpush1.bf16.msra.mxu0 %v715
      %811 = vmatprep.subr.bf16.mxu0 0
      %812 = vmatpush2.bf16.msra.mxu0 %v730
      %813 = vmatprep.subr.bf16.mxu0 0
      %814 = vmatpush2.bf16.msra.mxu0 %v729
      %815 = vmatprep.subr.bf16.mxu0 0
      %816 = vmatpush2.bf16.msra.mxu0 %v728
      %817 = vmatprep.subr.bf16.mxu0 0
      %818 = vmatpush2.bf16.msra.mxu0 %v727
      %819 = vmatprep.subr.bf16.mxu0 0
      %820 = vmatpush2.bf16.msra.mxu0 %v726
      %821 = vmatprep.subr.bf16.mxu0 0
      %822 = vmatpush2.bf16.msra.mxu0 %v725
      %823 = vmatprep.subr.bf16.mxu0 0
      %824 = vmatpush2.bf16.msra.mxu0 %v724
      %825 = vmatprep.subr.bf16.mxu0 0
      %826 = vmatpush2.bf16.msra.mxu0 %v723
      %827 = vmatprep.mubr.bf16.mxu0 %v516
      %828 = vmatmul.mubr.bf16.gmra.mxu0 %v515
      %v829 = vpop.f32.mrf.mxu0
      %v830 = vadd.f32 %v449, %v829
      %v831 = vpop.f32.mrf.mxu0
      %v832 = vpop.f32.mrf.mxu0
      %v833 = vadd.f32 %v449, %v832
      %v834 = vpop.f32.mrf.mxu0
      %835 = vmatprep.mubr.bf16.mxu0 %v521
      %836 = vmatmul.mubr.bf16.gmra.mxu0 %v520
      %v837 = vpop.f32.mrf.mxu0
      %v838 = vadd.f32 %v449, %v837
      %v839 = vpop.f32.mrf.mxu0
      %v840 = vpop.f32.mrf.mxu0
      %v841 = vadd.f32 %v449, %v840
      %v842 = vpop.f32.mrf.mxu0
      %843 = vmatprep.mubr.bf16.mxu0 %v526
      %844 = vmatmul.mubr.bf16.gmra.mxu0 %v525
      %v845 = vpop.f32.mrf.mxu0
      %v846 = vadd.f32 %v449, %v845
      %v847 = vpop.f32.mrf.mxu0
      %v848 = vpop.f32.mrf.mxu0
      %v849 = vadd.f32 %v449, %v848
      %v850 = vpop.f32.mrf.mxu0
      %851 = vmatprep.mubr.bf16.mxu0 %v531
      %852 = vmatmul.mubr.bf16.gmra.mxu0 %v530
      %v853 = vpop.f32.mrf.mxu0
      %v854 = vadd.f32 %v449, %v853
      %v855 = vpop.f32.mrf.mxu0
      %v856 = vpop.f32.mrf.mxu0
      %v857 = vadd.f32 %v449, %v856
      %v858 = vpop.f32.mrf.mxu0
      %859 = vdwg.mxu0
      %860 = vmatprep.subr.bf16.mxu0 0
      %861 = vmatpush1.bf16.msra.mxu0 %v738
      %862 = vmatprep.subr.bf16.mxu0 0
      %863 = vmatpush1.bf16.msra.mxu0 %v737
      %864 = vmatprep.subr.bf16.mxu0 0
      %865 = vmatpush1.bf16.msra.mxu0 %v736
      %866 = vmatprep.subr.bf16.mxu0 0
      %867 = vmatpush1.bf16.msra.mxu0 %v735
      %868 = vmatprep.subr.bf16.mxu0 0
      %869 = vmatpush1.bf16.msra.mxu0 %v734
      %870 = vmatprep.subr.bf16.mxu0 0
      %871 = vmatpush1.bf16.msra.mxu0 %v733
      %872 = vmatprep.subr.bf16.mxu0 0
      %873 = vmatpush1.bf16.msra.mxu0 %v732
      %874 = vmatprep.subr.bf16.mxu0 0
      %875 = vmatpush1.bf16.msra.mxu0 %v731
      %876 = vmatprep.subr.bf16.mxu0 0
      %877 = vmatpush2.bf16.msra.mxu0 %v746
      %878 = vmatprep.subr.bf16.mxu0 0
      %879 = vmatpush2.bf16.msra.mxu0 %v745
      %880 = vmatprep.subr.bf16.mxu0 0
      %881 = vmatpush2.bf16.msra.mxu0 %v744
      %882 = vmatprep.subr.bf16.mxu0 0
      %883 = vmatpush2.bf16.msra.mxu0 %v743
      %884 = vmatprep.subr.bf16.mxu0 0
      %885 = vmatpush2.bf16.msra.mxu0 %v742
      %886 = vmatprep.subr.bf16.mxu0 0
      %887 = vmatpush2.bf16.msra.mxu0 %v741
      %888 = vmatprep.subr.bf16.mxu0 0
      %889 = vmatpush2.bf16.msra.mxu0 %v740
      %890 = vmatprep.subr.bf16.mxu0 0
      %891 = vmatpush2.bf16.msra.mxu0 %v739
      %892 = vmatprep.mubr.bf16.mxu0 %v518
      %893 = vmatmul.mubr.bf16.gmra.mxu0 %v517
      %v894 = vpop.f32.mrf.mxu0
      %v895 = vadd.f32 %v830, %v894
      %v896 = vpop.f32.mrf.mxu0
      %v897 = vpop.f32.mrf.mxu0
      %v898 = vadd.f32 %v833, %v897
      %v899 = vpop.f32.mrf.mxu0
      %900 = vmatprep.mubr.bf16.mxu0 %v523
      %901 = vmatmul.mubr.bf16.gmra.mxu0 %v522
      %v902 = vpop.f32.mrf.mxu0
      %v903 = vadd.f32 %v838, %v902
      %v904 = vpop.f32.mrf.mxu0
      %v905 = vpop.f32.mrf.mxu0
      %v906 = vadd.f32 %v841, %v905
      %v907 = vpop.f32.mrf.mxu0
      %908 = vmatprep.mubr.bf16.mxu0 %v528
      %909 = vmatmul.mubr.bf16.gmra.mxu0 %v527
      %v910 = vpop.f32.mrf.mxu0
      %v911 = vadd.f32 %v846, %v910
      %v912 = vpop.f32.mrf.mxu0
      %v913 = vpop.f32.mrf.mxu0
      %v914 = vadd.f32 %v849, %v913
      %v915 = vpop.f32.mrf.mxu0
      %916 = vmatprep.mubr.bf16.mxu0 %v533
      %917 = vmatmul.mubr.bf16.gmra.mxu0 %v532
      %v918 = vpop.f32.mrf.mxu0
      %v919 = vadd.f32 %v854, %v918
      %v920 = vpop.f32.mrf.mxu0
      %v921 = vpop.f32.mrf.mxu0
      %v922 = vadd.f32 %v857, %v921
      %v923 = vpop.f32.mrf.mxu0
      %924 = vdwg.mxu0
      %925 = vmatprep.subr.bf16.mxu0 0
      %926 = vmatpush1.bf16.msra.mxu0 %v754
      %927 = vmatprep.subr.bf16.mxu0 0
      %928 = vmatpush1.bf16.msra.mxu0 %v753
      %929 = vmatprep.subr.bf16.mxu0 0
      %930 = vmatpush1.bf16.msra.mxu0 %v752
      %931 = vmatprep.subr.bf16.mxu0 0
      %932 = vmatpush1.bf16.msra.mxu0 %v751
      %933 = vmatprep.subr.bf16.mxu0 0
      %934 = vmatpush1.bf16.msra.mxu0 %v750
      %935 = vmatprep.subr.bf16.mxu0 0
      %936 = vmatpush1.bf16.msra.mxu0 %v749
      %937 = vmatprep.subr.bf16.mxu0 0
      %938 = vmatpush1.bf16.msra.mxu0 %v748
      %939 = vmatprep.subr.bf16.mxu0 0
      %940 = vmatpush1.bf16.msra.mxu0 %v747
      %941 = vmatprep.subr.bf16.mxu0 0
      %942 = vmatpush2.bf16.msra.mxu0 0
      %943 = vmatprep.subr.bf16.mxu0 0
      %944 = vmatpush2.bf16.msra.mxu0 0
      %945 = vmatprep.subr.bf16.mxu0 0
      %946 = vmatpush2.bf16.msra.mxu0 0
      %947 = vmatprep.subr.bf16.mxu0 0
      %948 = vmatpush2.bf16.msra.mxu0 0
      %949 = vmatprep.subr.bf16.mxu0 0
      %950 = vmatpush2.bf16.msra.mxu0 0
      %951 = vmatprep.subr.bf16.mxu0 0
      %952 = vmatpush2.bf16.msra.mxu0 0
      %953 = vmatprep.subr.bf16.mxu0 0
      %954 = vmatpush2.bf16.msra.mxu0 0
      %955 = vmatprep.subr.bf16.mxu0 0
      %956 = vmatpush2.bf16.msra.mxu0 0
      %957 = vmatprep.mubr.bf16.mxu0 0
      %958 = vmatmul.mubr.bf16.gmra.mxu0 %v519
      %v959 = vpop.f32.mrf.mxu0
      %v960 = vadd.f32 %v895, %v959
      %v961 = vpop.f32.mrf.mxu0
      %v962 = vpop.f32.mrf.mxu0
      %v963 = vadd.f32 %v898, %v962
      %v964 = vpop.f32.mrf.mxu0
      %965 = vmatprep.mubr.bf16.mxu0 0
      %966 = vmatmul.mubr.bf16.gmra.mxu0 %v524
      %v967 = vpop.f32.mrf.mxu0
      %v968 = vadd.f32 %v903, %v967
      %v969 = vpop.f32.mrf.mxu0
      %v970 = vpop.f32.mrf.mxu0
      %v971 = vadd.f32 %v906, %v970
      %v972 = vpop.f32.mrf.mxu0
      %973 = vmatprep.mubr.bf16.mxu0 0
      %974 = vmatmul.mubr.bf16.gmra.mxu0 %v529
      %v975 = vpop.f32.mrf.mxu0
      %v976 = vadd.f32 %v911, %v975
      %v977 = vpop.f32.mrf.mxu0
      %v978 = vpop.f32.mrf.mxu0
      %v979 = vadd.f32 %v914, %v978
      %v980 = vpop.f32.mrf.mxu0
      %981 = vmatprep.mubr.bf16.mxu0 0
      %982 = vmatmul.mubr.bf16.gmra.mxu0 %v534
      %v983 = vpop.f32.mrf.mxu0
      %v984 = vadd.f32 %v919, %v983
      %v985 = vpop.f32.mrf.mxu0
      %v986 = vpop.f32.mrf.mxu0
      %v987 = vadd.f32 %v922, %v986
      %v988 = vpop.f32.mrf.mxu0
      %989 = vdwg.mxu0
      %v990 = vld [vmem:[%s317] sm:$0xf]
      %v991 = vld [vmem:[%s317 + $0x4] sm:$0xf]
      %v992 = vld [vmem:[%s317 + $0x8] sm:$0xf]
      %v993 = vld [vmem:[%s317 + $0xc] sm:$0xf]
      %v994 = vld [vmem:[%s317 + $0x10] sm:$0xf]
      %v995 = vld [vmem:[%s317 + $0x14] sm:$0xf]
      %v996 = vld [vmem:[%s317 + $0x18] sm:$0xf]
      %v997 = vld [vmem:[%s317 + $0x1c] sm:$0xf]
      %v998 = vunpack.c.l.bf16 %v990
      %v999 = vunpack.c.l.bf16 %v991
      %v1000 = vunpack.c.l.bf16 %v992
      %v1001 = vunpack.c.l.bf16 %v993
      %v1002 = vunpack.c.l.bf16 %v994
      %v1003 = vunpack.c.l.bf16 %v995
      %v1004 = vunpack.c.l.bf16 %v996
      %v1005 = vunpack.c.l.bf16 %v997
      %v1006 = vadd.f32 %v960, %v998
      %v1007 = vadd.f32 %v963, %v999
      %v1008 = vadd.f32 %v968, %v1000
      %v1009 = vadd.f32 %v971, %v1001
      %v1010 = vadd.f32 %v976, %v1002
      %v1011 = vadd.f32 %v979, %v1003
      %v1012 = vadd.f32 %v984, %v1004
      %v1013 = vadd.f32 %v987, %v1005
      %v1014 = vld [vmem:[%s327] sm:$0xf]
      %v1015 = vld [vmem:[%s327 + $0x4] sm:$0xf]
      %v1016 = vld [vmem:[%s327 + $0x8] sm:$0xf]
      %v1017 = vld [vmem:[%s327 + $0xc] sm:$0xf]
      %v1018 = vld [vmem:[%s327 + $0x10] sm:$0xf]
      %v1019 = vld [vmem:[%s327 + $0x14] sm:$0xf]
      %v1020 = vld [vmem:[%s327 + $0x18] sm:$0xf]
      %v1021 = vld [vmem:[%s327 + $0x1c] sm:$0xf]
      %v1022 = vunpack.c.l.bf16 %v1014
      %v1023 = vunpack.c.l.bf16 %v1015
      %v1024 = vunpack.c.l.bf16 %v1016
      %v1025 = vunpack.c.l.bf16 %v1017
      %v1026 = vunpack.c.l.bf16 %v1018
      %v1027 = vunpack.c.l.bf16 %v1019
      %v1028 = vunpack.c.l.bf16 %v1020
      %v1029 = vunpack.c.l.bf16 %v1021
      %v1030 = vadd.f32 %v1006, %v1022
      %v1031 = vadd.f32 %v1007, %v1023
      %v1032 = vadd.f32 %v1008, %v1024
      %v1033 = vadd.f32 %v1009, %v1025
      %v1034 = vadd.f32 %v1010, %v1026
      %v1035 = vadd.f32 %v1011, %v1027
      %v1036 = vadd.f32 %v1012, %v1028
      %v1037 = vadd.f32 %v1013, %v1029
      %v1038 = vpack.c.bf16 %v1031, %v1030
      %v1039 = vpack.c.bf16 %v1033, %v1032
      %v1040 = vpack.c.bf16 %v1035, %v1034
      %v1041 = vpack.c.bf16 %v1037, %v1036
      %v1046 = vunpack.c.l.b16 %v1038
      %v1047 = vunpack.c.h.b16 %v1038
      %v1048 = vunpack.c.l.b16 %v1039
      %v1049 = vunpack.c.h.b16 %v1039
      %v1050 = vunpack.c.l.b16 %v1040
      %v1051 = vunpack.c.h.b16 %v1040
      %v1052 = vunpack.c.l.b16 %v1041
      %v1053 = vunpack.c.h.b16 %v1041
      %v1054 = vpack.c.b16 %v1046, %v1046
      %v1055 = vpack.c.b16 %v1047, %v1047
      %v1056 = vpack.c.b16 %v1048, %v1048
      %v1057 = vpack.c.b16 %v1049, %v1049
      %v1058 = vpack.c.b16 %v1050, %v1050
      %v1059 = vpack.c.b16 %v1051, %v1051
      %v1060 = vpack.c.b16 %v1052, %v1052
      %v1061 = vpack.c.b16 %v1053, %v1053
      %1070 = vst [vmem:[%s337] sm:$0xf] %v1054
      %1071 = vst [vmem:[%s337 + $0x4] sm:$0xf] %v1055
      %1072 = vst [vmem:[%s337 + $0x8] sm:$0xf] %v1056
      %1073 = vst [vmem:[%s337 + $0xc] sm:$0xf] %v1057
      %1074 = vst [vmem:[%s337 + $0x10] sm:$0xf] %v1058
      %1075 = vst [vmem:[%s337 + $0x14] sm:$0xf] %v1059
      %1076 = vst [vmem:[%s337 + $0x18] sm:$0xf] %v1060
      %1077 = vst [vmem:[%s337 + $0x1c] sm:$0xf] %v1061
      %s1078 = smul.u32 8, %s21
      %p1079 = scmp.lt.s32.totalorder %s20, 1
      %s1080 = scalar_select %p1079, %s20, 1
      %p1081 = scmp.lt.s32.totalorder %s1078, 7
      %s1082 = scalar_select %p1081, %s1078, 7
      %s1083 = smul.addr %s1080, 8
      %s1084 = sadd.s32 %s1082, %s1083
      %s1085 = smul.addr %s1084, 4
      %s1086 = scalar_lea.vmem %s5, %s1085
      // Predicated region
      $region41: #{lama_generator_forward.44} parent=39 // pred_check
        %p1087 = pneg %p174
      $region42: #{lama_generator_forward.44} parent=39 // pred_check_branch
        %1089 = sbr.rel (%p1087) target = $region44
      $region43: #{lama_generator_forward.44} parent=39 // pred_region
        %s1090 = smul.u32 8, %s21
      $region44: #{lama_generator_forward.44} parent=39 // pred_fallthru
        _
    $region40: #{lama_generator_forward.44} parent=5 // pred_fallthru
      _
    %p1091 = scmp.le.s32.totalorder 2, %s11
    // Predicated region
    $region45: #{lama_generator_forward.44} parent=5 // pred_check
      %p1092 = pneg %p1091
    $region46: #{lama_generator_forward.44} parent=5 // pred_check_branch
      %1094 = sbr.rel (%p1092) target = $region48
    $region47: #{lama_generator_forward.44} parent=5 // pred_region
      %s1095 = ssub.s32 %s11, 2
      // Predicated region
      $region49: #{lama_generator_forward.44} parent=47 // pred_check
        %p1096 = pneg %p180
      $region50: #{lama_generator_forward.44} parent=47 // pred_check_branch
        %1098 = sbr.rel (%p1096) target = $region52
      $region51: #{lama_generator_forward.44} parent=47 // pred_region
        %s1099 = smul.u32 8, %s23
        %p1100 = scmp.lt.s32.totalorder %s22, 1
        %s1101 = scalar_select %p1100, %s22, 1
        %p1102 = scmp.lt.s32.totalorder %s1099, 7
        %s1103 = scalar_select %p1102, %s1099, 7
        %s1104 = smul.addr %s1101, 8
        %s1105 = sadd.s32 %s1103, %s1104
        %s1106 = smul.addr %s1105, 4
        %s1107 = scalar_lea.vmem %s5, %s1106
      $region52: #{lama_generator_forward.44} parent=47 // pred_fallthru
        _
    $region48: #{lama_generator_forward.44} parent=5 // pred_fallthru
      _
  $region6: #{lama_generator_forward.44} parent=0 // loop_footer
    %s15 = sadd.s32 1, %s11
  $region7: #{lama_generator_forward.44} parent=0 // loop_footer_branch
    %10 = sbr.rel target = $region3
  $region8: #{lama_generator_forward.44} parent=0 // loop_exit
    _

// kernel: lama_generator_forward.77
$region0: #{lama_generator_forward.77}
  #allocation0 [shape = 'u32[]', space=smem, size = 0x4, offset = 0x4, fixed_abs, tag = 'smem constant byte address 0x4 - core index']
  #allocation1 [shape = 'u32[144,128]{1,0:T(1,128)}', space=vmem, size = 0x12000, scoped, tag = 'internal scratch']
  %s0 = inlined_call_operand.vmem [shape: bf16[2,256,640], index: 0, kind: input, shape index: {}]
  %s1 = inlined_call_operand.vmem [shape: bf16[640,128], index: 1, kind: input, shape index: {}]
  %s2 = inlined_call_operand.vmem [shape: f32[1,128], index: 2, kind: input, shape index: {}]
  %s3 = inlined_call_operand.vmem [shape: f32[2,256,128], index: 3, kind: output, shape index: {}]
  %s4 = sld [smem:[#allocation0]]
  $region45: #{lama_generator_forward.77} parent=0
    _
  %s6 = ssub.s32 1, %s4
  %s7 = scalar_select 0, %s6, %s4
  loop: start=0, step=1, limit=4
  $region2: #{lama_generator_forward.77} parent=0 // loop_pre_header
    _
  $region3: #{lama_generator_forward.77} parent=0 // loop_header
    %s9 = sphi 0, %s13
    %p10 = scmp.ge.s32.totalorder %s9, 4
    %s16 = sphi 0, %s28
    %s17 = sphi 0, %s24
    %s18 = sphi 0, %s16
    %s19 = sphi 0, %s17
    %s20 = sphi 0, %s18
    %s21 = sphi 0, %s19
    %s33 = sphi 0, %s35
    %s36 = sphi 0, %s33
    %s37 = sphi 0, %s36
    %s53 = sphi 0, %s37
    %s57 = sphi 0, %s57
    %s59 = sphi 0, %s57
    %s60 = sphi 0, %s59
    %s74 = sphi 0, %s60
    %s78 = sphi 0, %s78
    %s80 = sphi 0, %s78
    %s81 = sphi 0, %s80
    %s95 = sphi 0, %s81
    %s103 = sphi 0, %s105
    %s106 = sphi 0, %s103
    %s107 = sphi 0, %s106
    %s123 = sphi 0, %s107
  $region4: #{lama_generator_forward.77} parent=0 // loop_header_branch
    %12 = sbr.rel (%p10) target = $region8
  $region5: #{lama_generator_forward.77} parent=0 // loop_body
    %s14 = ssub.s32 %s9, 1
    %s15 = ssub.s32 %s9, 2
    %s22 = sadd.s32 1, %s17
    %p23 = scmp.ge.s32.totalorder %s22, 1
    %s24 = scalar_select %p23, 0, %s22
    %s25 = sadd.s32 1, %s16
    %s26 = scalar_select %p23, %s25, %s16
    %p27 = scmp.ge.s32.totalorder %s26, 2
    %s28 = scalar_select %p27, 0, %s26
    %s29 = ssub.s32 %s16, %s28
    %s30 = ssub.s32 %s17, %s24
    %s31 = sor.u32 %s29, %s30
    %p32 = scmp.eq.s32.totalorder %s31, 0
    %s34 = sadd.s32 %s33, 1
    %s35 = scalar_select %p32, %s33, %s34
    %p38 = pneg %p32
    %p39 = scmp.eq.s32.totalorder %s9, 1
    %p40 = por %p38, %p39
    %p41 = scmp.ne.s32.totalorder %s33, %s36
    %p42 = scmp.eq.s32.totalorder %s9, 0
    %p43 = por %p41, %p42
    %p44 = scmp.ne.s32.totalorder %s33, %s36
    %p45 = scmp.eq.s32.totalorder %s14, 1
    %p46 = por %p44, %p45
    %p47 = scmp.ne.s32.totalorder %s36, %s37
    %p48 = scmp.eq.s32.totalorder %s14, 0
    %p49 = por %p47, %p48
    %p50 = scmp.ne.s32.totalorder %s36, %s37
    %p51 = scmp.eq.s32.totalorder %s15, 1
    %p52 = por %p50, %p51
    %p54 = scmp.ne.s32.totalorder %s37, %s53
    %p55 = scmp.eq.s32.totalorder %s15, 0
    %p56 = por %p54, %p55
    %s58 = sadd.s32 %s57, 1
    %p61 = scmp.eq.s32.totalorder %s9, 1
    %p62 = scmp.ne.s32.totalorder %s57, %s59
    %p63 = scmp.eq.s32.totalorder %s9, 0
    %p64 = por %p62, %p63
    %p65 = scmp.ne.s32.totalorder %s57, %s59
    %p66 = scmp.eq.s32.totalorder %s14, 1
    %p67 = por %p65, %p66
    %p68 = scmp.ne.s32.totalorder %s59, %s60
    %p69 = scmp.eq.s32.totalorder %s14, 0
    %p70 = por %p68, %p69
    %p71 = scmp.ne.s32.totalorder %s59, %s60
    %p72 = scmp.eq.s32.totalorder %s15, 1
    %p73 = por %p71, %p72
    %p75 = scmp.ne.s32.totalorder %s60, %s74
    %p76 = scmp.eq.s32.totalorder %s15, 0
    %p77 = por %p75, %p76
    %s79 = sadd.s32 %s78, 1
    %p82 = scmp.eq.s32.totalorder %s9, 1
    %p83 = scmp.ne.s32.totalorder %s78, %s80
    %p84 = scmp.eq.s32.totalorder %s9, 0
    %p85 = por %p83, %p84
    %p86 = scmp.ne.s32.totalorder %s78, %s80
    %p87 = scmp.eq.s32.totalorder %s14, 1
    %p88 = por %p86, %p87
    %p89 = scmp.ne.s32.totalorder %s80, %s81
    %p90 = scmp.eq.s32.totalorder %s14, 0
    %p91 = por %p89, %p90
    %p92 = scmp.ne.s32.totalorder %s80, %s81
    %p93 = scmp.eq.s32.totalorder %s15, 1
    %p94 = por %p92, %p93
    %p96 = scmp.ne.s32.totalorder %s81, %s95
    %p97 = scmp.eq.s32.totalorder %s15, 0
    %p98 = por %p96, %p97
    %s99 = ssub.s32 %s16, %s28
    %s100 = ssub.s32 %s17, %s24
    %s101 = sor.u32 %s99, %s100
    %p102 = scmp.eq.s32.totalorder %s101, 0
    %s104 = sadd.s32 %s103, 1
    %s105 = scalar_select %p102, %s103, %s104
    %p108 = pneg %p102
    %p109 = scmp.eq.s32.totalorder %s9, 1
    %p110 = por %p108, %p109
    %p111 = scmp.ne.s32.totalorder %s103, %s106
    %p112 = scmp.eq.s32.totalorder %s9, 0
    %p113 = por %p111, %p112
    %p114 = scmp.ne.s32.totalorder %s103, %s106
    %p115 = scmp.eq.s32.totalorder %s14, 1
    %p116 = por %p114, %p115
    %p117 = scmp.ne.s32.totalorder %s106, %s107
    %p118 = scmp.eq.s32.totalorder %s14, 0
    %p119 = por %p117, %p118
    %p120 = scmp.ne.s32.totalorder %s106, %s107
    %p121 = scmp.eq.s32.totalorder %s15, 1
    %p122 = por %p120, %p121
    %p124 = scmp.ne.s32.totalorder %s107, %s123
    %p125 = scmp.eq.s32.totalorder %s15, 0
    %p126 = por %p124, %p125
    %p127 = scmp.le.s32.totalorder 1, %s9
    %p128 = scmp.lt.s32.totalorder %s9, 3
    %p129 = pnand %p127, %p128
    %p130 = pneg %p129
    // Predicated region
    $region9: #{lama_generator_forward.77} parent=5 // pred_check
      _
    $region10: #{lama_generator_forward.77} parent=5 // pred_check_branch
      %132 = sbr.rel (%p129) target = $region12
    $region11: #{lama_generator_forward.77} parent=5 // pred_region
      %s133 = ssub.s32 %s9, 1
      // Predicated region
      $region13: #{lama_generator_forward.77} parent=11 // pred_check
        %p134 = pneg %p70
      $region14: #{lama_generator_forward.77} parent=11 // pred_check_branch
        %136 = sbr.rel (%p134) target = $region16
      $region15: #{lama_generator_forward.77} parent=11 // pred_region
        _
      $region16: #{lama_generator_forward.77} parent=11 // pred_fallthru
        _
      // Predicated region
      $region17: #{lama_generator_forward.77} parent=11 // pred_check
        %p137 = pneg %p91
      $region18: #{lama_generator_forward.77} parent=11 // pred_check_branch
        %139 = sbr.rel (%p137) target = $region20
      $region19: #{lama_generator_forward.77} parent=11 // pred_region
        _
      $region20: #{lama_generator_forward.77} parent=11 // pred_fallthru
        _
    $region12: #{lama_generator_forward.77} parent=5 // pred_fallthru
      _
    %p140 = scmp.lt.s32.totalorder %s9, 2
    // Predicated region
    $region21: #{lama_generator_forward.77} parent=5 // pred_check
      %p141 = pneg %p140
    $region22: #{lama_generator_forward.77} parent=5 // pred_check_branch
      %143 = sbr.rel (%p141) target = $region24
    $region23: #{lama_generator_forward.77} parent=5 // pred_region
      // Predicated region
      $region25: #{lama_generator_forward.77} parent=23 // pred_check
        %p144 = pneg %p43
      $region26: #{lama_generator_forward.77} parent=23 // pred_check_branch
        %146 = sbr.rel (%p144) target = $region28
      $region27: #{lama_generator_forward.77} parent=23 // pred_region
        %s147 = smul.u32 32, %s17
        %p148 = scmp.lt.s32.totalorder %s16, 1
        %s149 = scalar_select %p148, %s16, 1
        %p150 = scmp.lt.s32.totalorder %s147, 31
        %s151 = scalar_select %p150, %s147, 31
        %s152 = smul.addr %s151, 5
        %s153 = smul.addr %s149, 160
        %s154 = sadd.s32 %s152, %s153
        %s155 = smul.addr %s154, 4
        %s156 = scalar_lea.vmem %s0, %s155
        %s157 = smul.u32 32, %s17
      $region28: #{lama_generator_forward.77} parent=23 // pred_fallthru
        _
    $region24: #{lama_generator_forward.77} parent=5 // pred_fallthru
      _
    %p158 = scmp.le.s32.totalorder 1, %s9
    %p159 = scmp.lt.s32.totalorder %s9, 3
    %p160 = pnand %p158, %p159
    %p161 = pneg %p160
    // Predicated region
    $region29: #{lama_generator_forward.77} parent=5 // pred_check
      _
    $region30: #{lama_generator_forward.77} parent=5 // pred_check_branch
      %163 = sbr.rel (%p160) target = $region32
    $region31: #{lama_generator_forward.77} parent=5 // pred_region
      %s164 = ssub.s32 %s9, 1
      %s165 = smul.u32 32, %s19
      %p166 = scmp.lt.s32.totalorder %s18, 1
      %s167 = scalar_select %p166, %s18, 1
      %p168 = scmp.lt.s32.totalorder %s165, 31
      %s169 = scalar_select %p168, %s165, 31
      %s170 = smul.addr %s169, 5
      %s171 = smul.addr %s167, 160
      %s172 = sadd.s32 %s170, %s171
      %s173 = smul.addr %s172, 4
      %s174 = scalar_lea.vmem %s0, %s173
      %p175 = pneg %p49
      %p176 = pneg %p46
      %p177 = pneg %p70
      %p178 = pneg %p67
      %p179 = pneg %p91
      %p180 = pneg %p88
      %p181 = pneg %p119
      %p182 = pneg %p116
      %s183 = smul.u32 32, %s19
      %p184 = scmp.lt.s32.totalorder %s18, 1
      %s185 = scalar_select %p184, %s18, 1
      %p186 = scmp.lt.s32.totalorder %s183, 31
      %s187 = scalar_select %p186, %s183, 31
      %s188 = smul.addr %s185, 32
      %s189 = sadd.s32 %s187, %s188
      %s190 = smul.addr %s189, 8
      %s191 = scalar_lea.vmem %s3, %s190
      %s192 = smul.u32 32, %s19
      %p193 = scmp.lt.s32.totalorder %s18, 1
      %s194 = scalar_select %p193, %s18, 1
      %p195 = scmp.lt.s32.totalorder %s192, 31
      %s196 = scalar_select %p195, %s192, 31
      %s197 = smul.addr %s196, 5
      %s198 = smul.addr %s194, 160
      %s199 = sadd.s32 %s197, %s198
      %s200 = smul.addr %s199, 4
      %s201 = scalar_lea.vmem %s0, %s200
      %s202 = smul.u32 32, %s19
      %s203 = smul.u32 32, %s19
      %p204 = scmp.lt.s32.totalorder %s18, 1
      %s205 = scalar_select %p204, %s18, 1
      %p206 = scmp.lt.s32.totalorder %s203, 31
      %s207 = scalar_select %p206, %s203, 31
      %s208 = smul.addr %s205, 32
      %s209 = sadd.s32 %s207, %s208
      %s210 = smul.addr %s209, 8
      %s211 = scalar_lea.vmem %s3, %s210
      %s212 = smul.u32 32, %s19
      %v214 = vld [vmem:[%s201] sm:$0xff]
      %v215 = vld [vmem:[%s201 + $0x8] sm:$0xff]
      %v216 = vld [vmem:[%s201 + $0x10] sm:$0xf]
      %v217 = vld [vmem:[%s201 + $0x14] sm:$0xff]
      %v218 = vld [vmem:[%s201 + $0x1c] sm:$0xff]
      %v219 = vld [vmem:[%s201 + $0x24] sm:$0xf]
      %v220 = vld [vmem:[%s201 + $0x28] sm:$0xff]
      %v221 = vld [vmem:[%s201 + $0x30] sm:$0xff]
      %v222 = vld [vmem:[%s201 + $0x38] sm:$0xf]
      %v223 = vld [vmem:[%s201 + $0x3c] sm:$0xff]
      %v224 = vld [vmem:[%s201 + $0x44] sm:$0xff]
      %v225 = vld [vmem:[%s201 + $0x4c] sm:$0xf]
      %v226 = vld [vmem:[%s201 + $0x50] sm:$0xff]
      %v227 = vld [vmem:[%s201 + $0x58] sm:$0xff]
      %v228 = vld [vmem:[%s201 + $0x60] sm:$0xf]
      %v229 = vld [vmem:[%s201 + $0x64] sm:$0xff]
      %v230 = vld [vmem:[%s201 + $0x6c] sm:$0xff]
      %v231 = vld [vmem:[%s201 + $0x74] sm:$0xf]
      %v232 = vld [vmem:[%s201 + $0x78] sm:$0xff]
      %v233 = vld [vmem:[%s201 + $0x80] sm:$0xff]
      %v234 = vld [vmem:[%s201 + $0x88] sm:$0xf]
      %v235 = vld [vmem:[%s201 + $0x8c] sm:$0xff]
      %v236 = vld [vmem:[%s201 + $0x94] sm:$0xff]
      %v237 = vld [vmem:[%s201 + $0x9c] sm:$0xf]
      %v238 = vld [vmem:[%s201 + $0xa0] sm:$0xff]
      %v239 = vld [vmem:[%s201 + $0xa8] sm:$0xff]
      %v240 = vld [vmem:[%s201 + $0xb0] sm:$0xf]
      %v241 = vld [vmem:[%s201 + $0xb4] sm:$0xff]
      %v242 = vld [vmem:[%s201 + $0xbc] sm:$0xff]
      %v243 = vld [vmem:[%s201 + $0xc4] sm:$0xf]
      %v244 = vld [vmem:[%s201 + $0xc8] sm:$0xff]
      %v245 = vld [vmem:[%s201 + $0xd0] sm:$0xff]
      %v246 = vld [vmem:[%s201 + $0xd8] sm:$0xf]
      %v247 = vld [vmem:[%s201 + $0xdc] sm:$0xff]
      %v248 = vld [vmem:[%s201 + $0xe4] sm:$0xff]
      %v249 = vld [vmem:[%s201 + $0xec] sm:$0xf]
      %v250 = vld [vmem:[%s201 + $0xf0] sm:$0xff]
      %v251 = vld [vmem:[%s201 + $0xf8] sm:$0xff]
      %v252 = vld [vmem:[%s201 + $0x100] sm:$0xf]
      %v253 = vld [vmem:[%s201 + $0x104] sm:$0xff]
      %v254 = vld [vmem:[%s201 + $0x10c] sm:$0xff]
      %v255 = vld [vmem:[%s201 + $0x114] sm:$0xf]
      %v256 = vld [vmem:[%s201 + $0x118] sm:$0xff]
      %v257 = vld [vmem:[%s201 + $0x120] sm:$0xff]
      %v258 = vld [vmem:[%s201 + $0x128] sm:$0xf]
      %v259 = vld [vmem:[%s201 + $0x12c] sm:$0xff]
      %v260 = vld [vmem:[%s201 + $0x134] sm:$0xff]
      %v261 = vld [vmem:[%s201 + $0x13c] sm:$0xf]
      %v262 = vld [vmem:[%s201 + $0x140] sm:$0xff]
      %v263 = vld [vmem:[%s201 + $0x148] sm:$0xff]
      %v264 = vld [vmem:[%s201 + $0x150] sm:$0xf]
      %v265 = vld [vmem:[%s201 + $0x154] sm:$0xff]
      %v266 = vld [vmem:[%s201 + $0x15c] sm:$0xff]
      %v267 = vld [vmem:[%s201 + $0x164] sm:$0xf]
      %v268 = vld [vmem:[%s201 + $0x168] sm:$0xff]
      %v269 = vld [vmem:[%s201 + $0x170] sm:$0xff]
      %v270 = vld [vmem:[%s201 + $0x178] sm:$0xf]
      %v271 = vld [vmem:[%s201 + $0x17c] sm:$0xff]
      %v272 = vld [vmem:[%s201 + $0x184] sm:$0xff]
      %v273 = vld [vmem:[%s201 + $0x18c] sm:$0xf]
      %v274 = vld [vmem:[%s201 + $0x190] sm:$0xff]
      %v275 = vld [vmem:[%s201 + $0x198] sm:$0xff]
      %v276 = vld [vmem:[%s201 + $0x1a0] sm:$0xf]
      %v277 = vld [vmem:[%s201 + $0x1a4] sm:$0xff]
      %v278 = vld [vmem:[%s201 + $0x1ac] sm:$0xff]
      %v279 = vld [vmem:[%s201 + $0x1b4] sm:$0xf]
      %v280 = vld [vmem:[%s201 + $0x1b8] sm:$0xff]
      %v281 = vld [vmem:[%s201 + $0x1c0] sm:$0xff]
      %v282 = vld [vmem:[%s201 + $0x1c8] sm:$0xf]
      %v283 = vld [vmem:[%s201 + $0x1cc] sm:$0xff]
      %v284 = vld [vmem:[%s201 + $0x1d4] sm:$0xff]
      %v285 = vld [vmem:[%s201 + $0x1dc] sm:$0xf]
      %v286 = vld [vmem:[%s201 + $0x1e0] sm:$0xff]
      %v287 = vld [vmem:[%s201 + $0x1e8] sm:$0xff]
      %v288 = vld [vmem:[%s201 + $0x1f0] sm:$0xf]
      %v289 = vld [vmem:[%s201 + $0x1f4] sm:$0xff]
      %v290 = vld [vmem:[%s201 + $0x1fc] sm:$0xff]
      %v291 = vld [vmem:[%s201 + $0x204] sm:$0xf]
      %v292 = vld [vmem:[%s201 + $0x208] sm:$0xff]
      %v293 = vld [vmem:[%s201 + $0x210] sm:$0xff]
      %v294 = vld [vmem:[%s201 + $0x218] sm:$0xf]
      %v295 = vld [vmem:[%s201 + $0x21c] sm:$0xff]
      %v296 = vld [vmem:[%s201 + $0x224] sm:$0xff]
      %v297 = vld [vmem:[%s201 + $0x22c] sm:$0xf]
      %v298 = vld [vmem:[%s201 + $0x230] sm:$0xff]
      %v299 = vld [vmem:[%s201 + $0x238] sm:$0xff]
      %v300 = vld [vmem:[%s201 + $0x240] sm:$0xf]
      %v301 = vld [vmem:[%s201 + $0x244] sm:$0xff]
      %v302 = vld [vmem:[%s201 + $0x24c] sm:$0xff]
      %v303 = vld [vmem:[%s201 + $0x254] sm:$0xf]
      %v304 = vld [vmem:[%s201 + $0x258] sm:$0xff]
      %v305 = vld [vmem:[%s201 + $0x260] sm:$0xff]
      %v306 = vld [vmem:[%s201 + $0x268] sm:$0xf]
      %v307 = vld [vmem:[%s201 + $0x26c] sm:$0xff]
      %v308 = vld [vmem:[%s201 + $0x274] sm:$0xff]
      %v309 = vld [vmem:[%s201 + $0x27c] sm:$0xf]
      %v310 = vld [vmem:[%s1] sm:$0xf]
      %v311 = vld [vmem:[%s1 + $0x4] sm:$0xf]
      %v312 = vld [vmem:[%s1 + $0x8] sm:$0xf]
      %v313 = vld [vmem:[%s1 + $0xc] sm:$0xf]
      %v314 = vld [vmem:[%s1 + $0x10] sm:$0xf]
      %v315 = vld [vmem:[%s1 + $0x14] sm:$0xf]
      %v316 = vld [vmem:[%s1 + $0x18] sm:$0xf]
      %v317 = vld [vmem:[%s1 + $0x1c] sm:$0xf]
      %v318 = vld [vmem:[%s1 + $0x20] sm:$0xf]
      %v319 = vld [vmem:[%s1 + $0x24] sm:$0xf]
      %v320 = vld [vmem:[%s1 + $0x28] sm:$0xf]
      %v321 = vld [vmem:[%s1 + $0x2c] sm:$0xf]
      %v322 = vld [vmem:[%s1 + $0x30] sm:$0xf]
      %v323 = vld [vmem:[%s1 + $0x34] sm:$0xf]
      %v324 = vld [vmem:[%s1 + $0x38] sm:$0xf]
      %v325 = vld [vmem:[%s1 + $0x3c] sm:$0xf]
      %v326 = vld [vmem:[%s1 + $0x40] sm:$0xf]
      %v327 = vld [vmem:[%s1 + $0x44] sm:$0xf]
      %v328 = vld [vmem:[%s1 + $0x48] sm:$0xf]
      %v329 = vld [vmem:[%s1 + $0x4c] sm:$0xf]
      %v330 = vld [vmem:[%s1 + $0x50] sm:$0xf]
      %v331 = vld [vmem:[%s1 + $0x54] sm:$0xf]
      %v332 = vld [vmem:[%s1 + $0x58] sm:$0xf]
      %v333 = vld [vmem:[%s1 + $0x5c] sm:$0xf]
      %v334 = vld [vmem:[%s1 + $0x60] sm:$0xf]
      %v335 = vld [vmem:[%s1 + $0x64] sm:$0xf]
      %v336 = vld [vmem:[%s1 + $0x68] sm:$0xf]
      %v337 = vld [vmem:[%s1 + $0x6c] sm:$0xf]
      %v338 = vld [vmem:[%s1 + $0x70] sm:$0xf]
      %v339 = vld [vmem:[%s1 + $0x74] sm:$0xf]
      %v340 = vld [vmem:[%s1 + $0x78] sm:$0xf]
      %v341 = vld [vmem:[%s1 + $0x7c] sm:$0xf]
      %v342 = vld [vmem:[%s1 + $0x80] sm:$0xf]
      %v343 = vld [vmem:[%s1 + $0x84] sm:$0xf]
      %v344 = vld [vmem:[%s1 + $0x88] sm:$0xf]
      %v345 = vld [vmem:[%s1 + $0x8c] sm:$0xf]
      %v346 = vld [vmem:[%s1 + $0x90] sm:$0xf]
      %v347 = vld [vmem:[%s1 + $0x94] sm:$0xf]
      %v348 = vld [vmem:[%s1 + $0x98] sm:$0xf]
      %v349 = vld [vmem:[%s1 + $0x9c] sm:$0xf]
      %v350 = vld [vmem:[%s1 + $0xa0] sm:$0xf]
      %v351 = vld [vmem:[%s1 + $0xa4] sm:$0xf]
      %v352 = vld [vmem:[%s1 + $0xa8] sm:$0xf]
      %v353 = vld [vmem:[%s1 + $0xac] sm:$0xf]
      %v354 = vld [vmem:[%s1 + $0xb0] sm:$0xf]
      %v355 = vld [vmem:[%s1 + $0xb4] sm:$0xf]
      %v356 = vld [vmem:[%s1 + $0xb8] sm:$0xf]
      %v357 = vld [vmem:[%s1 + $0xbc] sm:$0xf]
      %v358 = vld [vmem:[%s1 + $0xc0] sm:$0xf]
      %v359 = vld [vmem:[%s1 + $0xc4] sm:$0xf]
      %v360 = vld [vmem:[%s1 + $0xc8] sm:$0xf]
      %v361 = vld [vmem:[%s1 + $0xcc] sm:$0xf]
      %v362 = vld [vmem:[%s1 + $0xd0] sm:$0xf]
      %v363 = vld [vmem:[%s1 + $0xd4] sm:$0xf]
      %v364 = vld [vmem:[%s1 + $0xd8] sm:$0xf]
      %v365 = vld [vmem:[%s1 + $0xdc] sm:$0xf]
      %v366 = vld [vmem:[%s1 + $0xe0] sm:$0xf]
      %v367 = vld [vmem:[%s1 + $0xe4] sm:$0xf]
      %v368 = vld [vmem:[%s1 + $0xe8] sm:$0xf]
      %v369 = vld [vmem:[%s1 + $0xec] sm:$0xf]
      %v370 = vld [vmem:[%s1 + $0xf0] sm:$0xf]
      %v371 = vld [vmem:[%s1 + $0xf4] sm:$0xf]
      %v372 = vld [vmem:[%s1 + $0xf8] sm:$0xf]
      %v373 = vld [vmem:[%s1 + $0xfc] sm:$0xf]
      %v374 = vld [vmem:[%s1 + $0x100] sm:$0xf]
      %v375 = vld [vmem:[%s1 + $0x104] sm:$0xf]
      %v376 = vld [vmem:[%s1 + $0x108] sm:$0xf]
      %v377 = vld [vmem:[%s1 + $0x10c] sm:$0xf]
      %v378 = vld [vmem:[%s1 + $0x110] sm:$0xf]
      %v379 = vld [vmem:[%s1 + $0x114] sm:$0xf]
      %v380 = vld [vmem:[%s1 + $0x118] sm:$0xf]
      %v381 = vld [vmem:[%s1 + $0x11c] sm:$0xf]
      %v382 = vld [vmem:[%s1 + $0x120] sm:$0xf]
      %v383 = vld [vmem:[%s1 + $0x124] sm:$0xf]
      %v384 = vld [vmem:[%s1 + $0x128] sm:$0xf]
      %v385 = vld [vmem:[%s1 + $0x12c] sm:$0xf]
      %v386 = vld [vmem:[%s1 + $0x130] sm:$0xf]
      %v387 = vld [vmem:[%s1 + $0x134] sm:$0xf]
      %v388 = vld [vmem:[%s1 + $0x138] sm:$0xf]
      %v389 = vld [vmem:[%s1 + $0x13c] sm:$0xf]
      %v390 = vld [vmem:[%s2] sm:$0x1]
      %v392 = vlaneseq
      %v393 = vshrl.u32 %v392, 7
      %v394 = vsub.s32 0, %v393
      %v395 = vrot.slane %v390, %v394
      %v493 = vunpack.c.l.b16 %v214
      %v494 = vunpack.c.h.b16 %v214
      %v495 = vunpack.c.l.b16 %v215
      %v496 = vunpack.c.h.b16 %v215
      %v497 = vunpack.c.l.b16 %v216
      %v498 = vunpack.c.l.b16 %v217
      %v499 = vunpack.c.h.b16 %v217
      %v500 = vunpack.c.l.b16 %v218
      %v501 = vunpack.c.h.b16 %v218
      %v502 = vunpack.c.l.b16 %v219
      %v503 = vunpack.c.l.b16 %v220
      %v504 = vunpack.c.h.b16 %v220
      %v505 = vunpack.c.l.b16 %v221
      %v506 = vunpack.c.h.b16 %v221
      %v507 = vunpack.c.l.b16 %v222
      %v508 = vunpack.c.l.b16 %v223
      %v509 = vunpack.c.h.b16 %v223
      %v510 = vunpack.c.l.b16 %v224
      %v511 = vunpack.c.h.b16 %v224
      %v512 = vunpack.c.l.b16 %v225
      %v513 = vunpack.c.l.b16 %v226
      %v514 = vunpack.c.h.b16 %v226
      %v515 = vunpack.c.l.b16 %v227
      %v516 = vunpack.c.h.b16 %v227
      %v517 = vunpack.c.l.b16 %v228
      %v518 = vunpack.c.l.b16 %v229
      %v519 = vunpack.c.h.b16 %v229
      %v520 = vunpack.c.l.b16 %v230
      %v521 = vunpack.c.h.b16 %v230
      %v522 = vunpack.c.l.b16 %v231
      %v523 = vunpack.c.l.b16 %v232
      %v524 = vunpack.c.h.b16 %v232
      %v525 = vunpack.c.l.b16 %v233
      %v526 = vunpack.c.h.b16 %v233
      %v527 = vunpack.c.l.b16 %v234
      %v528 = vunpack.c.l.b16 %v235
      %v529 = vunpack.c.h.b16 %v235
      %v530 = vunpack.c.l.b16 %v236
      %v531 = vunpack.c.h.b16 %v236
      %v532 = vunpack.c.l.b16 %v237
      %v533 = vunpack.c.l.b16 %v238
      %v534 = vunpack.c.h.b16 %v238
      %v535 = vunpack.c.l.b16 %v239
      %v536 = vunpack.c.h.b16 %v239
      %v537 = vunpack.c.l.b16 %v240
      %v538 = vunpack.c.l.b16 %v241
      %v539 = vunpack.c.h.b16 %v241
      %v540 = vunpack.c.l.b16 %v242
      %v541 = vunpack.c.h.b16 %v242
      %v542 = vunpack.c.l.b16 %v243
      %v543 = vunpack.c.l.b16 %v244
      %v544 = vunpack.c.h.b16 %v244
      %v545 = vunpack.c.l.b16 %v245
      %v546 = vunpack.c.h.b16 %v245
      %v547 = vunpack.c.l.b16 %v246
      %v548 = vunpack.c.l.b16 %v247
      %v549 = vunpack.c.h.b16 %v247
      %v550 = vunpack.c.l.b16 %v248
      %v551 = vunpack.c.h.b16 %v248
      %v552 = vunpack.c.l.b16 %v249
      %v553 = vunpack.c.l.b16 %v250
      %v554 = vunpack.c.h.b16 %v250
      %v555 = vunpack.c.l.b16 %v251
      %v556 = vunpack.c.h.b16 %v251
      %v557 = vunpack.c.l.b16 %v252
      %v558 = vunpack.c.l.b16 %v253
      %v559 = vunpack.c.h.b16 %v253
      %v560 = vunpack.c.l.b16 %v254
      %v561 = vunpack.c.h.b16 %v254
      %v562 = vunpack.c.l.b16 %v255
      %v563 = vunpack.c.l.b16 %v256
      %v564 = vunpack.c.h.b16 %v256
      %v565 = vunpack.c.l.b16 %v257
      %v566 = vunpack.c.h.b16 %v257
      %v567 = vunpack.c.l.b16 %v258
      %v568 = vunpack.c.l.b16 %v259
      %v569 = vunpack.c.h.b16 %v259
      %v570 = vunpack.c.l.b16 %v260
      %v571 = vunpack.c.h.b16 %v260
      %v572 = vunpack.c.l.b16 %v261
      %v573 = vunpack.c.l.b16 %v262
      %v574 = vunpack.c.h.b16 %v262
      %v575 = vunpack.c.l.b16 %v263
      %v576 = vunpack.c.h.b16 %v263
      %v577 = vunpack.c.l.b16 %v264
      %v578 = vunpack.c.l.b16 %v265
      %v579 = vunpack.c.h.b16 %v265
      %v580 = vunpack.c.l.b16 %v266
      %v581 = vunpack.c.h.b16 %v266
      %v582 = vunpack.c.l.b16 %v267
      %v583 = vunpack.c.l.b16 %v268
      %v584 = vunpack.c.h.b16 %v268
      %v585 = vunpack.c.l.b16 %v269
      %v586 = vunpack.c.h.b16 %v269
      %v587 = vunpack.c.l.b16 %v270
      %v588 = vunpack.c.l.b16 %v271
      %v589 = vunpack.c.h.b16 %v271
      %v590 = vunpack.c.l.b16 %v272
      %v591 = vunpack.c.h.b16 %v272
      %v592 = vunpack.c.l.b16 %v273
      %v593 = vunpack.c.l.b16 %v274
      %v594 = vunpack.c.h.b16 %v274
      %v595 = vunpack.c.l.b16 %v275
      %v596 = vunpack.c.h.b16 %v275
      %v597 = vunpack.c.l.b16 %v276
      %v598 = vunpack.c.l.b16 %v277
      %v599 = vunpack.c.h.b16 %v277
      %v600 = vunpack.c.l.b16 %v278
      %v601 = vunpack.c.h.b16 %v278
      %v602 = vunpack.c.l.b16 %v279
      %v603 = vunpack.c.l.b16 %v280
      %v604 = vunpack.c.h.b16 %v280
      %v605 = vunpack.c.l.b16 %v281
      %v606 = vunpack.c.h.b16 %v281
      %v607 = vunpack.c.l.b16 %v282
      %v608 = vunpack.c.l.b16 %v283
      %v609 = vunpack.c.h.b16 %v283
      %v610 = vunpack.c.l.b16 %v284
      %v611 = vunpack.c.h.b16 %v284
      %v612 = vunpack.c.l.b16 %v285
      %v613 = vunpack.c.l.b16 %v286
      %v614 = vunpack.c.h.b16 %v286
      %v615 = vunpack.c.l.b16 %v287
      %v616 = vunpack.c.h.b16 %v287
      %v617 = vunpack.c.l.b16 %v288
      %v618 = vunpack.c.l.b16 %v289
      %v619 = vunpack.c.h.b16 %v289
      %v620 = vunpack.c.l.b16 %v290
      %v621 = vunpack.c.h.b16 %v290
      %v622 = vunpack.c.l.b16 %v291
      %v623 = vunpack.c.l.b16 %v292
      %v624 = vunpack.c.h.b16 %v292
      %v625 = vunpack.c.l.b16 %v293
      %v626 = vunpack.c.h.b16 %v293
      %v627 = vunpack.c.l.b16 %v294
      %v628 = vunpack.c.l.b16 %v295
      %v629 = vunpack.c.h.b16 %v295
      %v630 = vunpack.c.l.b16 %v296
      %v631 = vunpack.c.h.b16 %v296
      %v632 = vunpack.c.l.b16 %v297
      %v633 = vunpack.c.l.b16 %v298
      %v634 = vunpack.c.h.b16 %v298
      %v635 = vunpack.c.l.b16 %v299
      %v636 = vunpack.c.h.b16 %v299
      %v637 = vunpack.c.l.b16 %v300
      %v638 = vunpack.c.l.b16 %v301
      %v639 = vunpack.c.h.b16 %v301
      %v640 = vunpack.c.l.b16 %v302
      %v641 = vunpack.c.h.b16 %v302
      %v642 = vunpack.c.l.b16 %v303
      %v643 = vunpack.c.l.b16 %v304
      %v644 = vunpack.c.h.b16 %v304
      %v645 = vunpack.c.l.b16 %v305
      %v646 = vunpack.c.h.b16 %v305
      %v647 = vunpack.c.l.b16 %v306
      %v648 = vunpack.c.l.b16 %v307
      %v649 = vunpack.c.h.b16 %v307
      %v650 = vunpack.c.l.b16 %v308
      %v651 = vunpack.c.h.b16 %v308
      %v652 = vunpack.c.l.b16 %v309
      %v653 = vpack.c.b16 %v498, %v493
      %v654 = vpack.c.b16 %v499, %v494
      %v655 = vpack.c.b16 %v500, %v495
      %v656 = vpack.c.b16 %v501, %v496
      %v657 = vpack.c.b16 %v502, %v497
      %v658 = vpack.c.b16 %v508, %v503
      %v659 = vpack.c.b16 %v509, %v504
      %v660 = vpack.c.b16 %v510, %v505
      %v661 = vpack.c.b16 %v511, %v506
      %v662 = vpack.c.b16 %v512, %v507
      %v663 = vpack.c.b16 %v518, %v513
      %v664 = vpack.c.b16 %v519, %v514
      %v665 = vpack.c.b16 %v520, %v515
      %v666 = vpack.c.b16 %v521, %v516
      %v667 = vpack.c.b16 %v522, %v517
      %v668 = vpack.c.b16 %v528, %v523
      %v669 = vpack.c.b16 %v529, %v524
      %v670 = vpack.c.b16 %v530, %v525
      %v671 = vpack.c.b16 %v531, %v526
      %v672 = vpack.c.b16 %v532, %v527
      %v673 = vpack.c.b16 %v538, %v533
      %v674 = vpack.c.b16 %v539, %v534
      %v675 = vpack.c.b16 %v540, %v535
      %v676 = vpack.c.b16 %v541, %v536
      %v677 = vpack.c.b16 %v542, %v537
      %v678 = vpack.c.b16 %v548, %v543
      %v679 = vpack.c.b16 %v549, %v544
      %v680 = vpack.c.b16 %v550, %v545
      %v681 = vpack.c.b16 %v551, %v546
      %v682 = vpack.c.b16 %v552, %v547
      %v683 = vpack.c.b16 %v558, %v553
      %v684 = vpack.c.b16 %v559, %v554
      %v685 = vpack.c.b16 %v560, %v555
      %v686 = vpack.c.b16 %v561, %v556
      %v687 = vpack.c.b16 %v562, %v557
      %v688 = vpack.c.b16 %v568, %v563
      %v689 = vpack.c.b16 %v569, %v564
      %v690 = vpack.c.b16 %v570, %v565
      %v691 = vpack.c.b16 %v571, %v566
      %v692 = vpack.c.b16 %v572, %v567
      %v693 = vpack.c.b16 %v578, %v573
      %v694 = vpack.c.b16 %v579, %v574
      %v695 = vpack.c.b16 %v580, %v575
      %v696 = vpack.c.b16 %v581, %v576
      %v697 = vpack.c.b16 %v582, %v577
      %v698 = vpack.c.b16 %v588, %v583
      %v699 = vpack.c.b16 %v589, %v584
      %v700 = vpack.c.b16 %v590, %v585
      %v701 = vpack.c.b16 %v591, %v586
      %v702 = vpack.c.b16 %v592, %v587
      %v703 = vpack.c.b16 %v598, %v593
      %v704 = vpack.c.b16 %v599, %v594
      %v705 = vpack.c.b16 %v600, %v595
      %v706 = vpack.c.b16 %v601, %v596
      %v707 = vpack.c.b16 %v602, %v597
      %v708 = vpack.c.b16 %v608, %v603
      %v709 = vpack.c.b16 %v609, %v604
      %v710 = vpack.c.b16 %v610, %v605
      %v711 = vpack.c.b16 %v611, %v606
      %v712 = vpack.c.b16 %v612, %v607
      %v713 = vpack.c.b16 %v618, %v613
      %v714 = vpack.c.b16 %v619, %v614
      %v715 = vpack.c.b16 %v620, %v615
      %v716 = vpack.c.b16 %v621, %v616
      %v717 = vpack.c.b16 %v622, %v617
      %v718 = vpack.c.b16 %v628, %v623
      %v719 = vpack.c.b16 %v629, %v624
      %v720 = vpack.c.b16 %v630, %v625
      %v721 = vpack.c.b16 %v631, %v626
      %v722 = vpack.c.b16 %v632, %v627
      %v723 = vpack.c.b16 %v638, %v633
      %v724 = vpack.c.b16 %v639, %v634
      %v725 = vpack.c.b16 %v640, %v635
      %v726 = vpack.c.b16 %v641, %v636
      %v727 = vpack.c.b16 %v642, %v637
      %v728 = vpack.c.b16 %v648, %v643
      %v729 = vpack.c.b16 %v649, %v644
      %v730 = vpack.c.b16 %v650, %v645
      %v731 = vpack.c.b16 %v651, %v646
      %v732 = vpack.c.b16 %v652, %v647
      %v893 = vunpack.c.l.b16 %v310
      %v894 = vunpack.c.l.b16 %v311
      %v895 = vunpack.c.l.b16 %v312
      %v896 = vunpack.c.l.b16 %v313
      %v897 = vunpack.c.l.b16 %v314
      %v898 = vunpack.c.l.b16 %v315
      %v899 = vunpack.c.l.b16 %v316
      %v900 = vunpack.c.l.b16 %v317
      %v901 = vunpack.c.l.b16 %v318
      %v902 = vunpack.c.l.b16 %v319
      %v903 = vunpack.c.l.b16 %v320
      %v904 = vunpack.c.l.b16 %v321
      %v905 = vunpack.c.l.b16 %v322
      %v906 = vunpack.c.l.b16 %v323
      %v907 = vunpack.c.l.b16 %v324
      %v908 = vunpack.c.l.b16 %v325
      %v909 = vunpack.c.l.b16 %v326
      %v910 = vunpack.c.l.b16 %v327
      %v911 = vunpack.c.l.b16 %v328
      %v912 = vunpack.c.l.b16 %v329
      %v913 = vunpack.c.l.b16 %v330
      %v914 = vunpack.c.l.b16 %v331
      %v915 = vunpack.c.l.b16 %v332
      %v916 = vunpack.c.l.b16 %v333
      %v917 = vunpack.c.l.b16 %v334
      %v918 = vunpack.c.l.b16 %v335
      %v919 = vunpack.c.l.b16 %v336
      %v920 = vunpack.c.l.b16 %v337
      %v921 = vunpack.c.l.b16 %v338
      %v922 = vunpack.c.l.b16 %v339
      %v923 = vunpack.c.l.b16 %v340
      %v924 = vunpack.c.l.b16 %v341
      %v925 = vunpack.c.l.b16 %v342
      %v926 = vunpack.c.l.b16 %v343
      %v927 = vunpack.c.l.b16 %v344
      %v928 = vunpack.c.l.b16 %v345
      %v929 = vunpack.c.l.b16 %v346
      %v930 = vunpack.c.l.b16 %v347
      %v931 = vunpack.c.l.b16 %v348
      %v932 = vunpack.c.l.b16 %v349
      %v933 = vunpack.c.l.b16 %v350
      %v934 = vunpack.c.l.b16 %v351
      %v935 = vunpack.c.l.b16 %v352
      %v936 = vunpack.c.l.b16 %v353
      %v937 = vunpack.c.l.b16 %v354
      %v938 = vunpack.c.l.b16 %v355
      %v939 = vunpack.c.l.b16 %v356
      %v940 = vunpack.c.l.b16 %v357
      %v941 = vunpack.c.l.b16 %v358
      %v942 = vunpack.c.l.b16 %v359
      %v943 = vunpack.c.l.b16 %v360
      %v944 = vunpack.c.l.b16 %v361
      %v945 = vunpack.c.l.b16 %v362
      %v946 = vunpack.c.l.b16 %v363
      %v947 = vunpack.c.l.b16 %v364
      %v948 = vunpack.c.l.b16 %v365
      %v949 = vunpack.c.l.b16 %v366
      %v950 = vunpack.c.l.b16 %v367
      %v951 = vunpack.c.l.b16 %v368
      %v952 = vunpack.c.l.b16 %v369
      %v953 = vunpack.c.l.b16 %v370
      %v954 = vunpack.c.l.b16 %v371
      %v955 = vunpack.c.l.b16 %v372
      %v956 = vunpack.c.l.b16 %v373
      %v957 = vunpack.c.l.b16 %v374
      %v958 = vunpack.c.l.b16 %v375
      %v959 = vunpack.c.l.b16 %v376
      %v960 = vunpack.c.l.b16 %v377
      %v961 = vunpack.c.l.b16 %v378
      %v962 = vunpack.c.l.b16 %v379
      %v963 = vunpack.c.l.b16 %v380
      %v964 = vunpack.c.l.b16 %v381
      %v965 = vunpack.c.l.b16 %v382
      %v966 = vunpack.c.l.b16 %v383
      %v967 = vunpack.c.l.b16 %v384
      %v968 = vunpack.c.l.b16 %v385
      %v969 = vunpack.c.l.b16 %v386
      %v970 = vunpack.c.l.b16 %v387
      %v971 = vunpack.c.l.b16 %v388
      %v972 = vunpack.c.l.b16 %v389
      %v973 = vpack.c.b16 %v894, %v893
      %v974 = vpack.c.b16 %v896, %v895
      %v975 = vpack.c.b16 %v898, %v897
      %v976 = vpack.c.b16 %v900, %v899
      %v977 = vpack.c.b16 %v902, %v901
      %v978 = vpack.c.b16 %v904, %v903
      %v979 = vpack.c.b16 %v906, %v905
      %v980 = vpack.c.b16 %v908, %v907
      %v981 = vpack.c.b16 %v910, %v909
      %v982 = vpack.c.b16 %v912, %v911
      %v983 = vpack.c.b16 %v914, %v913
      %v984 = vpack.c.b16 %v916, %v915
      %v985 = vpack.c.b16 %v918, %v917
      %v986 = vpack.c.b16 %v920, %v919
      %v987 = vpack.c.b16 %v922, %v921
      %v988 = vpack.c.b16 %v924, %v923
      %v989 = vpack.c.b16 %v926, %v925
      %v990 = vpack.c.b16 %v928, %v927
      %v991 = vpack.c.b16 %v930, %v929
      %v992 = vpack.c.b16 %v932, %v931
      %v993 = vpack.c.b16 %v934, %v933
      %v994 = vpack.c.b16 %v936, %v935
      %v995 = vpack.c.b16 %v938, %v937
      %v996 = vpack.c.b16 %v940, %v939
      %v997 = vpack.c.b16 %v942, %v941
      %v998 = vpack.c.b16 %v944, %v943
      %v999 = vpack.c.b16 %v946, %v945
      %v1000 = vpack.c.b16 %v948, %v947
      %v1001 = vpack.c.b16 %v950, %v949
      %v1002 = vpack.c.b16 %v952, %v951
      %v1003 = vpack.c.b16 %v954, %v953
      %v1004 = vpack.c.b16 %v956, %v955
      %v1005 = vpack.c.b16 %v958, %v957
      %v1006 = vpack.c.b16 %v960, %v959
      %v1007 = vpack.c.b16 %v962, %v961
      %v1008 = vpack.c.b16 %v964, %v963
      %v1009 = vpack.c.b16 %v966, %v965
      %v1010 = vpack.c.b16 %v968, %v967
      %v1011 = vpack.c.b16 %v970, %v969
      %v1012 = vpack.c.b16 %v972, %v971
      %1053 = vmatprep.subr.bf16.mxu0 0
      %1054 = vmatpush1.bf16.msra.mxu0 %v980
      %1055 = vmatprep.subr.bf16.mxu0 0
      %1056 = vmatpush1.bf16.msra.mxu0 %v979
      %1057 = vmatprep.subr.bf16.mxu0 0
      %1058 = vmatpush1.bf16.msra.mxu0 %v978
      %1059 = vmatprep.subr.bf16.mxu0 0
      %1060 = vmatpush1.bf16.msra.mxu0 %v977
      %1061 = vmatprep.subr.bf16.mxu0 0
      %1062 = vmatpush1.bf16.msra.mxu0 %v976
      %1063 = vmatprep.subr.bf16.mxu0 0
      %1064 = vmatpush1.bf16.msra.mxu0 %v975
      %1065 = vmatprep.subr.bf16.mxu0 0
      %1066 = vmatpush1.bf16.msra.mxu0 %v974
      %1067 = vmatprep.subr.bf16.mxu0 0
      %1068 = vmatpush1.bf16.msra.mxu0 %v973
      %1069 = vmatprep.subr.bf16.mxu0 0
      %1070 = vmatpush2.bf16.msra.mxu0 %v988
      %1071 = vmatprep.subr.bf16.mxu0 0
      %1072 = vmatpush2.bf16.msra.mxu0 %v987
      %1073 = vmatprep.subr.bf16.mxu0 0
      %1074 = vmatpush2.bf16.msra.mxu0 %v986
      %1075 = vmatprep.subr.bf16.mxu0 0
      %1076 = vmatpush2.bf16.msra.mxu0 %v985
      %1077 = vmatprep.subr.bf16.mxu0 0
      %1078 = vmatpush2.bf16.msra.mxu0 %v984
      %1079 = vmatprep.subr.bf16.mxu0 0
      %1080 = vmatpush2.bf16.msra.mxu0 %v983
      %1081 = vmatprep.subr.bf16.mxu0 0
      %1082 = vmatpush2.bf16.msra.mxu0 %v982
      %1083 = vmatprep.subr.bf16.mxu0 0
      %1084 = vmatpush2.bf16.msra.mxu0 %v981
      %1085 = vmatprep.mubr.bf16.mxu0 %v654
      %1086 = vmatmul.mubr.bf16.gmra.mxu0 %v653
      %v1087 = vpop.f32.mrf.mxu0
      %v1088 = vadd.f32 %v395, %v1087
      %v1089 = vpop.f32.mrf.mxu0
      %v1090 = vpop.f32.mrf.mxu0
      %v1091 = vadd.f32 %v395, %v1090
      %v1092 = vpop.f32.mrf.mxu0
      %1093 = vmatprep.mubr.bf16.mxu0 %v659
      %1094 = vmatmul.mubr.bf16.gmra.mxu0 %v658
      %v1095 = vpop.f32.mrf.mxu0
      %v1096 = vadd.f32 %v395, %v1095
      %v1097 = vpop.f32.mrf.mxu0
      %v1098 = vpop.f32.mrf.mxu0
      %v1099 = vadd.f32 %v395, %v1098
      %v1100 = vpop.f32.mrf.mxu0
      %1101 = vmatprep.mubr.bf16.mxu0 %v664
      %1102 = vmatmul.mubr.bf16.gmra.mxu0 %v663
      %v1103 = vpop.f32.mrf.mxu0
      %v1104 = vadd.f32 %v395, %v1103
      %v1105 = vpop.f32.mrf.mxu0
      %v1106 = vpop.f32.mrf.mxu0
      %v1107 = vadd.f32 %v395, %v1106
      %v1108 = vpop.f32.mrf.mxu0
      %1109 = vmatprep.mubr.bf16.mxu0 %v669
      %1110 = vmatmul.mubr.bf16.gmra.mxu0 %v668
      %v1111 = vpop.f32.mrf.mxu0
      %v1112 = vadd.f32 %v395, %v1111
      %v1113 = vpop.f32.mrf.mxu0
      %v1114 = vpop.f32.mrf.mxu0
      %v1115 = vadd.f32 %v395, %v1114
      %v1116 = vpop.f32.mrf.mxu0
      %1117 = vmatprep.mubr.bf16.mxu0 %v674
      %1118 = vmatmul.mubr.bf16.gmra.mxu0 %v673
      %v1119 = vpop.f32.mrf.mxu0
      %v1120 = vadd.f32 %v395, %v1119
      %v1121 = vpop.f32.mrf.mxu0
      %v1122 = vpop.f32.mrf.mxu0
      %v1123 = vadd.f32 %v395, %v1122
      %v1124 = vpop.f32.mrf.mxu0
      %1125 = vmatprep.mubr.bf16.mxu0 %v679
      %1126 = vmatmul.mubr.bf16.gmra.mxu0 %v678
      %v1127 = vpop.f32.mrf.mxu0
      %v1128 = vadd.f32 %v395, %v1127
      %v1129 = vpop.f32.mrf.mxu0
      %v1130 = vpop.f32.mrf.mxu0
      %v1131 = vadd.f32 %v395, %v1130
      %v1132 = vpop.f32.mrf.mxu0
      %1133 = vmatprep.mubr.bf16.mxu0 %v684
      %1134 = vmatmul.mubr.bf16.gmra.mxu0 %v683
      %v1135 = vpop.f32.mrf.mxu0
      %v1136 = vadd.f32 %v395, %v1135
      %v1137 = vpop.f32.mrf.mxu0
      %v1138 = vpop.f32.mrf.mxu0
      %v1139 = vadd.f32 %v395, %v1138
      %v1140 = vpop.f32.mrf.mxu0
      %1141 = vmatprep.mubr.bf16.mxu0 %v689
      %1142 = vmatmul.mubr.bf16.gmra.mxu0 %v688
      %v1143 = vpop.f32.mrf.mxu0
      %v1144 = vadd.f32 %v395, %v1143
      %v1145 = vpop.f32.mrf.mxu0
      %v1146 = vpop.f32.mrf.mxu0
      %v1147 = vadd.f32 %v395, %v1146
      %v1148 = vpop.f32.mrf.mxu0
      %1149 = vmatprep.mubr.bf16.mxu0 %v694
      %1150 = vmatmul.mubr.bf16.gmra.mxu0 %v693
      %v1151 = vpop.f32.mrf.mxu0
      %v1152 = vadd.f32 %v395, %v1151
      %v1153 = vpop.f32.mrf.mxu0
      %v1154 = vpop.f32.mrf.mxu0
      %v1155 = vadd.f32 %v395, %v1154
      %v1156 = vpop.f32.mrf.mxu0
      %1157 = vmatprep.mubr.bf16.mxu0 %v699
      %1158 = vmatmul.mubr.bf16.gmra.mxu0 %v698
      %v1159 = vpop.f32.mrf.mxu0
      %v1160 = vadd.f32 %v395, %v1159
      %v1161 = vpop.f32.mrf.mxu0
      %v1162 = vpop.f32.mrf.mxu0
      %v1163 = vadd.f32 %v395, %v1162
      %v1164 = vpop.f32.mrf.mxu0
      %1165 = vmatprep.mubr.bf16.mxu0 %v704
      %1166 = vmatmul.mubr.bf16.gmra.mxu0 %v703
      %v1167 = vpop.f32.mrf.mxu0
      %v1168 = vadd.f32 %v395, %v1167
      %v1169 = vpop.f32.mrf.mxu0
      %v1170 = vpop.f32.mrf.mxu0
      %v1171 = vadd.f32 %v395, %v1170
      %v1172 = vpop.f32.mrf.mxu0
      %1173 = vmatprep.mubr.bf16.mxu0 %v709
      %1174 = vmatmul.mubr.bf16.gmra.mxu0 %v708
      %v1175 = vpop.f32.mrf.mxu0
      %v1176 = vadd.f32 %v395, %v1175
      %v1177 = vpop.f32.mrf.mxu0
      %v1178 = vpop.f32.mrf.mxu0
      %v1179 = vadd.f32 %v395, %v1178
      %v1180 = vpop.f32.mrf.mxu0
      %1181 = vmatprep.mubr.bf16.mxu0 %v714
      %1182 = vmatmul.mubr.bf16.gmra.mxu0 %v713
      %v1183 = vpop.f32.mrf.mxu0
      %v1184 = vadd.f32 %v395, %v1183
      %v1185 = vpop.f32.mrf.mxu0
      %v1186 = vpop.f32.mrf.mxu0
      %v1187 = vadd.f32 %v395, %v1186
      %v1188 = vpop.f32.mrf.mxu0
      %1189 = vmatprep.mubr.bf16.mxu0 %v719
      %1190 = vmatmul.mubr.bf16.gmra.mxu0 %v718
      %v1191 = vpop.f32.mrf.mxu0
      %v1192 = vadd.f32 %v395, %v1191
      %v1193 = vpop.f32.mrf.mxu0
      %v1194 = vpop.f32.mrf.mxu0
      %v1195 = vadd.f32 %v395, %v1194
      %v1196 = vpop.f32.mrf.mxu0
      %1197 = vmatprep.mubr.bf16.mxu0 %v724
      %1198 = vmatmul.mubr.bf16.gmra.mxu0 %v723
      %v1199 = vpop.f32.mrf.mxu0
      %v1200 = vadd.f32 %v395, %v1199
      %v1201 = vpop.f32.mrf.mxu0
      %v1202 = vpop.f32.mrf.mxu0
      %v1203 = vadd.f32 %v395, %v1202
      %v1204 = vpop.f32.mrf.mxu0
      %1205 = vmatprep.mubr.bf16.mxu0 %v729
      %1206 = vmatmul.mubr.bf16.gmra.mxu0 %v728
      %v1207 = vpop.f32.mrf.mxu0
      %v1208 = vadd.f32 %v395, %v1207
      %v1209 = vpop.f32.mrf.mxu0
      %v1210 = vpop.f32.mrf.mxu0
      %v1211 = vadd.f32 %v395, %v1210
      %v1212 = vpop.f32.mrf.mxu0
      %1213 = vdwg.mxu0
      %1214 = vmatprep.subr.bf16.mxu0 0
      %1215 = vmatpush1.bf16.msra.mxu0 %v996
      %1216 = vmatprep.subr.bf16.mxu0 0
      %1217 = vmatpush1.bf16.msra.mxu0 %v995
      %1218 = vmatprep.subr.bf16.mxu0 0
      %1219 = vmatpush1.bf16.msra.mxu0 %v994
      %1220 = vmatprep.subr.bf16.mxu0 0
      %1221 = vmatpush1.bf16.msra.mxu0 %v993
      %1222 = vmatprep.subr.bf16.mxu0 0
      %1223 = vmatpush1.bf16.msra.mxu0 %v992
      %1224 = vmatprep.subr.bf16.mxu0 0
      %1225 = vmatpush1.bf16.msra.mxu0 %v991
      %1226 = vmatprep.subr.bf16.mxu0 0
      %1227 = vmatpush1.bf16.msra.mxu0 %v990
      %1228 = vmatprep.subr.bf16.mxu0 0
      %1229 = vmatpush1.bf16.msra.mxu0 %v989
      %1230 = vmatprep.subr.bf16.mxu0 0
      %1231 = vmatpush2.bf16.msra.mxu0 %v1004
      %1232 = vmatprep.subr.bf16.mxu0 0
      %1233 = vmatpush2.bf16.msra.mxu0 %v1003
      %1234 = vmatprep.subr.bf16.mxu0 0
      %1235 = vmatpush2.bf16.msra.mxu0 %v1002
      %1236 = vmatprep.subr.bf16.mxu0 0
      %1237 = vmatpush2.bf16.msra.mxu0 %v1001
      %1238 = vmatprep.subr.bf16.mxu0 0
      %1239 = vmatpush2.bf16.msra.mxu0 %v1000
      %1240 = vmatprep.subr.bf16.mxu0 0
      %1241 = vmatpush2.bf16.msra.mxu0 %v999
      %1242 = vmatprep.subr.bf16.mxu0 0
      %1243 = vmatpush2.bf16.msra.mxu0 %v998
      %1244 = vmatprep.subr.bf16.mxu0 0
      %1245 = vmatpush2.bf16.msra.mxu0 %v997
      %1246 = vmatprep.mubr.bf16.mxu0 %v656
      %1247 = vmatmul.mubr.bf16.gmra.mxu0 %v655
      %v1248 = vpop.f32.mrf.mxu0
      %v1249 = vadd.f32 %v1088, %v1248
      %v1250 = vpop.f32.mrf.mxu0
      %v1251 = vpop.f32.mrf.mxu0
      %v1252 = vadd.f32 %v1091, %v1251
      %v1253 = vpop.f32.mrf.mxu0
      %1254 = vmatprep.mubr.bf16.mxu0 %v661
      %1255 = vmatmul.mubr.bf16.gmra.mxu0 %v660
      %v1256 = vpop.f32.mrf.mxu0
      %v1257 = vadd.f32 %v1096, %v1256
      %v1258 = vpop.f32.mrf.mxu0
      %v1259 = vpop.f32.mrf.mxu0
      %v1260 = vadd.f32 %v1099, %v1259
      %v1261 = vpop.f32.mrf.mxu0
      %1262 = vmatprep.mubr.bf16.mxu0 %v666
      %1263 = vmatmul.mubr.bf16.gmra.mxu0 %v665
      %v1264 = vpop.f32.mrf.mxu0
      %v1265 = vadd.f32 %v1104, %v1264
      %v1266 = vpop.f32.mrf.mxu0
      %v1267 = vpop.f32.mrf.mxu0
      %v1268 = vadd.f32 %v1107, %v1267
      %v1269 = vpop.f32.mrf.mxu0
      %1270 = vmatprep.mubr.bf16.mxu0 %v671
      %1271 = vmatmul.mubr.bf16.gmra.mxu0 %v670
      %v1272 = vpop.f32.mrf.mxu0
      %v1273 = vadd.f32 %v1112, %v1272
      %v1274 = vpop.f32.mrf.mxu0
      %v1275 = vpop.f32.mrf.mxu0
      %v1276 = vadd.f32 %v1115, %v1275
      %v1277 = vpop.f32.mrf.mxu0
      %1278 = vmatprep.mubr.bf16.mxu0 %v676
      %1279 = vmatmul.mubr.bf16.gmra.mxu0 %v675
      %v1280 = vpop.f32.mrf.mxu0
      %v1281 = vadd.f32 %v1120, %v1280
      %v1282 = vpop.f32.mrf.mxu0
      %v1283 = vpop.f32.mrf.mxu0
      %v1284 = vadd.f32 %v1123, %v1283
      %v1285 = vpop.f32.mrf.mxu0
      %1286 = vmatprep.mubr.bf16.mxu0 %v681
      %1287 = vmatmul.mubr.bf16.gmra.mxu0 %v680
      %v1288 = vpop.f32.mrf.mxu0
      %v1289 = vadd.f32 %v1128, %v1288
      %v1290 = vpop.f32.mrf.mxu0
      %v1291 = vpop.f32.mrf.mxu0
      %v1292 = vadd.f32 %v1131, %v1291
      %v1293 = vpop.f32.mrf.mxu0
      %1294 = vmatprep.mubr.bf16.mxu0 %v686
      %1295 = vmatmul.mubr.bf16.gmra.mxu0 %v685
      %v1296 = vpop.f32.mrf.mxu0
      %v1297 = vadd.f32 %v1136, %v1296
      %v1298 = vpop.f32.mrf.mxu0
      %v1299 = vpop.f32.mrf.mxu0
      %v1300 = vadd.f32 %v1139, %v1299
      %v1301 = vpop.f32.mrf.mxu0
      %1302 = vmatprep.mubr.bf16.mxu0 %v691
      %1303 = vmatmul.mubr.bf16.gmra.mxu0 %v690
      %v1304 = vpop.f32.mrf.mxu0
      %v1305 = vadd.f32 %v1144, %v1304
      %v1306 = vpop.f32.mrf.mxu0
      %v1307 = vpop.f32.mrf.mxu0
      %v1308 = vadd.f32 %v1147, %v1307
      %v1309 = vpop.f32.mrf.mxu0
      %1310 = vmatprep.mubr.bf16.mxu0 %v696
      %1311 = vmatmul.mubr.bf16.gmra.mxu0 %v695
      %v1312 = vpop.f32.mrf.mxu0
      %v1313 = vadd.f32 %v1152, %v1312
      %v1314 = vpop.f32.mrf.mxu0
      %v1315 = vpop.f32.mrf.mxu0
      %v1316 = vadd.f32 %v1155, %v1315
      %v1317 = vpop.f32.mrf.mxu0
      %1318 = vmatprep.mubr.bf16.mxu0 %v701
      %1319 = vmatmul.mubr.bf16.gmra.mxu0 %v700
      %v1320 = vpop.f32.mrf.mxu0
      %v1321 = vadd.f32 %v1160, %v1320
      %v1322 = vpop.f32.mrf.mxu0
      %v1323 = vpop.f32.mrf.mxu0
      %v1324 = vadd.f32 %v1163, %v1323
      %v1325 = vpop.f32.mrf.mxu0
      %1326 = vmatprep.mubr.bf16.mxu0 %v706
      %1327 = vmatmul.mubr.bf16.gmra.mxu0 %v705
      %v1328 = vpop.f32.mrf.mxu0
      %v1329 = vadd.f32 %v1168, %v1328
      %v1330 = vpop.f32.mrf.mxu0
      %v1331 = vpop.f32.mrf.mxu0
      %v1332 = vadd.f32 %v1171, %v1331
      %v1333 = vpop.f32.mrf.mxu0
      %1334 = vmatprep.mubr.bf16.mxu0 %v711
      %1335 = vmatmul.mubr.bf16.gmra.mxu0 %v710
      %v1336 = vpop.f32.mrf.mxu0
      %v1337 = vadd.f32 %v1176, %v1336
      %v1338 = vpop.f32.mrf.mxu0
      %v1339 = vpop.f32.mrf.mxu0
      %v1340 = vadd.f32 %v1179, %v1339
      %v1341 = vpop.f32.mrf.mxu0
      %1342 = vmatprep.mubr.bf16.mxu0 %v716
      %1343 = vmatmul.mubr.bf16.gmra.mxu0 %v715
      %v1344 = vpop.f32.mrf.mxu0
      %v1345 = vadd.f32 %v1184, %v1344
      %v1346 = vpop.f32.mrf.mxu0
      %v1347 = vpop.f32.mrf.mxu0
      %v1348 = vadd.f32 %v1187, %v1347
      %v1349 = vpop.f32.mrf.mxu0
      %1350 = vmatprep.mubr.bf16.mxu0 %v721
      %1351 = vmatmul.mubr.bf16.gmra.mxu0 %v720
      %v1352 = vpop.f32.mrf.mxu0
      %v1353 = vadd.f32 %v1192, %v1352
      %v1354 = vpop.f32.mrf.mxu0
      %v1355 = vpop.f32.mrf.mxu0
      %v1356 = vadd.f32 %v1195, %v1355
      %v1357 = vpop.f32.mrf.mxu0
      %1358 = vmatprep.mubr.bf16.mxu0 %v726
      %1359 = vmatmul.mubr.bf16.gmra.mxu0 %v725
      %v1360 = vpop.f32.mrf.mxu0
      %v1361 = vadd.f32 %v1200, %v1360
      %v1362 = vpop.f32.mrf.mxu0
      %v1363 = vpop.f32.mrf.mxu0
      %v1364 = vadd.f32 %v1203, %v1363
      %v1365 = vpop.f32.mrf.mxu0
      %1366 = vmatprep.mubr.bf16.mxu0 %v731
      %1367 = vmatmul.mubr.bf16.gmra.mxu0 %v730
      %v1368 = vpop.f32.mrf.mxu0
      %v1369 = vadd.f32 %v1208, %v1368
      %v1370 = vpop.f32.mrf.mxu0
      %v1371 = vpop.f32.mrf.mxu0
      %v1372 = vadd.f32 %v1211, %v1371
      %v1373 = vpop.f32.mrf.mxu0
      %1374 = vdwg.mxu0
      %1375 = vmatprep.subr.bf16.mxu0 0
      %1376 = vmatpush1.bf16.msra.mxu0 %v1012
      %1377 = vmatprep.subr.bf16.mxu0 0
      %1378 = vmatpush1.bf16.msra.mxu0 %v1011
      %1379 = vmatprep.subr.bf16.mxu0 0
      %1380 = vmatpush1.bf16.msra.mxu0 %v1010
      %1381 = vmatprep.subr.bf16.mxu0 0
      %1382 = vmatpush1.bf16.msra.mxu0 %v1009
      %1383 = vmatprep.subr.bf16.mxu0 0
      %1384 = vmatpush1.bf16.msra.mxu0 %v1008
      %1385 = vmatprep.subr.bf16.mxu0 0
      %1386 = vmatpush1.bf16.msra.mxu0 %v1007
      %1387 = vmatprep.subr.bf16.mxu0 0
      %1388 = vmatpush1.bf16.msra.mxu0 %v1006
      %1389 = vmatprep.subr.bf16.mxu0 0
      %1390 = vmatpush1.bf16.msra.mxu0 %v1005
      %1391 = vmatprep.subr.bf16.mxu0 0
      %1392 = vmatpush2.bf16.msra.mxu0 0
      %1393 = vmatprep.subr.bf16.mxu0 0
      %1394 = vmatpush2.bf16.msra.mxu0 0
      %1395 = vmatprep.subr.bf16.mxu0 0
      %1396 = vmatpush2.bf16.msra.mxu0 0
      %1397 = vmatprep.subr.bf16.mxu0 0
      %1398 = vmatpush2.bf16.msra.mxu0 0
      %1399 = vmatprep.subr.bf16.mxu0 0
      %1400 = vmatpush2.bf16.msra.mxu0 0
      %1401 = vmatprep.subr.bf16.mxu0 0
      %1402 = vmatpush2.bf16.msra.mxu0 0
      %1403 = vmatprep.subr.bf16.mxu0 0
      %1404 = vmatpush2.bf16.msra.mxu0 0
      %1405 = vmatprep.subr.bf16.mxu0 0
      %1406 = vmatpush2.bf16.msra.mxu0 0
      %1407 = vmatprep.mubr.bf16.mxu0 0
      %1408 = vmatmul.mubr.bf16.gmra.mxu0 %v657
      %v1409 = vpop.f32.mrf.mxu0
      %v1410 = vadd.f32 %v1249, %v1409
      %v1411 = vpop.f32.mrf.mxu0
      %v1412 = vpop.f32.mrf.mxu0
      %v1413 = vadd.f32 %v1252, %v1412
      %v1414 = vpop.f32.mrf.mxu0
      %1415 = vmatprep.mubr.bf16.mxu0 0
      %1416 = vmatmul.mubr.bf16.gmra.mxu0 %v662
      %v1417 = vpop.f32.mrf.mxu0
      %v1418 = vadd.f32 %v1257, %v1417
      %v1419 = vpop.f32.mrf.mxu0
      %v1420 = vpop.f32.mrf.mxu0
      %v1421 = vadd.f32 %v1260, %v1420
      %v1422 = vpop.f32.mrf.mxu0
      %1423 = vmatprep.mubr.bf16.mxu0 0
      %1424 = vmatmul.mubr.bf16.gmra.mxu0 %v667
      %v1425 = vpop.f32.mrf.mxu0
      %v1426 = vadd.f32 %v1265, %v1425
      %v1427 = vpop.f32.mrf.mxu0
      %v1428 = vpop.f32.mrf.mxu0
      %v1429 = vadd.f32 %v1268, %v1428
      %v1430 = vpop.f32.mrf.mxu0
      %1431 = vmatprep.mubr.bf16.mxu0 0
      %1432 = vmatmul.mubr.bf16.gmra.mxu0 %v672
      %v1433 = vpop.f32.mrf.mxu0
      %v1434 = vadd.f32 %v1273, %v1433
      %v1435 = vpop.f32.mrf.mxu0
      %v1436 = vpop.f32.mrf.mxu0
      %v1437 = vadd.f32 %v1276, %v1436
      %v1438 = vpop.f32.mrf.mxu0
      %1439 = vmatprep.mubr.bf16.mxu0 0
      %1440 = vmatmul.mubr.bf16.gmra.mxu0 %v677
      %v1441 = vpop.f32.mrf.mxu0
      %v1442 = vadd.f32 %v1281, %v1441
      %v1443 = vpop.f32.mrf.mxu0
      %v1444 = vpop.f32.mrf.mxu0
      %v1445 = vadd.f32 %v1284, %v1444
      %v1446 = vpop.f32.mrf.mxu0
      %1447 = vmatprep.mubr.bf16.mxu0 0
      %1448 = vmatmul.mubr.bf16.gmra.mxu0 %v682
      %v1449 = vpop.f32.mrf.mxu0
      %v1450 = vadd.f32 %v1289, %v1449
      %v1451 = vpop.f32.mrf.mxu0
      %v1452 = vpop.f32.mrf.mxu0
      %v1453 = vadd.f32 %v1292, %v1452
      %v1454 = vpop.f32.mrf.mxu0
      %1455 = vmatprep.mubr.bf16.mxu0 0
      %1456 = vmatmul.mubr.bf16.gmra.mxu0 %v687
      %v1457 = vpop.f32.mrf.mxu0
      %v1458 = vadd.f32 %v1297, %v1457
      %v1459 = vpop.f32.mrf.mxu0
      %v1460 = vpop.f32.mrf.mxu0
      %v1461 = vadd.f32 %v1300, %v1460
      %v1462 = vpop.f32.mrf.mxu0
      %1463 = vmatprep.mubr.bf16.mxu0 0
      %1464 = vmatmul.mubr.bf16.gmra.mxu0 %v692
      %v1465 = vpop.f32.mrf.mxu0
      %v1466 = vadd.f32 %v1305, %v1465
      %v1467 = vpop.f32.mrf.mxu0
      %v1468 = vpop.f32.mrf.mxu0
      %v1469 = vadd.f32 %v1308, %v1468
      %v1470 = vpop.f32.mrf.mxu0
      %1471 = vmatprep.mubr.bf16.mxu0 0
      %1472 = vmatmul.mubr.bf16.gmra.mxu0 %v697
      %v1473 = vpop.f32.mrf.mxu0
      %v1474 = vadd.f32 %v1313, %v1473
      %v1475 = vpop.f32.mrf.mxu0
      %v1476 = vpop.f32.mrf.mxu0
      %v1477 = vadd.f32 %v1316, %v1476
      %v1478 = vpop.f32.mrf.mxu0
      %1479 = vmatprep.mubr.bf16.mxu0 0
      %1480 = vmatmul.mubr.bf16.gmra.mxu0 %v702
      %v1481 = vpop.f32.mrf.mxu0
      %v1482 = vadd.f32 %v1321, %v1481
      %v1483 = vpop.f32.mrf.mxu0
      %v1484 = vpop.f32.mrf.mxu0
      %v1485 = vadd.f32 %v1324, %v1484
      %v1486 = vpop.f32.mrf.mxu0
      %1487 = vmatprep.mubr.bf16.mxu0 0
      %1488 = vmatmul.mubr.bf16.gmra.mxu0 %v707
      %v1489 = vpop.f32.mrf.mxu0
      %v1490 = vadd.f32 %v1329, %v1489
      %v1491 = vpop.f32.mrf.mxu0
      %v1492 = vpop.f32.mrf.mxu0
      %v1493 = vadd.f32 %v1332, %v1492
      %v1494 = vpop.f32.mrf.mxu0
      %1495 = vmatprep.mubr.bf16.mxu0 0
      %1496 = vmatmul.mubr.bf16.gmra.mxu0 %v712
      %v1497 = vpop.f32.mrf.mxu0
      %v1498 = vadd.f32 %v1337, %v1497
      %v1499 = vpop.f32.mrf.mxu0
      %v1500 = vpop.f32.mrf.mxu0
      %v1501 = vadd.f32 %v1340, %v1500
      %v1502 = vpop.f32.mrf.mxu0
      %1503 = vmatprep.mubr.bf16.mxu0 0
      %1504 = vmatmul.mubr.bf16.gmra.mxu0 %v717
      %v1505 = vpop.f32.mrf.mxu0
      %v1506 = vadd.f32 %v1345, %v1505
      %v1507 = vpop.f32.mrf.mxu0
      %v1508 = vpop.f32.mrf.mxu0
      %v1509 = vadd.f32 %v1348, %v1508
      %v1510 = vpop.f32.mrf.mxu0
      %1511 = vmatprep.mubr.bf16.mxu0 0
      %1512 = vmatmul.mubr.bf16.gmra.mxu0 %v722
      %v1513 = vpop.f32.mrf.mxu0
      %v1514 = vadd.f32 %v1353, %v1513
      %v1515 = vpop.f32.mrf.mxu0
      %v1516 = vpop.f32.mrf.mxu0
      %v1517 = vadd.f32 %v1356, %v1516
      %v1518 = vpop.f32.mrf.mxu0
      %1519 = vmatprep.mubr.bf16.mxu0 0
      %1520 = vmatmul.mubr.bf16.gmra.mxu0 %v727
      %v1521 = vpop.f32.mrf.mxu0
      %v1522 = vadd.f32 %v1361, %v1521
      %v1523 = vpop.f32.mrf.mxu0
      %v1524 = vpop.f32.mrf.mxu0
      %v1525 = vadd.f32 %v1364, %v1524
      %v1526 = vpop.f32.mrf.mxu0
      %1527 = vmatprep.mubr.bf16.mxu0 0
      %1528 = vmatmul.mubr.bf16.gmra.mxu0 %v732
      %v1529 = vpop.f32.mrf.mxu0
      %v1530 = vadd.f32 %v1369, %v1529
      %v1531 = vpop.f32.mrf.mxu0
      %v1532 = vpop.f32.mrf.mxu0
      %v1533 = vadd.f32 %v1372, %v1532
      %v1534 = vpop.f32.mrf.mxu0
      %1535 = vdwg.mxu0
      %v1536 = vtanh.pop %v1410
      %v1537 = vtanh.pop %v1413
      %v1538 = vtanh.pop %v1418
      %v1539 = vtanh.pop %v1421
      %v1540 = vtanh.pop %v1426
      %v1541 = vtanh.pop %v1429
      %v1542 = vtanh.pop %v1434
      %v1543 = vtanh.pop %v1437
      %v1544 = vtanh.pop %v1442
      %v1545 = vtanh.pop %v1445
      %v1546 = vtanh.pop %v1450
      %v1547 = vtanh.pop %v1453
      %v1548 = vtanh.pop %v1458
      %v1549 = vtanh.pop %v1461
      %v1550 = vtanh.pop %v1466
      %v1551 = vtanh.pop %v1469
      %v1552 = vtanh.pop %v1474
      %v1553 = vtanh.pop %v1477
      %v1554 = vtanh.pop %v1482
      %v1555 = vtanh.pop %v1485
      %v1556 = vtanh.pop %v1490
      %v1557 = vtanh.pop %v1493
      %v1558 = vtanh.pop %v1498
      %v1559 = vtanh.pop %v1501
      %v1560 = vtanh.pop %v1506
      %v1561 = vtanh.pop %v1509
      %v1562 = vtanh.pop %v1514
      %v1563 = vtanh.pop %v1517
      %v1564 = vtanh.pop %v1522
      %v1565 = vtanh.pop %v1525
      %v1566 = vtanh.pop %v1530
      %v1567 = vtanh.pop %v1533
      %1568 = vst [vmem:[%s211] sm:$0xff] %v1536
      %1569 = vst [vmem:[%s211 + $0x8] sm:$0xff] %v1537
      %1570 = vst [vmem:[%s211 + $0x10] sm:$0xff] %v1538
      %1571 = vst [vmem:[%s211 + $0x18] sm:$0xff] %v1539
      %1572 = vst [vmem:[%s211 + $0x20] sm:$0xff] %v1540
      %1573 = vst [vmem:[%s211 + $0x28] sm:$0xff] %v1541
      %1574 = vst [vmem:[%s211 + $0x30] sm:$0xff] %v1542
      %1575 = vst [vmem:[%s211 + $0x38] sm:$0xff] %v1543
      %1576 = vst [vmem:[%s211 + $0x40] sm:$0xff] %v1544
      %1577 = vst [vmem:[%s211 + $0x48] sm:$0xff] %v1545
      %1578 = vst [vmem:[%s211 + $0x50] sm:$0xff] %v1546
      %1579 = vst [vmem:[%s211 + $0x58] sm:$0xff] %v1547
      %1580 = vst [vmem:[%s211 + $0x60] sm:$0xff] %v1548
      %1581 = vst [vmem:[%s211 + $0x68] sm:$0xff] %v1549
      %1582 = vst [vmem:[%s211 + $0x70] sm:$0xff] %v1550
      %1583 = vst [vmem:[%s211 + $0x78] sm:$0xff] %v1551
      %1584 = vst [vmem:[%s211 + $0x80] sm:$0xff] %v1552
      %1585 = vst [vmem:[%s211 + $0x88] sm:$0xff] %v1553
      %1586 = vst [vmem:[%s211 + $0x90] sm:$0xff] %v1554
      %1587 = vst [vmem:[%s211 + $0x98] sm:$0xff] %v1555
      %1588 = vst [vmem:[%s211 + $0xa0] sm:$0xff] %v1556
      %1589 = vst [vmem:[%s211 + $0xa8] sm:$0xff] %v1557
      %1590 = vst [vmem:[%s211 + $0xb0] sm:$0xff] %v1558
      %1591 = vst [vmem:[%s211 + $0xb8] sm:$0xff] %v1559
      %1592 = vst [vmem:[%s211 + $0xc0] sm:$0xff] %v1560
      %1593 = vst [vmem:[%s211 + $0xc8] sm:$0xff] %v1561
      %1594 = vst [vmem:[%s211 + $0xd0] sm:$0xff] %v1562
      %1595 = vst [vmem:[%s211 + $0xd8] sm:$0xff] %v1563
      %1596 = vst [vmem:[%s211 + $0xe0] sm:$0xff] %v1564
      %1597 = vst [vmem:[%s211 + $0xe8] sm:$0xff] %v1565
      %1598 = vst [vmem:[%s211 + $0xf0] sm:$0xff] %v1566
      %1599 = vst [vmem:[%s211 + $0xf8] sm:$0xff] %v1567
      %s1600 = smul.u32 32, %s19
      %p1601 = scmp.lt.s32.totalorder %s18, 1
      %s1602 = scalar_select %p1601, %s18, 1
      %p1603 = scmp.lt.s32.totalorder %s1600, 31
      %s1604 = scalar_select %p1603, %s1600, 31
      %s1605 = smul.addr %s1602, 32
      %s1606 = sadd.s32 %s1604, %s1605
      %s1607 = smul.addr %s1606, 8
      %s1608 = scalar_lea.vmem %s3, %s1607
      // Predicated region
      $region33: #{lama_generator_forward.77} parent=31 // pred_check
        %p1609 = pneg %p116
      $region34: #{lama_generator_forward.77} parent=31 // pred_check_branch
        %1611 = sbr.rel (%p1609) target = $region36
      $region35: #{lama_generator_forward.77} parent=31 // pred_region
        %s1612 = smul.u32 32, %s19
      $region36: #{lama_generator_forward.77} parent=31 // pred_fallthru
        _
    $region32: #{lama_generator_forward.77} parent=5 // pred_fallthru
      _
    %p1613 = scmp.le.s32.totalorder 2, %s9
    // Predicated region
    $region37: #{lama_generator_forward.77} parent=5 // pred_check
      %p1614 = pneg %p1613
    $region38: #{lama_generator_forward.77} parent=5 // pred_check_branch
      %1616 = sbr.rel (%p1614) target = $region40
    $region39: #{lama_generator_forward.77} parent=5 // pred_region
      %s1617 = ssub.s32 %s9, 2
      // Predicated region
      $region41: #{lama_generator_forward.77} parent=39 // pred_check
        %p1618 = pneg %p122
      $region42: #{lama_generator_forward.77} parent=39 // pred_check_branch
        %1620 = sbr.rel (%p1618) target = $region44
      $region43: #{lama_generator_forward.77} parent=39 // pred_region
        %s1621 = smul.u32 32, %s21
        %p1622 = scmp.lt.s32.totalorder %s20, 1
        %s1623 = scalar_select %p1622, %s20, 1
        %p1624 = scmp.lt.s32.totalorder %s1621, 31
        %s1625 = scalar_select %p1624, %s1621, 31
        %s1626 = smul.addr %s1623, 32
        %s1627 = sadd.s32 %s1625, %s1626
        %s1628 = smul.addr %s1627, 8
        %s1629 = scalar_lea.vmem %s3, %s1628
      $region44: #{lama_generator_forward.77} parent=39 // pred_fallthru
        _
    $region40: #{lama_generator_forward.77} parent=5 // pred_fallthru
      _
  $region6: #{lama_generator_forward.77} parent=0 // loop_footer
    %s13 = sadd.s32 1, %s9
  $region7: #{lama_generator_forward.77} parent=0 // loop_footer_branch
    %8 = sbr.rel target = $region3
  $region8: #{lama_generator_forward.77} parent=0 // loop_exit
    _

</llo_original>
